<compile_context>
chip_gen: v5e
topology: v5e:2x2
jax: 0.10.0
libtpu: 0.0.40
codegen_flags: <defaults>
</compile_context>

<pallas_src>
import functools

import jax
import jax.numpy as jnp
from jax.experimental import pallas as pl
from jax.experimental.pallas import tpu as pltpu

EPS = 1e-5
LANE = 128
VMEM_LIMIT = 32 * 1024 * 1024  # safe scoped-VMEM budget on v5e/v6e/v7x


def _cdiv(a, b):
    return -(-a // b)


def _round_up(x, m):
    return _cdiv(x, m) * m


def _pick_tn(cpad):
    # 256-wide Cout tiles fill the 2x256x256 MXU on v6e/v7x; 128 otherwise.
    return 256 if cpad % 256 == 0 else LANE


class _ConvGeom:
    """Static (Python int) geometry of one tap-decomposed conv."""

    def __init__(self, **kw):
        self.__dict__.update(kw)


# ---------------------------------------------------------------------------
# Glue: stride space-to-depth slab construction + weight rearrangement
# ---------------------------------------------------------------------------
def _pad_to(x, axis, before, target):
    """Prepend `before` zeros, then pad/crop the end so dim == target."""
    size = x.shape[axis]
    after = max(target - size - before, 0)
    pads = [(0, 0)] * x.ndim
    pads[axis] = (before, after)
    x = jnp.pad(x, pads)
    if x.shape[axis] > target:
        x = jax.lax.slice_in_dim(x, 0, target, axis=axis)
    return x


def _build_slab(x, ksize, stride, padding, wc=None):
    """x: (N, D, H, W, C).  Returns (slab, geom) where slab is
    (N, Dc, slab_rows, S*C) bf16: one coarse depth-slice per row-plane, with
    the stride phases folded into the channel (lane) dimension and a halo of
    extra rows so every H/W tap is a contiguous row-offset of the same slab."""
    n, d, h, w, c = x.shape
    kd, kh, kw = ksize
    sd, sh, sw = stride
    pd, ph, pw = padding
    do = (d + 2 * pd - kd) // sd + 1
    ho = (h + 2 * ph - kh) // sh + 1
    wo = (w + 2 * pw - kw) // sw + 1
    qd, qh, qw = _cdiv(kd, sd), _cdiv(kh, sh), _cdiv(kw, sw)
    dc, hc = do + qd - 1, ho + qh - 1
    if wc is None:
        wc = wo + qw - 1
    assert wc >= wo + qw - 1

    xp = _pad_to(x, 1, pd, dc * sd)
    xp = _pad_to(xp, 2, ph, hc * sh)
    xp = _pad_to(xp, 3, pw, wc * sw)
    xr = xp.reshape(n, dc, sd, hc, sh, wc, sw, c)
    xr = jnp.transpose(xr, (0, 1, 3, 5, 2, 4, 6, 7))        # (n, dc, hc, wc, sd, sh, sw, c)
    sc = sd * sh * sw * c
    xs = xr.reshape(n, dc, hc * wc, sc)

    rpb = _round_up(ho * wc, 8)                              # output rows per (n, do) block
    slab_rows = (qh - 1) * wc + (qw - 1) + rpb               # + halo for the H/W taps
    xs = jnp.pad(xs, ((0, 0), (0, 0), (0, slab_rows - hc * wc), (0, 0)))

    g = _ConvGeom(n=n, do=do, ho=ho, wo=wo, qd=qd, qh=qh, qw=qw,
                  wc=wc, rpb=rpb, sc=sc, slab_rows=slab_rows)
    return xs.astype(jnp.bfloat16), g


def _rearrange_weights(w, stride, cpad):
    """(Cout, Cin, kd, kh, kw) -> (Qd, Qh*Qw*S*Cin, Cpad) bf16, with the stride
    phases laid out to match the slab's channel layout (zero-padded taps)."""
    cout, cin, kd, kh, kw = w.shape
    sd, sh, sw = stride
    qd, qh, qw = _cdiv(kd, sd), _cdiv(kh, sh), _cdiv(kw, sw)
    wt = jnp.transpose(w, (2, 3, 4, 1, 0))                   # (kd, kh, kw, Cin, Cout)
    wt = jnp.pad(wt, ((0, qd * sd - kd), (0, qh * sh - kh), (0, qw * sw - kw),
                      (0, 0), (0, cpad - cout)))
    wt = wt.reshape(qd, sd, qh, sh, qw, sw, cin, cpad)
    wt = jnp.transpose(wt, (0, 2, 4, 1, 3, 5, 6, 7))         # (qd, qh, qw, sd, sh, sw, Cin, Cpad)
    wt = wt.reshape(qd, qh * qw * sd * sh * sw * cin, cpad)
    return wt.astype(jnp.bfloat16)


def _row_mask(ho, wo, wc, rpb):
    """1.0 for rows holding real output positions, 0.0 for layout junk rows."""
    r = jnp.arange(rpb, dtype=jnp.int32)
    valid = (r < ho * wc) & ((r % wc) < wo)
    return valid.astype(jnp.float32).reshape(rpb, 1)


# ---------------------------------------------------------------------------
# Pallas kernels
# ---------------------------------------------------------------------------
def _conv_tap_kernel(mask_ref, x_ref, w_ref, o_ref, sum_ref, sq_ref, acc_ref,
                     *, qh, qw, wc, sc):
    """One (n, d-slice, cout-tile) output block; grid axis 3 = depth tap qi.

    x_ref : (1, 1, slab_rows, sc) bf16 - one coarse depth-slice (rows + halo)
    w_ref : (qd, qh*qw*sc, tn)    bf16 - VMEM-resident rearranged weights
    o_ref : (1, 1, rpb, tn)       bf16 - conv output rows for this d-slice
    sum/sq: (1, 1, 8, tn)         f32  - fused masked BN partial statistics
    acc   : (rpb, tn)             f32  - MXU accumulator (lives across qi)
    """
    qi = pl.program_id(3)
    nq = pl.num_programs(3)

    @pl.when(qi == 0)
    def _():
        acc_ref[...] = jnp.zeros_like(acc_ref)

    rpb = acc_ref.shape[0]
    wq = w_ref.at[qi]                                  # (qh*qw*sc, tn) view for this depth tap
    part = None
    for j in range(qh):
        for k in range(qw):
            off = j * wc + k                           # contiguous row offset of this H/W tap
            xt = x_ref[0, 0, off:off + rpb, :]         # (rpb, sc) bf16
            t = j * qw + k
            wt = wq[t * sc:(t + 1) * sc, :]            # (sc, tn) bf16
            d = jnp.dot(xt, wt, preferred_element_type=jnp.float32)
            part = d if part is None else part + d
    acc_ref[...] += part

    @pl.when(qi == nq - 1)
    def _():
        acc = acc_ref[...]
        o_ref[...] = acc[None, None].astype(o_ref.dtype)
        # Fused, masked BN statistics: junk rows contribute exactly zero.
        # Per-(n, d-slice) partials keep every non-reduction axis "parallel".
        m = mask_ref[...]                              # (rpb, 1) f32
        am = acc * m
        s = jnp.sum(am, axis=0, keepdims=True)         # (1, tn)
        q = jnp.sum(am * acc, axis=0, keepdims=True)   # masked sum of squares
        sum_ref[...] = jnp.broadcast_to(s[None, None], sum_ref.shape)
        sq_ref[...] = jnp.broadcast_to(q[None, None], sq_ref.shape)


def _affine_kernel(y_ref, sc_ref, sh_ref, o_ref, *, relu):
    out = y_ref[...].astype(jnp.float32) * sc_ref[...] + sh_ref[...]
    if relu:
        out = jnp.maximum(out, 0.0)
    o_ref[...] = out.astype(o_ref.dtype)


def _affine_res_kernel(y_ref, r_ref, sc_ref, sh_ref, rsc_ref, rsh_ref, o_ref, *, relu):
    out = y_ref[...].astype(jnp.float32) * sc_ref[...] + sh_ref[...]
    out = out + (r_ref[...].astype(jnp.float32) * rsc_ref[...] + rsh_ref[...])
    if relu:
        out = jnp.maximum(out, 0.0)
    o_ref[...] = out.astype(o_ref.dtype)


# ---------------------------------------------------------------------------
# pallas_call wrappers
# ---------------------------------------------------------------------------
def conv3d_stats(x, w, stride, padding, wc=None):
    """Tap-decomposed Conv3d (no bias) with fused BatchNorm batch statistics."""
    cout = w.shape[0]
    cpad = _round_up(cout, LANE)
    tn = _pick_tn(cpad)
    slab, g = _build_slab(x, w.shape[2:], stride, padding, wc)
    wmat = _rearrange_weights(w, stride, cpad)
    mask = _row_mask(g.ho, g.wo, g.wc, g.rpb)

    n, do, rpb, sc = g.n, g.do, g.rpb, g.sc
    grid = (n, do, cpad // tn, g.qd)
    kernel = functools.partial(_conv_tap_kernel, qh=g.qh, qw=g.qw, wc=g.wc, sc=sc)

    # TODO(synk): add an extra H-row tiling grid axis for very large volumes
    # (>~128^3), where a full (Ho*Wc)-row block would outgrow the VMEM budget.
    y, s_sum, s_sq = pl.pallas_call(
        kernel,
        grid=grid,
        in_specs=[
            pl.BlockSpec((rpb, 1), lambda nb, db, j, qi: (0, 0)),                 # valid-row mask
            pl.BlockSpec((1, 1, g.slab_rows, sc),
                         lambda nb, db, j, qi: (nb, db + qi, 0, 0)),               # input d-slice
            pl.BlockSpec((g.qd, g.qh * g.qw * sc, tn),
                         lambda nb, db, j, qi: (0, 0, j)),                         # resident weights
        ],
        out_specs=[
            pl.BlockSpec((1, 1, rpb, tn), lambda nb, db, j, qi: (nb, db, 0, j)),   # conv output
            pl.BlockSpec((1, 1, 8, tn), lambda nb, db, j, qi: (nb, db, 0, j)),     # partial sums
            pl.BlockSpec((1, 1, 8, tn), lambda nb, db, j, qi: (nb, db, 0, j)),     # partial sumsq
        ],
        out_shape=[
            jax.ShapeDtypeStruct((n, do, rpb, cpad), jnp.bfloat16),
            jax.ShapeDtypeStruct((n, do, 8, cpad), jnp.float32),
            jax.ShapeDtypeStruct((n, do, 8, cpad), jnp.float32),
        ],
        scratch_shapes=[pltpu.VMEM((rpb, tn), jnp.float32)],
        compiler_params=pltpu.CompilerParams(
            dimension_semantics=("parallel", "parallel", "parallel", "arbitrary"),
            vmem_limit_bytes=VMEM_LIMIT,
        ),
    )(mask, slab, wmat)
    return y, s_sum, s_sq, g


def _affine(y, scale, shift, *, relu, residual=None, r_scale=None, r_shift=None,
            out_dtype=jnp.bfloat16):
    """Per-channel affine (folded BatchNorm) + optional residual affine + ReLU."""
    n, do, rpb, cpad = y.shape
    tn = _pick_tn(cpad)
    grid = (n, do, cpad // tn)
    blk = pl.BlockSpec((1, 1, rpb, tn), lambda nb, db, j: (nb, db, 0, j))
    vec = pl.BlockSpec((1, 1, 1, tn), lambda nb, db, j: (0, 0, 0, j))
    if residual is None:
        kern = functools.partial(_affine_kernel, relu=relu)
        args = (y, scale, shift)
        in_specs = [blk, vec, vec]
    else:
        assert residual.shape == y.shape, (residual.shape, y.shape)
        kern = functools.partial(_affine_res_kernel, relu=relu)
        args = (y, residual, scale, shift, r_scale, r_shift)
        in_specs = [blk, blk, vec, vec, vec, vec]
    return pl.pallas_call(
        kern,
        grid=grid,
        in_specs=in_specs,
        out_specs=blk,
        out_shape=jax.ShapeDtypeStruct(y.shape, out_dtype),
        compiler_params=pltpu.CompilerParams(
            dimension_semantics=("parallel", "parallel", "parallel"),
            vmem_limit_bytes=VMEM_LIMIT,
        ),
    )(*args)


# ---------------------------------------------------------------------------
# BatchNorm folding + layout helpers (tiny per-channel / layout-only glue)
# ---------------------------------------------------------------------------
def _bn_scale_shift(sum_p, sq_p, gamma, beta, m_valid, cpad, eps=EPS):
    s = jnp.sum(sum_p[:, :, 0, :], axis=(0, 1))
    q = jnp.sum(sq_p[:, :, 0, :], axis=(0, 1))
    mean = s / float(m_valid)
    var = jnp.maximum(q / float(m_valid) - mean * mean, 0.0)
    c = gamma.shape[0]
    g = jnp.pad(gamma.astype(jnp.float32), (0, cpad - c))
    b = jnp.pad(beta.astype(jnp.float32), (0, cpad - c))
    scale = g * jax.lax.rsqrt(var + eps)
    shift = b - mean * scale
    return scale.reshape(1, 1, 1, cpad), shift.reshape(1, 1, 1, cpad)


def _extract(y, g, out_c):
    # (n, do, rpb, cpad) -> (n, do, ho, wo, out_c): strip junk rows / columns.
    n, do = y.shape[0], y.shape[1]
    y = y[:, :, :g.ho * g.wc, :out_c].reshape(n, do, g.ho, g.wc, out_c)
    return y[:, :, :, :g.wo, :]


def _embed_rows(x, g, cpad):
    # Embed a raw NDHWC tensor into the conv-output row layout (n, do, rpb, cpad).
    n, d, h, w_sp, c = x.shape
    xe = jnp.pad(x, ((0, 0), (0, 0), (0, 0), (0, g.wc - w_sp), (0, cpad - c)))
    xe = xe.reshape(n, d, h * g.wc, cpad)
    xe = jnp.pad(xe, ((0, 0), (0, 0), (0, g.rpb - h * g.wc), (0, 0)))
    return xe.astype(jnp.bfloat16)


def _out_dim(size, k, s, p):
    return (size + 2 * p - k) // s + 1


# ---------------------------------------------------------------------------
# ResidualBlock3D forward
# ---------------------------------------------------------------------------
def residual_block_3d(x_ncdhw, params, stride):
    """Forward pass of ResidualBlock3D; input/output NCDHW like PyTorch."""
    x = jnp.transpose(x_ncdhw, (0, 2, 3, 4, 1)).astype(jnp.float32)  # NDHWC
    n, d, h, w_sp, in_c = x.shape
    out_c = params["w1"].shape[0]
    cpad = _round_up(out_c, LANE)

    # conv1 (k=7, s=2, p=3) -> fused batch stats -> bn1 + relu
    y1, s1, q1, g1 = conv3d_stats(x, params["w1"], (2, 2, 2), (3, 3, 3))
    m1 = n * g1.do * g1.ho * g1.wo
    sc1, sh1 = _bn_scale_shift(s1, q1, params["g1"], params["be1"], m1, cpad)
    h1 = _affine(y1, sc1, sh1, relu=True)
    h1 = _extract(h1, g1, out_c)                       # (n, do1, ho1, wo1, out_c) bf16

    st = (stride, stride, stride)
    if stride != 1 or in_c != out_c:
        # Conv shortcut: give both convs the same coarse output width so their
        # row layouts (incl. junk columns) align for the fused residual add.
        wo2 = _out_dim(g1.wo, 3, stride, 1)
        wos = _out_dim(w_sp, 1, stride, 0)
        wc_common = max(wo2 + _cdiv(3, stride) - 1, wos)
        y2, s2, q2, g2 = conv3d_stats(h1, params["w2"], st, (1, 1, 1), wc=wc_common)
        ys, ss, qs, gs = conv3d_stats(x, params["ws"], st, (0, 0, 0), wc=wc_common)
        assert (g2.do, g2.ho, g2.wo) == (gs.do, gs.ho, gs.wo), \
            "residual shapes must agree (same constraint as the PyTorch module)"
        assert y2.shape == ys.shape, (y2.shape, ys.shape)
        sc2, sh2 = _bn_scale_shift(s2, q2, params["g2"], params["be2"],
                                   n * g2.do * g2.ho * g2.wo, cpad)
        scs, shs = _bn_scale_shift(ss, qs, params["gs"], params["bes"],
                                   n * gs.do * gs.ho * gs.wo, cpad)
        out = _affine(y2, sc2, sh2, relu=True, residual=ys, r_scale=scs, r_shift=shs)
    else:
        # Identity shortcut (only shape-valid, as in PyTorch, when conv1's
        # stride-2 downsample keeps spatial dims, i.e. spatial size 1).
        y2, s2, q2, g2 = conv3d_stats(h1, params["w2"], st, (1, 1, 1))
        sc2, sh2 = _bn_scale_shift(s2, q2, params["g2"], params["be2"],
                                   n * g2.do * g2.ho * g2.wo, cpad)
        assert (d, h, w_sp) == (g2.do, g2.ho, g2.wo), "identity shortcut shape mismatch"
        idn = _embed_rows(x, g2, cpad)
        ones = jnp.ones((1, 1, 1, cpad), jnp.float32)
        zeros = jnp.zeros((1, 1, 1, cpad), jnp.float32)
        out = _affine(y2, sc2, sh2, relu=True, residual=idn, r_scale=ones, r_shift=zeros)

    out = _extract(out, g2, out_c).astype(jnp.float32)
    return jnp.transpose(out, (0, 4, 1, 2, 3))         # back to NCDHW


# ---------------------------------------------------------------------------
# Deterministic parameter init (nn.Conv3d / nn.BatchNorm3d shapes)
# NOTE: nn.Conv3d biases are omitted — a per-channel constant cancels exactly
# under the training-mode BatchNorm that follows every conv in this block.
# ---------------------------------------------------------------------------
def init_params(key, in_c, out_c):
    ks = jax.random.split(key, 3)

    def unif(k, shape, fan_in):
        bound = float(fan_in) ** -0.5
        return jax.random.uniform(k, shape, jnp.float32, -bound, bound)

    ones = jnp.ones((out_c,), jnp.float32)
    zeros = jnp.zeros((out_c,), jnp.float32)
    return dict(
        w1=unif(ks[0], (out_c, in_c, 7, 7, 7), in_c * 343), g1=ones, be1=zeros,
        w2=unif(ks[1], (out_c, out_c, 3, 3, 3), out_c * 27), g2=ones, be2=zeros,
        ws=unif(ks[2], (out_c, in_c, 1, 1, 1), in_c), gs=ones, bes=zeros,
    )


# ---------------------------------------------------------------------------
# Pure-JAX reference (bf16 matmul inputs / f32 accumulate, like the kernels)
# ---------------------------------------------------------------------------
def _conv3d_ref(x, w, stride, padding):
    wr = jnp.transpose(w, (2, 3, 4, 1, 0)).astype(jnp.bfloat16)   # DHWIO
    return jax.lax.conv_general_dilated(
        x.astype(jnp.bfloat16), wr, window_strides=stride,
        padding=[(p, p) for p in padding],
        dimension_numbers=("NDHWC", "DHWIO", "NDHWC"),
        preferred_element_type=jnp.float32)


def _bn_ref(y, g, b):
    # Training-mode stats in f32; normalization applied to bf16-rounded
    # activations (the kernels store conv outputs in bf16).
    mean = jnp.mean(y, axis=(0, 1, 2, 3), keepdims=True)
    var = jnp.maximum(jnp.mean(y * y, axis=(0, 1, 2, 3), keepdims=True) - mean * mean, 0.0)
    yq = y.astype(jnp.bfloat16).astype(jnp.float32)
    return (yq - mean) * jax.lax.rsqrt(var + EPS) * g + b


def residual_block_3d_ref(x_ncdhw, p, stride, in_c, out_c):
    x = jnp.transpose(x_ncdhw, (0, 2, 3, 4, 1)).astype(jnp.float32)
    h = _conv3d_ref(x, p["w1"], (2, 2, 2), (3, 3, 3))
    h = jnp.maximum(_bn_ref(h, p["g1"], p["be1"]), 0.0)
    h2 = _conv3d_ref(h, p["w2"], (stride,) * 3, (1, 1, 1))
    h2 = _bn_ref(h2, p["g2"], p["be2"])
    if stride != 1 or in_c != out_c:
        idn = _conv3d_ref(x, p["ws"], (stride,) * 3, (0, 0, 0))
        idn = _bn_ref(idn, p["gs"], p["bes"])
    else:
        idn = x
    out = jnp.maximum(h2 + idn, 0.0)
    return jnp.transpose(out, (0, 4, 1, 2, 3))


# ---------------------------------------------------------------------------
if __name__ == "__main__":
    key = jax.random.PRNGKey(0)
    k_x, k_p = jax.random.split(key)

    # The module's residual add is only shape-valid when conv1's fixed stride-2
    # downsample is a no-op, i.e. spatial size <= 2 (exactly as in PyTorch).
    N, IN_C, OUT_C = 4, 4, 8
    D = H = W = 2
    STRIDE = 2

    x = jax.random.normal(k_x, (N, IN_C, D, H, W), jnp.float32)
    params = init_params(k_p, IN_C, OUT_C)

    fwd = jax.jit(functools.partial(residual_block_3d, stride=STRIDE))
    out = jax.block_until_ready(fwd(x, params))

    ref = jax.block_until_ready(residual_block_3d_ref(x, params, STRIDE, IN_C, OUT_C))
    assert out.shape == ref.shape, (out.shape, ref.shape)
    max_err = float(jnp.max(jnp.abs(out - ref)))
    assert max_err < 5e-2, f"mismatch vs reference: {max_err}"

    print("KERNEL_OK")
</pallas_src>

<mosaic_0001>
module attributes {stable_mosaic.version = 11 : i64} {
  func.func @_conv_tap_kernel(%arg0: i32, %arg1: i32, %arg2: i32, %arg3: i32, %arg4: memref<8x1xf32, #tpu.memory_space<vmem>>, %arg5: memref<1x1x23x32xbf16, #tpu.memory_space<vmem>>, %arg6: memref<4x512x128xbf16, #tpu.memory_space<vmem>>, %arg7: memref<1x1x8x128xbf16, #tpu.memory_space<vmem>>, %arg8: memref<1x1x8x128xf32, #tpu.memory_space<vmem>>, %arg9: memref<1x1x8x128xf32, #tpu.memory_space<vmem>>, %arg10: memref<8x128xf32, #tpu.memory_space<vmem>>) attributes {dimension_semantics = [#tpu.dimension_semantics<parallel>, #tpu.dimension_semantics<parallel>, #tpu.dimension_semantics<parallel>, #tpu.dimension_semantics<arbitrary>], iteration_bounds = array<i64: 4, 1, 1, 4>, scalar_prefetch = 0 : i64, scratch_operands = 1 : i64, tpu.core_type = #tpu.core_type<tc>, window_params = [{pipeline_mode = #tpu.pipeline_mode<synchronous>, transform_indices = @transform_0, window_bounds = array<i64: 8, 1>}, {transform_indices = @transform_1, window_bounds = array<i64: 1, 1, 23, 32>}, {transform_indices = @transform_2, window_bounds = array<i64: 4, 512, 128>}, {transform_indices = @transform_3, window_bounds = array<i64: 1, 1, 8, 128>}, {transform_indices = @transform_4, window_bounds = array<i64: 1, 1, 8, 128>}, {transform_indices = @transform_5, window_bounds = array<i64: 1, 1, 8, 128>}]} {
    %c0_i32 = arith.constant 0 : i32
    %0 = arith.cmpi eq, %arg3, %c0_i32 : i32
    %1 = arith.extui %0 : i1 to i32
    %c0_i32_0 = arith.constant 0 : i32
    %2 = arith.cmpi ne, %1, %c0_i32_0 : i32
    scf.if %2 {
      %cst_118 = arith.constant 0.000000e+00 : f32
      %120 = vector.broadcast %cst_118 : f32 to vector<8x128xf32>
      %c0_119 = arith.constant 0 : index
      %c0_120 = arith.constant 0 : index
      %121 = vector.load %arg10[%c0_119, %c0_120] : memref<8x128xf32, #tpu.memory_space<vmem>>, vector<8x128xf32>
      tpu.vector_store %arg10[%c0_119, %c0_120], %120 {strides = array<i32>} : memref<8x128xf32, #tpu.memory_space<vmem>>, vector<8x128xf32>,
    } else {
    }
    %c0 = arith.constant 0 : index
    %c0_1 = arith.constant 0 : index
    %c0_2 = arith.constant 0 : index
    %c0_3 = arith.constant 0 : index
    %3 = vector.load %arg5[%c0, %c0_1, %c0_2, %c0_3] : memref<1x1x23x32xbf16, #tpu.memory_space<vmem>>, vector<1x1x8x32xbf16>
    %4 = vector.shape_cast %3 : vector<1x1x8x32xbf16> to vector<8x32xbf16>
    %c0_i32_4 = arith.constant 0 : i32
    %c0_i32_5 = arith.constant 0 : i32
    %5 = tpu.memref_slice %arg6[%arg3, %c0_i32_4, %c0_i32_5] : memref<4x512x128xbf16, #tpu.memory_space<vmem>> -> memref<1x512x128xbf16, #tpu.memory_space<vmem>>
    %6 = tpu.memref_squeeze %5 : memref<1x512x128xbf16, #tpu.memory_space<vmem>> -> memref<512x128xbf16, #tpu.memory_space<vmem>>
    %c0_6 = arith.constant 0 : index
    %c0_7 = arith.constant 0 : index
    %7 = vector.load %6[%c0_6, %c0_7] : memref<512x128xbf16, #tpu.memory_space<vmem>>, vector<32x128xbf16>
    %cst = arith.constant dense<0.000000e+00> : vector<8x128xf32>
    %8 = tpu.matmul %4, %7, %cst {dimension_numbers = #tpu.dot_dimension_numbers<[1], [0], [0], [1], [0, 0, 1, 1], [], []>} : vector<8x32xbf16>, vector<32x128xbf16>, vector<8x128xf32> -> vector<8x128xf32>
    %c0_8 = arith.constant 0 : index
    %c0_9 = arith.constant 0 : index
    %c1 = arith.constant 1 : index
    %c0_10 = arith.constant 0 : index
    %9 = vector.load %arg5[%c0_8, %c0_9, %c1, %c0_10] : memref<1x1x23x32xbf16, #tpu.memory_space<vmem>>, vector<1x1x8x32xbf16>
    %10 = vector.shape_cast %9 : vector<1x1x8x32xbf16> to vector<8x32xbf16>
    %c0_i32_11 = arith.constant 0 : i32
    %c0_i32_12 = arith.constant 0 : i32
    %11 = tpu.memref_slice %arg6[%arg3, %c0_i32_11, %c0_i32_12] : memref<4x512x128xbf16, #tpu.memory_space<vmem>> -> memref<1x512x128xbf16, #tpu.memory_space<vmem>>
    %12 = tpu.memref_squeeze %11 : memref<1x512x128xbf16, #tpu.memory_space<vmem>> -> memref<512x128xbf16, #tpu.memory_space<vmem>>
    %c32 = arith.constant 32 : index
    %c0_13 = arith.constant 0 : index
    %13 = vector.load %12[%c32, %c0_13] : memref<512x128xbf16, #tpu.memory_space<vmem>>, vector<32x128xbf16>
    %cst_14 = arith.constant dense<0.000000e+00> : vector<8x128xf32>
    %14 = tpu.matmul %10, %13, %cst_14 {dimension_numbers = #tpu.dot_dimension_numbers<[1], [0], [0], [1], [0, 0, 1, 1], [], []>} : vector<8x32xbf16>, vector<32x128xbf16>, vector<8x128xf32> -> vector<8x128xf32>
    %15 = arith.addf %8, %14 : vector<8x128xf32>
    %c0_15 = arith.constant 0 : index
    %c0_16 = arith.constant 0 : index
    %c2 = arith.constant 2 : index
    %c0_17 = arith.constant 0 : index
    %16 = vector.load %arg5[%c0_15, %c0_16, %c2, %c0_17] : memref<1x1x23x32xbf16, #tpu.memory_space<vmem>>, vector<1x1x8x32xbf16>
    %17 = vector.shape_cast %16 : vector<1x1x8x32xbf16> to vector<8x32xbf16>
    %c0_i32_18 = arith.constant 0 : i32
    %c0_i32_19 = arith.constant 0 : i32
    %18 = tpu.memref_slice %arg6[%arg3, %c0_i32_18, %c0_i32_19] : memref<4x512x128xbf16, #tpu.memory_space<vmem>> -> memref<1x512x128xbf16, #tpu.memory_space<vmem>>
    %19 = tpu.memref_squeeze %18 : memref<1x512x128xbf16, #tpu.memory_space<vmem>> -> memref<512x128xbf16, #tpu.memory_space<vmem>>
    %c64 = arith.constant 64 : index
    %c0_20 = arith.constant 0 : index
    %20 = vector.load %19[%c64, %c0_20] : memref<512x128xbf16, #tpu.memory_space<vmem>>, vector<32x128xbf16>
    %cst_21 = arith.constant dense<0.000000e+00> : vector<8x128xf32>
    %21 = tpu.matmul %17, %20, %cst_21 {dimension_numbers = #tpu.dot_dimension_numbers<[1], [0], [0], [1], [0, 0, 1, 1], [], []>} : vector<8x32xbf16>, vector<32x128xbf16>, vector<8x128xf32> -> vector<8x128xf32>
    %22 = arith.addf %15, %21 : vector<8x128xf32>
    %c0_22 = arith.constant 0 : index
    %c0_23 = arith.constant 0 : index
    %c3 = arith.constant 3 : index
    %c0_24 = arith.constant 0 : index
    %23 = vector.load %arg5[%c0_22, %c0_23, %c3, %c0_24] : memref<1x1x23x32xbf16, #tpu.memory_space<vmem>>, vector<1x1x8x32xbf16>
    %24 = vector.shape_cast %23 : vector<1x1x8x32xbf16> to vector<8x32xbf16>
    %c0_i32_25 = arith.constant 0 : i32
    %c0_i32_26 = arith.constant 0 : i32
    %25 = tpu.memref_slice %arg6[%arg3, %c0_i32_25, %c0_i32_26] : memref<4x512x128xbf16, #tpu.memory_space<vmem>> -> memref<1x512x128xbf16, #tpu.memory_space<vmem>>
    %26 = tpu.memref_squeeze %25 : memref<1x512x128xbf16, #tpu.memory_space<vmem>> -> memref<512x128xbf16, #tpu.memory_space<vmem>>
    %c96 = arith.constant 96 : index
    %c0_27 = arith.constant 0 : index
    %27 = vector.load %26[%c96, %c0_27] : memref<512x128xbf16, #tpu.memory_space<vmem>>, vector<32x128xbf16>
    %cst_28 = arith.constant dense<0.000000e+00> : vector<8x128xf32>
    %28 = tpu.matmul %24, %27, %cst_28 {dimension_numbers = #tpu.dot_dimension_numbers<[1], [0], [0], [1], [0, 0, 1, 1], [], []>} : vector<8x32xbf16>, vector<32x128xbf16>, vector<8x128xf32> -> vector<8x128xf32>
    %29 = arith.addf %22, %28 : vector<8x128xf32>
    %c0_29 = arith.constant 0 : index
    %c0_30 = arith.constant 0 : index
    %c4 = arith.constant 4 : index
    %c0_31 = arith.constant 0 : index
    %30 = vector.load %arg5[%c0_29, %c0_30, %c4, %c0_31] : memref<1x1x23x32xbf16, #tpu.memory_space<vmem>>, vector<1x1x8x32xbf16>
    %31 = vector.shape_cast %30 : vector<1x1x8x32xbf16> to vector<8x32xbf16>
    %c0_i32_32 = arith.constant 0 : i32
    %c0_i32_33 = arith.constant 0 : i32
    %32 = tpu.memref_slice %arg6[%arg3, %c0_i32_32, %c0_i32_33] : memref<4x512x128xbf16, #tpu.memory_space<vmem>> -> memref<1x512x128xbf16, #tpu.memory_space<vmem>>
    %33 = tpu.memref_squeeze %32 : memref<1x512x128xbf16, #tpu.memory_space<vmem>> -> memref<512x128xbf16, #tpu.memory_space<vmem>>
    %c128 = arith.constant 128 : index
    %c0_34 = arith.constant 0 : index
    %34 = vector.load %33[%c128, %c0_34] : memref<512x128xbf16, #tpu.memory_space<vmem>>, vector<32x128xbf16>
    %cst_35 = arith.constant dense<0.000000e+00> : vector<8x128xf32>
    %35 = tpu.matmul %31, %34, %cst_35 {dimension_numbers = #tpu.dot_dimension_numbers<[1], [0], [0], [1], [0, 0, 1, 1], [], []>} : vector<8x32xbf16>, vector<32x128xbf16>, vector<8x128xf32> -> vector<8x128xf32>
    %36 = arith.addf %29, %35 : vector<8x128xf32>
    %c0_36 = arith.constant 0 : index
    %c0_37 = arith.constant 0 : index
    %c5 = arith.constant 5 : index
    %c0_38 = arith.constant 0 : index
    %37 = vector.load %arg5[%c0_36, %c0_37, %c5, %c0_38] : memref<1x1x23x32xbf16, #tpu.memory_space<vmem>>, vector<1x1x8x32xbf16>
    %38 = vector.shape_cast %37 : vector<1x1x8x32xbf16> to vector<8x32xbf16>
    %c0_i32_39 = arith.constant 0 : i32
    %c0_i32_40 = arith.constant 0 : i32
    %39 = tpu.memref_slice %arg6[%arg3, %c0_i32_39, %c0_i32_40] : memref<4x512x128xbf16, #tpu.memory_space<vmem>> -> memref<1x512x128xbf16, #tpu.memory_space<vmem>>
    %40 = tpu.memref_squeeze %39 : memref<1x512x128xbf16, #tpu.memory_space<vmem>> -> memref<512x128xbf16, #tpu.memory_space<vmem>>
    %c160 = arith.constant 160 : index
    %c0_41 = arith.constant 0 : index
    %41 = vector.load %40[%c160, %c0_41] : memref<512x128xbf16, #tpu.memory_space<vmem>>, vector<32x128xbf16>
    %cst_42 = arith.constant dense<0.000000e+00> : vector<8x128xf32>
    %42 = tpu.matmul %38, %41, %cst_42 {dimension_numbers = #tpu.dot_dimension_numbers<[1], [0], [0], [1], [0, 0, 1, 1], [], []>} : vector<8x32xbf16>, vector<32x128xbf16>, vector<8x128xf32> -> vector<8x128xf32>
    %43 = arith.addf %36, %42 : vector<8x128xf32>
    %c0_43 = arith.constant 0 : index
    %c0_44 = arith.constant 0 : index
    %c6 = arith.constant 6 : index
    %c0_45 = arith.constant 0 : index
    %44 = vector.load %arg5[%c0_43, %c0_44, %c6, %c0_45] : memref<1x1x23x32xbf16, #tpu.memory_space<vmem>>, vector<1x1x8x32xbf16>
    %45 = vector.shape_cast %44 : vector<1x1x8x32xbf16> to vector<8x32xbf16>
    %c0_i32_46 = arith.constant 0 : i32
    %c0_i32_47 = arith.constant 0 : i32
    %46 = tpu.memref_slice %arg6[%arg3, %c0_i32_46, %c0_i32_47] : memref<4x512x128xbf16, #tpu.memory_space<vmem>> -> memref<1x512x128xbf16, #tpu.memory_space<vmem>>
    %47 = tpu.memref_squeeze %46 : memref<1x512x128xbf16, #tpu.memory_space<vmem>> -> memref<512x128xbf16, #tpu.memory_space<vmem>>
    %c192 = arith.constant 192 : index
    %c0_48 = arith.constant 0 : index
    %48 = vector.load %47[%c192, %c0_48] : memref<512x128xbf16, #tpu.memory_space<vmem>>, vector<32x128xbf16>
    %cst_49 = arith.constant dense<0.000000e+00> : vector<8x128xf32>
    %49 = tpu.matmul %45, %48, %cst_49 {dimension_numbers = #tpu.dot_dimension_numbers<[1], [0], [0], [1], [0, 0, 1, 1], [], []>} : vector<8x32xbf16>, vector<32x128xbf16>, vector<8x128xf32> -> vector<8x128xf32>
    %50 = arith.addf %43, %49 : vector<8x128xf32>
    %c0_50 = arith.constant 0 : index
    %c0_51 = arith.constant 0 : index
    %c7 = arith.constant 7 : index
    %c0_52 = arith.constant 0 : index
    %51 = vector.load %arg5[%c0_50, %c0_51, %c7, %c0_52] : memref<1x1x23x32xbf16, #tpu.memory_space<vmem>>, vector<1x1x8x32xbf16>
    %52 = vector.shape_cast %51 : vector<1x1x8x32xbf16> to vector<8x32xbf16>
    %c0_i32_53 = arith.constant 0 : i32
    %c0_i32_54 = arith.constant 0 : i32
    %53 = tpu.memref_slice %arg6[%arg3, %c0_i32_53, %c0_i32_54] : memref<4x512x128xbf16, #tpu.memory_space<vmem>> -> memref<1x512x128xbf16, #tpu.memory_space<vmem>>
    %54 = tpu.memref_squeeze %53 : memref<1x512x128xbf16, #tpu.memory_space<vmem>> -> memref<512x128xbf16, #tpu.memory_space<vmem>>
    %c224 = arith.constant 224 : index
    %c0_55 = arith.constant 0 : index
    %55 = vector.load %54[%c224, %c0_55] : memref<512x128xbf16, #tpu.memory_space<vmem>>, vector<32x128xbf16>
    %cst_56 = arith.constant dense<0.000000e+00> : vector<8x128xf32>
    %56 = tpu.matmul %52, %55, %cst_56 {dimension_numbers = #tpu.dot_dimension_numbers<[1], [0], [0], [1], [0, 0, 1, 1], [], []>} : vector<8x32xbf16>, vector<32x128xbf16>, vector<8x128xf32> -> vector<8x128xf32>
    %57 = arith.addf %50, %56 : vector<8x128xf32>
    %c0_57 = arith.constant 0 : index
    %c0_58 = arith.constant 0 : index
    %c8 = arith.constant 8 : index
    %c0_59 = arith.constant 0 : index
    %58 = vector.load %arg5[%c0_57, %c0_58, %c8, %c0_59] : memref<1x1x23x32xbf16, #tpu.memory_space<vmem>>, vector<1x1x8x32xbf16>
    %59 = vector.shape_cast %58 : vector<1x1x8x32xbf16> to vector<8x32xbf16>
    %c0_i32_60 = arith.constant 0 : i32
    %c0_i32_61 = arith.constant 0 : i32
    %60 = tpu.memref_slice %arg6[%arg3, %c0_i32_60, %c0_i32_61] : memref<4x512x128xbf16, #tpu.memory_space<vmem>> -> memref<1x512x128xbf16, #tpu.memory_space<vmem>>
    %61 = tpu.memref_squeeze %60 : memref<1x512x128xbf16, #tpu.memory_space<vmem>> -> memref<512x128xbf16, #tpu.memory_space<vmem>>
    %c256 = arith.constant 256 : index
    %c0_62 = arith.constant 0 : index
    %62 = vector.load %61[%c256, %c0_62] : memref<512x128xbf16, #tpu.memory_space<vmem>>, vector<32x128xbf16>
    %cst_63 = arith.constant dense<0.000000e+00> : vector<8x128xf32>
    %63 = tpu.matmul %59, %62, %cst_63 {dimension_numbers = #tpu.dot_dimension_numbers<[1], [0], [0], [1], [0, 0, 1, 1], [], []>} : vector<8x32xbf16>, vector<32x128xbf16>, vector<8x128xf32> -> vector<8x128xf32>
    %64 = arith.addf %57, %63 : vector<8x128xf32>
    %c0_64 = arith.constant 0 : index
    %c0_65 = arith.constant 0 : index
    %c9 = arith.constant 9 : index
    %c0_66 = arith.constant 0 : index
    %65 = vector.load %arg5[%c0_64, %c0_65, %c9, %c0_66] : memref<1x1x23x32xbf16, #tpu.memory_space<vmem>>, vector<1x1x8x32xbf16>
    %66 = vector.shape_cast %65 : vector<1x1x8x32xbf16> to vector<8x32xbf16>
    %c0_i32_67 = arith.constant 0 : i32
    %c0_i32_68 = arith.constant 0 : i32
    %67 = tpu.memref_slice %arg6[%arg3, %c0_i32_67, %c0_i32_68] : memref<4x512x128xbf16, #tpu.memory_space<vmem>> -> memref<1x512x128xbf16, #tpu.memory_space<vmem>>
    %68 = tpu.memref_squeeze %67 : memref<1x512x128xbf16, #tpu.memory_space<vmem>> -> memref<512x128xbf16, #tpu.memory_space<vmem>>
    %c288 = arith.constant 288 : index
    %c0_69 = arith.constant 0 : index
    %69 = vector.load %68[%c288, %c0_69] : memref<512x128xbf16, #tpu.memory_space<vmem>>, vector<32x128xbf16>
    %cst_70 = arith.constant dense<0.000000e+00> : vector<8x128xf32>
    %70 = tpu.matmul %66, %69, %cst_70 {dimension_numbers = #tpu.dot_dimension_numbers<[1], [0], [0], [1], [0, 0, 1, 1], [], []>} : vector<8x32xbf16>, vector<32x128xbf16>, vector<8x128xf32> -> vector<8x128xf32>
    %71 = arith.addf %64, %70 : vector<8x128xf32>
    %c0_71 = arith.constant 0 : index
    %c0_72 = arith.constant 0 : index
    %c10 = arith.constant 10 : index
    %c0_73 = arith.constant 0 : index
    %72 = vector.load %arg5[%c0_71, %c0_72, %c10, %c0_73] : memref<1x1x23x32xbf16, #tpu.memory_space<vmem>>, vector<1x1x8x32xbf16>
    %73 = vector.shape_cast %72 : vector<1x1x8x32xbf16> to vector<8x32xbf16>
    %c0_i32_74 = arith.constant 0 : i32
    %c0_i32_75 = arith.constant 0 : i32
    %74 = tpu.memref_slice %arg6[%arg3, %c0_i32_74, %c0_i32_75] : memref<4x512x128xbf16, #tpu.memory_space<vmem>> -> memref<1x512x128xbf16, #tpu.memory_space<vmem>>
    %75 = tpu.memref_squeeze %74 : memref<1x512x128xbf16, #tpu.memory_space<vmem>> -> memref<512x128xbf16, #tpu.memory_space<vmem>>
    %c320 = arith.constant 320 : index
    %c0_76 = arith.constant 0 : index
    %76 = vector.load %75[%c320, %c0_76] : memref<512x128xbf16, #tpu.memory_space<vmem>>, vector<32x128xbf16>
    %cst_77 = arith.constant dense<0.000000e+00> : vector<8x128xf32>
    %77 = tpu.matmul %73, %76, %cst_77 {dimension_numbers = #tpu.dot_dimension_numbers<[1], [0], [0], [1], [0, 0, 1, 1], [], []>} : vector<8x32xbf16>, vector<32x128xbf16>, vector<8x128xf32> -> vector<8x128xf32>
    %78 = arith.addf %71, %77 : vector<8x128xf32>
    %c0_78 = arith.constant 0 : index
    %c0_79 = arith.constant 0 : index
    %c11 = arith.constant 11 : index
    %c0_80 = arith.constant 0 : index
    %79 = vector.load %arg5[%c0_78, %c0_79, %c11, %c0_80] : memref<1x1x23x32xbf16, #tpu.memory_space<vmem>>, vector<1x1x8x32xbf16>
    %80 = vector.shape_cast %79 : vector<1x1x8x32xbf16> to vector<8x32xbf16>
    %c0_i32_81 = arith.constant 0 : i32
    %c0_i32_82 = arith.constant 0 : i32
    %81 = tpu.memref_slice %arg6[%arg3, %c0_i32_81, %c0_i32_82] : memref<4x512x128xbf16, #tpu.memory_space<vmem>> -> memref<1x512x128xbf16, #tpu.memory_space<vmem>>
    %82 = tpu.memref_squeeze %81 : memref<1x512x128xbf16, #tpu.memory_space<vmem>> -> memref<512x128xbf16, #tpu.memory_space<vmem>>
    %c352 = arith.constant 352 : index
    %c0_83 = arith.constant 0 : index
    %83 = vector.load %82[%c352, %c0_83] : memref<512x128xbf16, #tpu.memory_space<vmem>>, vector<32x128xbf16>
    %cst_84 = arith.constant dense<0.000000e+00> : vector<8x128xf32>
    %84 = tpu.matmul %80, %83, %cst_84 {dimension_numbers = #tpu.dot_dimension_numbers<[1], [0], [0], [1], [0, 0, 1, 1], [], []>} : vector<8x32xbf16>, vector<32x128xbf16>, vector<8x128xf32> -> vector<8x128xf32>
    %85 = arith.addf %78, %84 : vector<8x128xf32>
    %c0_85 = arith.constant 0 : index
    %c0_86 = arith.constant 0 : index
    %c12 = arith.constant 12 : index
    %c0_87 = arith.constant 0 : index
    %86 = vector.load %arg5[%c0_85, %c0_86, %c12, %c0_87] : memref<1x1x23x32xbf16, #tpu.memory_space<vmem>>, vector<1x1x8x32xbf16>
    %87 = vector.shape_cast %86 : vector<1x1x8x32xbf16> to vector<8x32xbf16>
    %c0_i32_88 = arith.constant 0 : i32
    %c0_i32_89 = arith.constant 0 : i32
    %88 = tpu.memref_slice %arg6[%arg3, %c0_i32_88, %c0_i32_89] : memref<4x512x128xbf16, #tpu.memory_space<vmem>> -> memref<1x512x128xbf16, #tpu.memory_space<vmem>>
    %89 = tpu.memref_squeeze %88 : memref<1x512x128xbf16, #tpu.memory_space<vmem>> -> memref<512x128xbf16, #tpu.memory_space<vmem>>
    %c384 = arith.constant 384 : index
    %c0_90 = arith.constant 0 : index
    %90 = vector.load %89[%c384, %c0_90] : memref<512x128xbf16, #tpu.memory_space<vmem>>, vector<32x128xbf16>
    %cst_91 = arith.constant dense<0.000000e+00> : vector<8x128xf32>
    %91 = tpu.matmul %87, %90, %cst_91 {dimension_numbers = #tpu.dot_dimension_numbers<[1], [0], [0], [1], [0, 0, 1, 1], [], []>} : vector<8x32xbf16>, vector<32x128xbf16>, vector<8x128xf32> -> vector<8x128xf32>
    %92 = arith.addf %85, %91 : vector<8x128xf32>
    %c0_92 = arith.constant 0 : index
    %c0_93 = arith.constant 0 : index
    %c13 = arith.constant 13 : index
    %c0_94 = arith.constant 0 : index
    %93 = vector.load %arg5[%c0_92, %c0_93, %c13, %c0_94] : memref<1x1x23x32xbf16, #tpu.memory_space<vmem>>, vector<1x1x8x32xbf16>
    %94 = vector.shape_cast %93 : vector<1x1x8x32xbf16> to vector<8x32xbf16>
    %c0_i32_95 = arith.constant 0 : i32
    %c0_i32_96 = arith.constant 0 : i32
    %95 = tpu.memref_slice %arg6[%arg3, %c0_i32_95, %c0_i32_96] : memref<4x512x128xbf16, #tpu.memory_space<vmem>> -> memref<1x512x128xbf16, #tpu.memory_space<vmem>>
    %96 = tpu.memref_squeeze %95 : memref<1x512x128xbf16, #tpu.memory_space<vmem>> -> memref<512x128xbf16, #tpu.memory_space<vmem>>
    %c416 = arith.constant 416 : index
    %c0_97 = arith.constant 0 : index
    %97 = vector.load %96[%c416, %c0_97] : memref<512x128xbf16, #tpu.memory_space<vmem>>, vector<32x128xbf16>
    %cst_98 = arith.constant dense<0.000000e+00> : vector<8x128xf32>
    %98 = tpu.matmul %94, %97, %cst_98 {dimension_numbers = #tpu.dot_dimension_numbers<[1], [0], [0], [1], [0, 0, 1, 1], [], []>} : vector<8x32xbf16>, vector<32x128xbf16>, vector<8x128xf32> -> vector<8x128xf32>
    %99 = arith.addf %92, %98 : vector<8x128xf32>
    %c0_99 = arith.constant 0 : index
    %c0_100 = arith.constant 0 : index
    %c14 = arith.constant 14 : index
    %c0_101 = arith.constant 0 : index
    %100 = vector.load %arg5[%c0_99, %c0_100, %c14, %c0_101] : memref<1x1x23x32xbf16, #tpu.memory_space<vmem>>, vector<1x1x8x32xbf16>
    %101 = vector.shape_cast %100 : vector<1x1x8x32xbf16> to vector<8x32xbf16>
    %c0_i32_102 = arith.constant 0 : i32
    %c0_i32_103 = arith.constant 0 : i32
    %102 = tpu.memref_slice %arg6[%arg3, %c0_i32_102, %c0_i32_103] : memref<4x512x128xbf16, #tpu.memory_space<vmem>> -> memref<1x512x128xbf16, #tpu.memory_space<vmem>>
    %103 = tpu.memref_squeeze %102 : memref<1x512x128xbf16, #tpu.memory_space<vmem>> -> memref<512x128xbf16, #tpu.memory_space<vmem>>
    %c448 = arith.constant 448 : index
    %c0_104 = arith.constant 0 : index
    %104 = vector.load %103[%c448, %c0_104] : memref<512x128xbf16, #tpu.memory_space<vmem>>, vector<32x128xbf16>
    %cst_105 = arith.constant dense<0.000000e+00> : vector<8x128xf32>
    %105 = tpu.matmul %101, %104, %cst_105 {dimension_numbers = #tpu.dot_dimension_numbers<[1], [0], [0], [1], [0, 0, 1, 1], [], []>} : vector<8x32xbf16>, vector<32x128xbf16>, vector<8x128xf32> -> vector<8x128xf32>
    %106 = arith.addf %99, %105 : vector<8x128xf32>
    %c0_106 = arith.constant 0 : index
    %c0_107 = arith.constant 0 : index
    %c15 = arith.constant 15 : index
    %c0_108 = arith.constant 0 : index
    %107 = vector.load %arg5[%c0_106, %c0_107, %c15, %c0_108] : memref<1x1x23x32xbf16, #tpu.memory_space<vmem>>, vector<1x1x8x32xbf16>
    %108 = vector.shape_cast %107 : vector<1x1x8x32xbf16> to vector<8x32xbf16>
    %c0_i32_109 = arith.constant 0 : i32
    %c0_i32_110 = arith.constant 0 : i32
    %109 = tpu.memref_slice %arg6[%arg3, %c0_i32_109, %c0_i32_110] : memref<4x512x128xbf16, #tpu.memory_space<vmem>> -> memref<1x512x128xbf16, #tpu.memory_space<vmem>>
    %110 = tpu.memref_squeeze %109 : memref<1x512x128xbf16, #tpu.memory_space<vmem>> -> memref<512x128xbf16, #tpu.memory_space<vmem>>
    %c480 = arith.constant 480 : index
    %c0_111 = arith.constant 0 : index
    %111 = vector.load %110[%c480, %c0_111] : memref<512x128xbf16, #tpu.memory_space<vmem>>, vector<32x128xbf16>
    %cst_112 = arith.constant dense<0.000000e+00> : vector<8x128xf32>
    %112 = tpu.matmul %108, %111, %cst_112 {dimension_numbers = #tpu.dot_dimension_numbers<[1], [0], [0], [1], [0, 0, 1, 1], [], []>} : vector<8x32xbf16>, vector<32x128xbf16>, vector<8x128xf32> -> vector<8x128xf32>
    %113 = arith.addf %106, %112 : vector<8x128xf32>
    %c0_113 = arith.constant 0 : index
    %c0_114 = arith.constant 0 : index
    %114 = vector.load %arg10[%c0_113, %c0_114] : memref<8x128xf32, #tpu.memory_space<vmem>>, vector<8x128xf32>
    %115 = arith.addf %114, %113 : vector<8x128xf32>
    %c0_115 = arith.constant 0 : index
    %c0_116 = arith.constant 0 : index
    %116 = vector.load %arg10[%c0_115, %c0_116] : memref<8x128xf32, #tpu.memory_space<vmem>>, vector<8x128xf32>
    tpu.vector_store %arg10[%c0_115, %c0_116], %115 {strides = array<i32>} : memref<8x128xf32, #tpu.memory_space<vmem>>, vector<8x128xf32>,
    %c3_i32 = arith.constant 3 : i32
    %117 = arith.cmpi eq, %arg3, %c3_i32 : i32
    %118 = arith.extui %117 : i1 to i32
    %c0_i32_117 = arith.constant 0 : i32
    %119 = arith.cmpi ne, %118, %c0_i32_117 : i32
    scf.if %119 {
      %c0_118 = arith.constant 0 : index
      %c0_119 = arith.constant 0 : index
      %120 = vector.load %arg10[%c0_118, %c0_119] : memref<8x128xf32, #tpu.memory_space<vmem>>, vector<8x128xf32>
      %121 = vector.shape_cast %120 : vector<8x128xf32> to vector<1x1x8x128xf32>
      %122 = arith.truncf %121 : vector<1x1x8x128xf32> to vector<1x1x8x128xbf16>
      %c0_120 = arith.constant 0 : index
      %c0_121 = arith.constant 0 : index
      %c0_122 = arith.constant 0 : index
      %c0_123 = arith.constant 0 : index
      %123 = vector.load %arg7[%c0_120, %c0_121, %c0_122, %c0_123] : memref<1x1x8x128xbf16, #tpu.memory_space<vmem>>, vector<1x1x8x128xbf16>
      tpu.vector_store %arg7[%c0_120, %c0_121, %c0_122, %c0_123], %122 {strides = array<i32>} : memref<1x1x8x128xbf16, #tpu.memory_space<vmem>>, vector<1x1x8x128xbf16>,
      %c0_124 = arith.constant 0 : index
      %c0_125 = arith.constant 0 : index
      %124 = vector.load %arg4[%c0_124, %c0_125] : memref<8x1xf32, #tpu.memory_space<vmem>>, vector<8x1xf32>
      %125 = vector.broadcast %124 : vector<8x1xf32> to vector<8x128xf32>
      %126 = arith.mulf %120, %125 : vector<8x128xf32>
      %cst_126 = arith.constant dense<0.000000e+00> : vector<128xf32>
      %127 = vector.multi_reduction <add>, %126, %cst_126 [0] : vector<8x128xf32> to vector<128xf32>
      %128 = vector.shape_cast %127 : vector<128xf32> to vector<1x128xf32>
      %129 = arith.mulf %126, %120 : vector<8x128xf32>
      %cst_127 = arith.constant dense<0.000000e+00> : vector<128xf32>
      %130 = vector.multi_reduction <add>, %129, %cst_127 [0] : vector<8x128xf32> to vector<128xf32>
      %131 = vector.shape_cast %130 : vector<128xf32> to vector<1x128xf32>
      %132 = vector.shape_cast %128 : vector<1x128xf32> to vector<1x1x1x128xf32>
      %133 = vector.shape_cast %132 : vector<1x1x1x128xf32> to vector<1x1x1x128xf32>
      %134 = vector.broadcast %133 : vector<1x1x1x128xf32> to vector<1x1x8x128xf32>
      %c0_128 = arith.constant 0 : index
      %c0_129 = arith.constant 0 : index
      %c0_130 = arith.constant 0 : index
      %c0_131 = arith.constant 0 : index
      %135 = vector.load %arg8[%c0_128, %c0_129, %c0_130, %c0_131] : memref<1x1x8x128xf32, #tpu.memory_space<vmem>>, vector<1x1x8x128xf32>
      tpu.vector_store %arg8[%c0_128, %c0_129, %c0_130, %c0_131], %134 {strides = array<i32>} : memref<1x1x8x128xf32, #tpu.memory_space<vmem>>, vector<1x1x8x128xf32>,
      %136 = vector.shape_cast %131 : vector<1x128xf32> to vector<1x1x1x128xf32>
      %137 = vector.shape_cast %136 : vector<1x1x1x128xf32> to vector<1x1x1x128xf32>
      %138 = vector.broadcast %137 : vector<1x1x1x128xf32> to vector<1x1x8x128xf32>
      %c0_132 = arith.constant 0 : index
      %c0_133 = arith.constant 0 : index
      %c0_134 = arith.constant 0 : index
      %c0_135 = arith.constant 0 : index
      %139 = vector.load %arg9[%c0_132, %c0_133, %c0_134, %c0_135] : memref<1x1x8x128xf32, #tpu.memory_space<vmem>>, vector<1x1x8x128xf32>
      tpu.vector_store %arg9[%c0_132, %c0_133, %c0_134, %c0_135], %138 {strides = array<i32>} : memref<1x1x8x128xf32, #tpu.memory_space<vmem>>, vector<1x1x8x128xf32>,
    } else {
    }
    return
  }
  func.func @transform_0(%arg0: i32, %arg1: i32, %arg2: i32, %arg3: i32) -> (i32, i32) {
    %c0_i32 = arith.constant 0 : i32
    %c0_i32_0 = arith.constant 0 : i32
    %c0_i32_1 = arith.constant 0 : i32
    return %c0_i32, %c0_i32_0 : i32, i32
  }
  func.func @transform_1(%arg0: i32, %arg1: i32, %arg2: i32, %arg3: i32) -> (i32, i32, i32, i32) {
    %0 = arith.addi %arg1, %arg3 : i32
    %c0_i32 = arith.constant 0 : i32
    %c0_i32_0 = arith.constant 0 : i32
    %c0_i32_1 = arith.constant 0 : i32
    return %arg0, %0, %c0_i32, %c0_i32_0 : i32, i32, i32, i32
  }
  func.func @transform_2(%arg0: i32, %arg1: i32, %arg2: i32, %arg3: i32) -> (i32, i32, i32) {
    %c0_i32 = arith.constant 0 : i32
    %c0_i32_0 = arith.constant 0 : i32
    %c0_i32_1 = arith.constant 0 : i32
    return %c0_i32, %c0_i32_0, %arg2 : i32, i32, i32
  }
  func.func @transform_3(%arg0: i32, %arg1: i32, %arg2: i32, %arg3: i32) -> (i32, i32, i32, i32) {
    %c0_i32 = arith.constant 0 : i32
    %c0_i32_0 = arith.constant 0 : i32
    return %arg0, %arg1, %c0_i32, %arg2 : i32, i32, i32, i32
  }
  func.func @transform_4(%arg0: i32, %arg1: i32, %arg2: i32, %arg3: i32) -> (i32, i32, i32, i32) {
    %c0_i32 = arith.constant 0 : i32
    %c0_i32_0 = arith.constant 0 : i32
    return %arg0, %arg1, %c0_i32, %arg2 : i32, i32, i32, i32
  }
  func.func @transform_5(%arg0: i32, %arg1: i32, %arg2: i32, %arg3: i32) -> (i32, i32, i32, i32) {
    %c0_i32 = arith.constant 0 : i32
    %c0_i32_0 = arith.constant 0 : i32
    return %arg0, %arg1, %c0_i32, %arg2 : i32, i32, i32, i32
  }
}

module attributes {stable_mosaic.version = 11 : i64} {
  func.func @_affine_kernel(%arg0: i32, %arg1: i32, %arg2: i32, %arg3: memref<1x1x8x128xbf16, #tpu.memory_space<vmem>>, %arg4: memref<1x1x1x128xf32, #tpu.memory_space<vmem>>, %arg5: memref<1x1x1x128xf32, #tpu.memory_space<vmem>>, %arg6: memref<1x1x8x128xbf16, #tpu.memory_space<vmem>>) attributes {dimension_semantics = [#tpu.dimension_semantics<parallel>, #tpu.dimension_semantics<parallel>, #tpu.dimension_semantics<parallel>], iteration_bounds = array<i64: 4, 1, 1>, scalar_prefetch = 0 : i64, scratch_operands = 0 : i64, tpu.core_type = #tpu.core_type<tc>, window_params = [{transform_indices = @transform_0, window_bounds = array<i64: 1, 1, 8, 128>}, {transform_indices = @transform_1, window_bounds = array<i64: 1, 1, 1, 128>}, {transform_indices = @transform_2, window_bounds = array<i64: 1, 1, 1, 128>}, {transform_indices = @transform_3, window_bounds = array<i64: 1, 1, 8, 128>}]} {
    %c0 = arith.constant 0 : index
    %c0_0 = arith.constant 0 : index
    %c0_1 = arith.constant 0 : index
    %c0_2 = arith.constant 0 : index
    %0 = vector.load %arg3[%c0, %c0_0, %c0_1, %c0_2] : memref<1x1x8x128xbf16, #tpu.memory_space<vmem>>, vector<1x1x8x128xbf16>
    %1 = arith.extf %0 : vector<1x1x8x128xbf16> to vector<1x1x8x128xf32>
    %c0_3 = arith.constant 0 : index
    %c0_4 = arith.constant 0 : index
    %c0_5 = arith.constant 0 : index
    %c0_6 = arith.constant 0 : index
    %2 = vector.load %arg4[%c0_3, %c0_4, %c0_5, %c0_6] : memref<1x1x1x128xf32, #tpu.memory_space<vmem>>, vector<1x1x1x128xf32>
    %3 = vector.broadcast %2 : vector<1x1x1x128xf32> to vector<1x1x8x128xf32>
    %4 = arith.mulf %1, %3 : vector<1x1x8x128xf32>
    %c0_7 = arith.constant 0 : index
    %c0_8 = arith.constant 0 : index
    %c0_9 = arith.constant 0 : index
    %c0_10 = arith.constant 0 : index
    %5 = vector.load %arg5[%c0_7, %c0_8, %c0_9, %c0_10] : memref<1x1x1x128xf32, #tpu.memory_space<vmem>>, vector<1x1x1x128xf32>
    %6 = vector.broadcast %5 : vector<1x1x1x128xf32> to vector<1x1x8x128xf32>
    %7 = arith.addf %4, %6 : vector<1x1x8x128xf32>
    %cst = arith.constant 0.000000e+00 : f32
    %8 = vector.broadcast %cst : f32 to vector<1x1x8x128xf32>
    %9 = arith.maximumf %7, %8 : vector<1x1x8x128xf32>
    %10 = arith.truncf %9 : vector<1x1x8x128xf32> to vector<1x1x8x128xbf16>
    %c0_11 = arith.constant 0 : index
    %c0_12 = arith.constant 0 : index
    %c0_13 = arith.constant 0 : index
    %c0_14 = arith.constant 0 : index
    %11 = vector.load %arg6[%c0_11, %c0_12, %c0_13, %c0_14] : memref<1x1x8x128xbf16, #tpu.memory_space<vmem>>, vector<1x1x8x128xbf16>
    tpu.vector_store %arg6[%c0_11, %c0_12, %c0_13, %c0_14], %10 {strides = array<i32>} : memref<1x1x8x128xbf16, #tpu.memory_space<vmem>>, vector<1x1x8x128xbf16>,
    return
  }
  func.func @transform_0(%arg0: i32, %arg1: i32, %arg2: i32) -> (i32, i32, i32, i32) {
    %c0_i32 = arith.constant 0 : i32
    %c0_i32_0 = arith.constant 0 : i32
    return %arg0, %arg1, %c0_i32, %arg2 : i32, i32, i32, i32
  }
  func.func @transform_1(%arg0: i32, %arg1: i32, %arg2: i32) -> (i32, i32, i32, i32) {
    %c0_i32 = arith.constant 0 : i32
    %c0_i32_0 = arith.constant 0 : i32
    %c0_i32_1 = arith.constant 0 : i32
    %c0_i32_2 = arith.constant 0 : i32
    return %c0_i32, %c0_i32_0, %c0_i32_1, %arg2 : i32, i32, i32, i32
  }
  func.func @transform_2(%arg0: i32, %arg1: i32, %arg2: i32) -> (i32, i32, i32, i32) {
    %c0_i32 = arith.constant 0 : i32
    %c0_i32_0 = arith.constant 0 : i32
    %c0_i32_1 = arith.constant 0 : i32
    %c0_i32_2 = arith.constant 0 : i32
    return %c0_i32, %c0_i32_0, %c0_i32_1, %arg2 : i32, i32, i32, i32
  }
  func.func @transform_3(%arg0: i32, %arg1: i32, %arg2: i32) -> (i32, i32, i32, i32) {
    %c0_i32 = arith.constant 0 : i32
    %c0_i32_0 = arith.constant 0 : i32
    return %arg0, %arg1, %c0_i32, %arg2 : i32, i32, i32, i32
  }
}

module attributes {stable_mosaic.version = 11 : i64} {
  func.func @_conv_tap_kernel(%arg0: i32, %arg1: i32, %arg2: i32, %arg3: i32, %arg4: memref<8x1xf32, #tpu.memory_space<vmem>>, %arg5: memref<1x1x11x64xbf16, #tpu.memory_space<vmem>>, %arg6: memref<2x256x128xbf16, #tpu.memory_space<vmem>>, %arg7: memref<1x1x8x128xbf16, #tpu.memory_space<vmem>>, %arg8: memref<1x1x8x128xf32, #tpu.memory_space<vmem>>, %arg9: memref<1x1x8x128xf32, #tpu.memory_space<vmem>>, %arg10: memref<8x128xf32, #tpu.memory_space<vmem>>) attributes {dimension_semantics = [#tpu.dimension_semantics<parallel>, #tpu.dimension_semantics<parallel>, #tpu.dimension_semantics<parallel>, #tpu.dimension_semantics<arbitrary>], iteration_bounds = array<i64: 4, 1, 1, 2>, scalar_prefetch = 0 : i64, scratch_operands = 1 : i64, tpu.core_type = #tpu.core_type<tc>, window_params = [{pipeline_mode = #tpu.pipeline_mode<synchronous>, transform_indices = @transform_0, window_bounds = array<i64: 8, 1>}, {transform_indices = @transform_1, window_bounds = array<i64: 1, 1, 11, 64>}, {transform_indices = @transform_2, window_bounds = array<i64: 2, 256, 128>}, {transform_indices = @transform_3, window_bounds = array<i64: 1, 1, 8, 128>}, {transform_indices = @transform_4, window_bounds = array<i64: 1, 1, 8, 128>}, {transform_indices = @transform_5, window_bounds = array<i64: 1, 1, 8, 128>}]} {
    %c0_i32 = arith.constant 0 : i32
    %0 = arith.cmpi eq, %arg3, %c0_i32 : i32
    %1 = arith.extui %0 : i1 to i32
    %c0_i32_0 = arith.constant 0 : i32
    %2 = arith.cmpi ne, %1, %c0_i32_0 : i32
    scf.if %2 {
      %cst_34 = arith.constant 0.000000e+00 : f32
      %36 = vector.broadcast %cst_34 : f32 to vector<8x128xf32>
      %c0_35 = arith.constant 0 : index
      %c0_36 = arith.constant 0 : index
      %37 = vector.load %arg10[%c0_35, %c0_36] : memref<8x128xf32, #tpu.memory_space<vmem>>, vector<8x128xf32>
      tpu.vector_store %arg10[%c0_35, %c0_36], %36 {strides = array<i32>} : memref<8x128xf32, #tpu.memory_space<vmem>>, vector<8x128xf32>,
    } else {
    }
    %c0 = arith.constant 0 : index
    %c0_1 = arith.constant 0 : index
    %c0_2 = arith.constant 0 : index
    %c0_3 = arith.constant 0 : index
    %3 = vector.load %arg5[%c0, %c0_1, %c0_2, %c0_3] : memref<1x1x11x64xbf16, #tpu.memory_space<vmem>>, vector<1x1x8x64xbf16>
    %4 = vector.shape_cast %3 : vector<1x1x8x64xbf16> to vector<8x64xbf16>
    %c0_i32_4 = arith.constant 0 : i32
    %c0_i32_5 = arith.constant 0 : i32
    %5 = tpu.memref_slice %arg6[%arg3, %c0_i32_4, %c0_i32_5] : memref<2x256x128xbf16, #tpu.memory_space<vmem>> -> memref<1x256x128xbf16, #tpu.memory_space<vmem>>
    %6 = tpu.memref_squeeze %5 : memref<1x256x128xbf16, #tpu.memory_space<vmem>> -> memref<256x128xbf16, #tpu.memory_space<vmem>>
    %c0_6 = arith.constant 0 : index
    %c0_7 = arith.constant 0 : index
    %7 = vector.load %6[%c0_6, %c0_7] : memref<256x128xbf16, #tpu.memory_space<vmem>>, vector<64x128xbf16>
    %cst = arith.constant dense<0.000000e+00> : vector<8x128xf32>
    %8 = tpu.matmul %4, %7, %cst {dimension_numbers = #tpu.dot_dimension_numbers<[1], [0], [0], [1], [0, 0, 1, 1], [], []>} : vector<8x64xbf16>, vector<64x128xbf16>, vector<8x128xf32> -> vector<8x128xf32>
    %c0_8 = arith.constant 0 : index
    %c0_9 = arith.constant 0 : index
    %c1 = arith.constant 1 : index
    %c0_10 = arith.constant 0 : index
    %9 = vector.load %arg5[%c0_8, %c0_9, %c1, %c0_10] : memref<1x1x11x64xbf16, #tpu.memory_space<vmem>>, vector<1x1x8x64xbf16>
    %10 = vector.shape_cast %9 : vector<1x1x8x64xbf16> to vector<8x64xbf16>
    %c0_i32_11 = arith.constant 0 : i32
    %c0_i32_12 = arith.constant 0 : i32
    %11 = tpu.memref_slice %arg6[%arg3, %c0_i32_11, %c0_i32_12] : memref<2x256x128xbf16, #tpu.memory_space<vmem>> -> memref<1x256x128xbf16, #tpu.memory_space<vmem>>
    %12 = tpu.memref_squeeze %11 : memref<1x256x128xbf16, #tpu.memory_space<vmem>> -> memref<256x128xbf16, #tpu.memory_space<vmem>>
    %c64 = arith.constant 64 : index
    %c0_13 = arith.constant 0 : index
    %13 = vector.load %12[%c64, %c0_13] : memref<256x128xbf16, #tpu.memory_space<vmem>>, vector<64x128xbf16>
    %cst_14 = arith.constant dense<0.000000e+00> : vector<8x128xf32>
    %14 = tpu.matmul %10, %13, %cst_14 {dimension_numbers = #tpu.dot_dimension_numbers<[1], [0], [0], [1], [0, 0, 1, 1], [], []>} : vector<8x64xbf16>, vector<64x128xbf16>, vector<8x128xf32> -> vector<8x128xf32>
    %15 = arith.addf %8, %14 : vector<8x128xf32>
    %c0_15 = arith.constant 0 : index
    %c0_16 = arith.constant 0 : index
    %c2 = arith.constant 2 : index
    %c0_17 = arith.constant 0 : index
    %16 = vector.load %arg5[%c0_15, %c0_16, %c2, %c0_17] : memref<1x1x11x64xbf16, #tpu.memory_space<vmem>>, vector<1x1x8x64xbf16>
    %17 = vector.shape_cast %16 : vector<1x1x8x64xbf16> to vector<8x64xbf16>
    %c0_i32_18 = arith.constant 0 : i32
    %c0_i32_19 = arith.constant 0 : i32
    %18 = tpu.memref_slice %arg6[%arg3, %c0_i32_18, %c0_i32_19] : memref<2x256x128xbf16, #tpu.memory_space<vmem>> -> memref<1x256x128xbf16, #tpu.memory_space<vmem>>
    %19 = tpu.memref_squeeze %18 : memref<1x256x128xbf16, #tpu.memory_space<vmem>> -> memref<256x128xbf16, #tpu.memory_space<vmem>>
    %c128 = arith.constant 128 : index
    %c0_20 = arith.constant 0 : index
    %20 = vector.load %19[%c128, %c0_20] : memref<256x128xbf16, #tpu.memory_space<vmem>>, vector<64x128xbf16>
    %cst_21 = arith.constant dense<0.000000e+00> : vector<8x128xf32>
    %21 = tpu.matmul %17, %20, %cst_21 {dimension_numbers = #tpu.dot_dimension_numbers<[1], [0], [0], [1], [0, 0, 1, 1], [], []>} : vector<8x64xbf16>, vector<64x128xbf16>, vector<8x128xf32> -> vector<8x128xf32>
    %22 = arith.addf %15, %21 : vector<8x128xf32>
    %c0_22 = arith.constant 0 : index
    %c0_23 = arith.constant 0 : index
    %c3 = arith.constant 3 : index
    %c0_24 = arith.constant 0 : index
    %23 = vector.load %arg5[%c0_22, %c0_23, %c3, %c0_24] : memref<1x1x11x64xbf16, #tpu.memory_space<vmem>>, vector<1x1x8x64xbf16>
    %24 = vector.shape_cast %23 : vector<1x1x8x64xbf16> to vector<8x64xbf16>
    %c0_i32_25 = arith.constant 0 : i32
    %c0_i32_26 = arith.constant 0 : i32
    %25 = tpu.memref_slice %arg6[%arg3, %c0_i32_25, %c0_i32_26] : memref<2x256x128xbf16, #tpu.memory_space<vmem>> -> memref<1x256x128xbf16, #tpu.memory_space<vmem>>
    %26 = tpu.memref_squeeze %25 : memref<1x256x128xbf16, #tpu.memory_space<vmem>> -> memref<256x128xbf16, #tpu.memory_space<vmem>>
    %c192 = arith.constant 192 : index
    %c0_27 = arith.constant 0 : index
    %27 = vector.load %26[%c192, %c0_27] : memref<256x128xbf16, #tpu.memory_space<vmem>>, vector<64x128xbf16>
    %cst_28 = arith.constant dense<0.000000e+00> : vector<8x128xf32>
    %28 = tpu.matmul %24, %27, %cst_28 {dimension_numbers = #tpu.dot_dimension_numbers<[1], [0], [0], [1], [0, 0, 1, 1], [], []>} : vector<8x64xbf16>, vector<64x128xbf16>, vector<8x128xf32> -> vector<8x128xf32>
    %29 = arith.addf %22, %28 : vector<8x128xf32>
    %c0_29 = arith.constant 0 : index
    %c0_30 = arith.constant 0 : index
    %30 = vector.load %arg10[%c0_29, %c0_30] : memref<8x128xf32, #tpu.memory_space<vmem>>, vector<8x128xf32>
    %31 = arith.addf %30, %29 : vector<8x128xf32>
    %c0_31 = arith.constant 0 : index
    %c0_32 = arith.constant 0 : index
    %32 = vector.load %arg10[%c0_31, %c0_32] : memref<8x128xf32, #tpu.memory_space<vmem>>, vector<8x128xf32>
    tpu.vector_store %arg10[%c0_31, %c0_32], %31 {strides = array<i32>} : memref<8x128xf32, #tpu.memory_space<vmem>>, vector<8x128xf32>,
    %c1_i32 = arith.constant 1 : i32
    %33 = arith.cmpi eq, %arg3, %c1_i32 : i32
    %34 = arith.extui %33 : i1 to i32
    %c0_i32_33 = arith.constant 0 : i32
    %35 = arith.cmpi ne, %34, %c0_i32_33 : i32
    scf.if %35 {
      %c0_34 = arith.constant 0 : index
      %c0_35 = arith.constant 0 : index
      %36 = vector.load %arg10[%c0_34, %c0_35] : memref<8x128xf32, #tpu.memory_space<vmem>>, vector<8x128xf32>
      %37 = vector.shape_cast %36 : vector<8x128xf32> to vector<1x1x8x128xf32>
      %38 = arith.truncf %37 : vector<1x1x8x128xf32> to vector<1x1x8x128xbf16>
      %c0_36 = arith.constant 0 : index
      %c0_37 = arith.constant 0 : index
      %c0_38 = arith.constant 0 : index
      %c0_39 = arith.constant 0 : index
      %39 = vector.load %arg7[%c0_36, %c0_37, %c0_38, %c0_39] : memref<1x1x8x128xbf16, #tpu.memory_space<vmem>>, vector<1x1x8x128xbf16>
      tpu.vector_store %arg7[%c0_36, %c0_37, %c0_38, %c0_39], %38 {strides = array<i32>} : memref<1x1x8x128xbf16, #tpu.memory_space<vmem>>, vector<1x1x8x128xbf16>,
      %c0_40 = arith.constant 0 : index
      %c0_41 = arith.constant 0 : index
      %40 = vector.load %arg4[%c0_40, %c0_41] : memref<8x1xf32, #tpu.memory_space<vmem>>, vector<8x1xf32>
      %41 = vector.broadcast %40 : vector<8x1xf32> to vector<8x128xf32>
      %42 = arith.mulf %36, %41 : vector<8x128xf32>
      %cst_42 = arith.constant dense<0.000000e+00> : vector<128xf32>
      %43 = vector.multi_reduction <add>, %42, %cst_42 [0] : vector<8x128xf32> to vector<128xf32>
      %44 = vector.shape_cast %43 : vector<128xf32> to vector<1x128xf32>
      %45 = arith.mulf %42, %36 : vector<8x128xf32>
      %cst_43 = arith.constant dense<0.000000e+00> : vector<128xf32>
      %46 = vector.multi_reduction <add>, %45, %cst_43 [0] : vector<8x128xf32> to vector<128xf32>
      %47 = vector.shape_cast %46 : vector<128xf32> to vector<1x128xf32>
      %48 = vector.shape_cast %44 : vector<1x128xf32> to vector<1x1x1x128xf32>
      %49 = vector.shape_cast %48 : vector<1x1x1x128xf32> to vector<1x1x1x128xf32>
      %50 = vector.broadcast %49 : vector<1x1x1x128xf32> to vector<1x1x8x128xf32>
      %c0_44 = arith.constant 0 : index
      %c0_45 = arith.constant 0 : index
      %c0_46 = arith.constant 0 : index
      %c0_47 = arith.constant 0 : index
      %51 = vector.load %arg8[%c0_44, %c0_45, %c0_46, %c0_47] : memref<1x1x8x128xf32, #tpu.memory_space<vmem>>, vector<1x1x8x128xf32>
      tpu.vector_store %arg8[%c0_44, %c0_45, %c0_46, %c0_47], %50 {strides = array<i32>} : memref<1x1x8x128xf32, #tpu.memory_space<vmem>>, vector<1x1x8x128xf32>,
      %52 = vector.shape_cast %47 : vector<1x128xf32> to vector<1x1x1x128xf32>
      %53 = vector.shape_cast %52 : vector<1x1x1x128xf32> to vector<1x1x1x128xf32>
      %54 = vector.broadcast %53 : vector<1x1x1x128xf32> to vector<1x1x8x128xf32>
      %c0_48 = arith.constant 0 : index
      %c0_49 = arith.constant 0 : index
      %c0_50 = arith.constant 0 : index
      %c0_51 = arith.constant 0 : index
      %55 = vector.load %arg9[%c0_48, %c0_49, %c0_50, %c0_51] : memref<1x1x8x128xf32, #tpu.memory_space<vmem>>, vector<1x1x8x128xf32>
      tpu.vector_store %arg9[%c0_48, %c0_49, %c0_50, %c0_51], %54 {strides = array<i32>} : memref<1x1x8x128xf32, #tpu.memory_space<vmem>>, vector<1x1x8x128xf32>,
    } else {
    }
    return
  }
  func.func @transform_0(%arg0: i32, %arg1: i32, %arg2: i32, %arg3: i32) -> (i32, i32) {
    %c0_i32 = arith.constant 0 : i32
    %c0_i32_0 = arith.constant 0 : i32
    %c0_i32_1 = arith.constant 0 : i32
    return %c0_i32, %c0_i32_0 : i32, i32
  }
  func.func @transform_1(%arg0: i32, %arg1: i32, %arg2: i32, %arg3: i32) -> (i32, i32, i32, i32) {
    %0 = arith.addi %arg1, %arg3 : i32
    %c0_i32 = arith.constant 0 : i32
    %c0_i32_0 = arith.constant 0 : i32
    %c0_i32_1 = arith.constant 0 : i32
    return %arg0, %0, %c0_i32, %c0_i32_0 : i32, i32, i32, i32
  }
  func.func @transform_2(%arg0: i32, %arg1: i32, %arg2: i32, %arg3: i32) -> (i32, i32, i32) {
    %c0_i32 = arith.constant 0 : i32
    %c0_i32_0 = arith.constant 0 : i32
    %c0_i32_1 = arith.constant 0 : i32
    return %c0_i32, %c0_i32_0, %arg2 : i32, i32, i32
  }
  func.func @transform_3(%arg0: i32, %arg1: i32, %arg2: i32, %arg3: i32) -> (i32, i32, i32, i32) {
    %c0_i32 = arith.constant 0 : i32
    %c0_i32_0 = arith.constant 0 : i32
    return %arg0, %arg1, %c0_i32, %arg2 : i32, i32, i32, i32
  }
  func.func @transform_4(%arg0: i32, %arg1: i32, %arg2: i32, %arg3: i32) -> (i32, i32, i32, i32) {
    %c0_i32 = arith.constant 0 : i32
    %c0_i32_0 = arith.constant 0 : i32
    return %arg0, %arg1, %c0_i32, %arg2 : i32, i32, i32, i32
  }
  func.func @transform_5(%arg0: i32, %arg1: i32, %arg2: i32, %arg3: i32) -> (i32, i32, i32, i32) {
    %c0_i32 = arith.constant 0 : i32
    %c0_i32_0 = arith.constant 0 : i32
    return %arg0, %arg1, %c0_i32, %arg2 : i32, i32, i32, i32
  }
}

module attributes {stable_mosaic.version = 11 : i64} {
  func.func @_conv_tap_kernel(%arg0: i32, %arg1: i32, %arg2: i32, %arg3: i32, %arg4: memref<8x1xf32, #tpu.memory_space<vmem>>, %arg5: memref<1x1x8x32xbf16, #tpu.memory_space<vmem>>, %arg6: memref<1x32x128xbf16, #tpu.memory_space<vmem>>, %arg7: memref<1x1x8x128xbf16, #tpu.memory_space<vmem>>, %arg8: memref<1x1x8x128xf32, #tpu.memory_space<vmem>>, %arg9: memref<1x1x8x128xf32, #tpu.memory_space<vmem>>, %arg10: memref<8x128xf32, #tpu.memory_space<vmem>>) attributes {dimension_semantics = [#tpu.dimension_semantics<parallel>, #tpu.dimension_semantics<parallel>, #tpu.dimension_semantics<parallel>, #tpu.dimension_semantics<arbitrary>], iteration_bounds = array<i64: 4, 1, 1, 1>, scalar_prefetch = 0 : i64, scratch_operands = 1 : i64, tpu.core_type = #tpu.core_type<tc>, window_params = [{pipeline_mode = #tpu.pipeline_mode<synchronous>, transform_indices = @transform_0, window_bounds = array<i64: 8, 1>}, {transform_indices = @transform_1, window_bounds = array<i64: 1, 1, 8, 32>}, {transform_indices = @transform_2, window_bounds = array<i64: 1, 32, 128>}, {transform_indices = @transform_3, window_bounds = array<i64: 1, 1, 8, 128>}, {transform_indices = @transform_4, window_bounds = array<i64: 1, 1, 8, 128>}, {transform_indices = @transform_5, window_bounds = array<i64: 1, 1, 8, 128>}]} {
    %c0_i32 = arith.constant 0 : i32
    %0 = arith.cmpi eq, %arg3, %c0_i32 : i32
    %1 = arith.extui %0 : i1 to i32
    %c0_i32_0 = arith.constant 0 : i32
    %2 = arith.cmpi ne, %1, %c0_i32_0 : i32
    scf.if %2 {
      %cst_14 = arith.constant 0.000000e+00 : f32
      %15 = vector.broadcast %cst_14 : f32 to vector<8x128xf32>
      %c0_15 = arith.constant 0 : index
      %c0_16 = arith.constant 0 : index
      %16 = vector.load %arg10[%c0_15, %c0_16] : memref<8x128xf32, #tpu.memory_space<vmem>>, vector<8x128xf32>
      tpu.vector_store %arg10[%c0_15, %c0_16], %15 {strides = array<i32>} : memref<8x128xf32, #tpu.memory_space<vmem>>, vector<8x128xf32>,
    } else {
    }
    %c0 = arith.constant 0 : index
    %c0_1 = arith.constant 0 : index
    %c0_2 = arith.constant 0 : index
    %c0_3 = arith.constant 0 : index
    %3 = vector.load %arg5[%c0, %c0_1, %c0_2, %c0_3] : memref<1x1x8x32xbf16, #tpu.memory_space<vmem>>, vector<1x1x8x32xbf16>
    %4 = vector.shape_cast %3 : vector<1x1x8x32xbf16> to vector<8x32xbf16>
    %c0_i32_4 = arith.constant 0 : i32
    %c0_i32_5 = arith.constant 0 : i32
    %5 = tpu.memref_slice %arg6[%arg3, %c0_i32_4, %c0_i32_5] : memref<1x32x128xbf16, #tpu.memory_space<vmem>> -> memref<1x32x128xbf16, #tpu.memory_space<vmem>>
    %6 = tpu.memref_squeeze %5 : memref<1x32x128xbf16, #tpu.memory_space<vmem>> -> memref<32x128xbf16, #tpu.memory_space<vmem>>
    %c0_6 = arith.constant 0 : index
    %c0_7 = arith.constant 0 : index
    %7 = vector.load %6[%c0_6, %c0_7] : memref<32x128xbf16, #tpu.memory_space<vmem>>, vector<32x128xbf16>
    %cst = arith.constant dense<0.000000e+00> : vector<8x128xf32>
    %8 = tpu.matmul %4, %7, %cst {dimension_numbers = #tpu.dot_dimension_numbers<[1], [0], [0], [1], [0, 0, 1, 1], [], []>} : vector<8x32xbf16>, vector<32x128xbf16>, vector<8x128xf32> -> vector<8x128xf32>
    %c0_8 = arith.constant 0 : index
    %c0_9 = arith.constant 0 : index
    %9 = vector.load %arg10[%c0_8, %c0_9] : memref<8x128xf32, #tpu.memory_space<vmem>>, vector<8x128xf32>
    %10 = arith.addf %9, %8 : vector<8x128xf32>
    %c0_10 = arith.constant 0 : index
    %c0_11 = arith.constant 0 : index
    %11 = vector.load %arg10[%c0_10, %c0_11] : memref<8x128xf32, #tpu.memory_space<vmem>>, vector<8x128xf32>
    tpu.vector_store %arg10[%c0_10, %c0_11], %10 {strides = array<i32>} : memref<8x128xf32, #tpu.memory_space<vmem>>, vector<8x128xf32>,
    %c0_i32_12 = arith.constant 0 : i32
    %12 = arith.cmpi eq, %arg3, %c0_i32_12 : i32
    %13 = arith.extui %12 : i1 to i32
    %c0_i32_13 = arith.constant 0 : i32
    %14 = arith.cmpi ne, %13, %c0_i32_13 : i32
    scf.if %14 {
      %c0_14 = arith.constant 0 : index
      %c0_15 = arith.constant 0 : index
      %15 = vector.load %arg10[%c0_14, %c0_15] : memref<8x128xf32, #tpu.memory_space<vmem>>, vector<8x128xf32>
      %16 = vector.shape_cast %15 : vector<8x128xf32> to vector<1x1x8x128xf32>
      %17 = arith.truncf %16 : vector<1x1x8x128xf32> to vector<1x1x8x128xbf16>
      %c0_16 = arith.constant 0 : index
      %c0_17 = arith.constant 0 : index
      %c0_18 = arith.constant 0 : index
      %c0_19 = arith.constant 0 : index
      %18 = vector.load %arg7[%c0_16, %c0_17, %c0_18, %c0_19] : memref<1x1x8x128xbf16, #tpu.memory_space<vmem>>, vector<1x1x8x128xbf16>
      tpu.vector_store %arg7[%c0_16, %c0_17, %c0_18, %c0_19], %17 {strides = array<i32>} : memref<1x1x8x128xbf16, #tpu.memory_space<vmem>>, vector<1x1x8x128xbf16>,
      %c0_20 = arith.constant 0 : index
      %c0_21 = arith.constant 0 : index
      %19 = vector.load %arg4[%c0_20, %c0_21] : memref<8x1xf32, #tpu.memory_space<vmem>>, vector<8x1xf32>
      %20 = vector.broadcast %19 : vector<8x1xf32> to vector<8x128xf32>
      %21 = arith.mulf %15, %20 : vector<8x128xf32>
      %cst_22 = arith.constant dense<0.000000e+00> : vector<128xf32>
      %22 = vector.multi_reduction <add>, %21, %cst_22 [0] : vector<8x128xf32> to vector<128xf32>
      %23 = vector.shape_cast %22 : vector<128xf32> to vector<1x128xf32>
      %24 = arith.mulf %21, %15 : vector<8x128xf32>
      %cst_23 = arith.constant dense<0.000000e+00> : vector<128xf32>
      %25 = vector.multi_reduction <add>, %24, %cst_23 [0] : vector<8x128xf32> to vector<128xf32>
      %26 = vector.shape_cast %25 : vector<128xf32> to vector<1x128xf32>
      %27 = vector.shape_cast %23 : vector<1x128xf32> to vector<1x1x1x128xf32>
      %28 = vector.shape_cast %27 : vector<1x1x1x128xf32> to vector<1x1x1x128xf32>
      %29 = vector.broadcast %28 : vector<1x1x1x128xf32> to vector<1x1x8x128xf32>
      %c0_24 = arith.constant 0 : index
      %c0_25 = arith.constant 0 : index
      %c0_26 = arith.constant 0 : index
      %c0_27 = arith.constant 0 : index
      %30 = vector.load %arg8[%c0_24, %c0_25, %c0_26, %c0_27] : memref<1x1x8x128xf32, #tpu.memory_space<vmem>>, vector<1x1x8x128xf32>
      tpu.vector_store %arg8[%c0_24, %c0_25, %c0_26, %c0_27], %29 {strides = array<i32>} : memref<1x1x8x128xf32, #tpu.memory_space<vmem>>, vector<1x1x8x128xf32>,
      %31 = vector.shape_cast %26 : vector<1x128xf32> to vector<1x1x1x128xf32>
      %32 = vector.shape_cast %31 : vector<1x1x1x128xf32> to vector<1x1x1x128xf32>
      %33 = vector.broadcast %32 : vector<1x1x1x128xf32> to vector<1x1x8x128xf32>
      %c0_28 = arith.constant 0 : index
      %c0_29 = arith.constant 0 : index
      %c0_30 = arith.constant 0 : index
      %c0_31 = arith.constant 0 : index
      %34 = vector.load %arg9[%c0_28, %c0_29, %c0_30, %c0_31] : memref<1x1x8x128xf32, #tpu.memory_space<vmem>>, vector<1x1x8x128xf32>
      tpu.vector_store %arg9[%c0_28, %c0_29, %c0_30, %c0_31], %33 {strides = array<i32>} : memref<1x1x8x128xf32, #tpu.memory_space<vmem>>, vector<1x1x8x128xf32>,
    } else {
    }
    return
  }
  func.func @transform_0(%arg0: i32, %arg1: i32, %arg2: i32, %arg3: i32) -> (i32, i32) {
    %c0_i32 = arith.constant 0 : i32
    %c0_i32_0 = arith.constant 0 : i32
    %c0_i32_1 = arith.constant 0 : i32
    return %c0_i32, %c0_i32_0 : i32, i32
  }
  func.func @transform_1(%arg0: i32, %arg1: i32, %arg2: i32, %arg3: i32) -> (i32, i32, i32, i32) {
    %0 = arith.addi %arg1, %arg3 : i32
    %c0_i32 = arith.constant 0 : i32
    %c0_i32_0 = arith.constant 0 : i32
    %c0_i32_1 = arith.constant 0 : i32
    return %arg0, %0, %c0_i32, %c0_i32_0 : i32, i32, i32, i32
  }
  func.func @transform_2(%arg0: i32, %arg1: i32, %arg2: i32, %arg3: i32) -> (i32, i32, i32) {
    %c0_i32 = arith.constant 0 : i32
    %c0_i32_0 = arith.constant 0 : i32
    %c0_i32_1 = arith.constant 0 : i32
    return %c0_i32, %c0_i32_0, %arg2 : i32, i32, i32
  }
  func.func @transform_3(%arg0: i32, %arg1: i32, %arg2: i32, %arg3: i32) -> (i32, i32, i32, i32) {
    %c0_i32 = arith.constant 0 : i32
    %c0_i32_0 = arith.constant 0 : i32
    return %arg0, %arg1, %c0_i32, %arg2 : i32, i32, i32, i32
  }
  func.func @transform_4(%arg0: i32, %arg1: i32, %arg2: i32, %arg3: i32) -> (i32, i32, i32, i32) {
    %c0_i32 = arith.constant 0 : i32
    %c0_i32_0 = arith.constant 0 : i32
    return %arg0, %arg1, %c0_i32, %arg2 : i32, i32, i32, i32
  }
  func.func @transform_5(%arg0: i32, %arg1: i32, %arg2: i32, %arg3: i32) -> (i32, i32, i32, i32) {
    %c0_i32 = arith.constant 0 : i32
    %c0_i32_0 = arith.constant 0 : i32
    return %arg0, %arg1, %c0_i32, %arg2 : i32, i32, i32, i32
  }
}

module attributes {stable_mosaic.version = 11 : i64} {
  func.func @_affine_res_kernel(%arg0: i32, %arg1: i32, %arg2: i32, %arg3: memref<1x1x8x128xbf16, #tpu.memory_space<vmem>>, %arg4: memref<1x1x8x128xbf16, #tpu.memory_space<vmem>>, %arg5: memref<1x1x1x128xf32, #tpu.memory_space<vmem>>, %arg6: memref<1x1x1x128xf32, #tpu.memory_space<vmem>>, %arg7: memref<1x1x1x128xf32, #tpu.memory_space<vmem>>, %arg8: memref<1x1x1x128xf32, #tpu.memory_space<vmem>>, %arg9: memref<1x1x8x128xbf16, #tpu.memory_space<vmem>>) attributes {dimension_semantics = [#tpu.dimension_semantics<parallel>, #tpu.dimension_semantics<parallel>, #tpu.dimension_semantics<parallel>], iteration_bounds = array<i64: 4, 1, 1>, scalar_prefetch = 0 : i64, scratch_operands = 0 : i64, tpu.core_type = #tpu.core_type<tc>, window_params = [{transform_indices = @transform_0, window_bounds = array<i64: 1, 1, 8, 128>}, {transform_indices = @transform_1, window_bounds = array<i64: 1, 1, 8, 128>}, {transform_indices = @transform_2, window_bounds = array<i64: 1, 1, 1, 128>}, {transform_indices = @transform_3, window_bounds = array<i64: 1, 1, 1, 128>}, {transform_indices = @transform_4, window_bounds = array<i64: 1, 1, 1, 128>}, {transform_indices = @transform_5, window_bounds = array<i64: 1, 1, 1, 128>}, {transform_indices = @transform_6, window_bounds = array<i64: 1, 1, 8, 128>}]} {
    %c0 = arith.constant 0 : index
    %c0_0 = arith.constant 0 : index
    %c0_1 = arith.constant 0 : index
    %c0_2 = arith.constant 0 : index
    %0 = vector.load %arg3[%c0, %c0_0, %c0_1, %c0_2] : memref<1x1x8x128xbf16, #tpu.memory_space<vmem>>, vector<1x1x8x128xbf16>
    %1 = arith.extf %0 : vector<1x1x8x128xbf16> to vector<1x1x8x128xf32>
    %c0_3 = arith.constant 0 : index
    %c0_4 = arith.constant 0 : index
    %c0_5 = arith.constant 0 : index
    %c0_6 = arith.constant 0 : index
    %2 = vector.load %arg5[%c0_3, %c0_4, %c0_5, %c0_6] : memref<1x1x1x128xf32, #tpu.memory_space<vmem>>, vector<1x1x1x128xf32>
    %3 = vector.broadcast %2 : vector<1x1x1x128xf32> to vector<1x1x8x128xf32>
    %4 = arith.mulf %1, %3 : vector<1x1x8x128xf32>
    %c0_7 = arith.constant 0 : index
    %c0_8 = arith.constant 0 : index
    %c0_9 = arith.constant 0 : index
    %c0_10 = arith.constant 0 : index
    %5 = vector.load %arg6[%c0_7, %c0_8, %c0_9, %c0_10] : memref<1x1x1x128xf32, #tpu.memory_space<vmem>>, vector<1x1x1x128xf32>
    %6 = vector.broadcast %5 : vector<1x1x1x128xf32> to vector<1x1x8x128xf32>
    %7 = arith.addf %4, %6 : vector<1x1x8x128xf32>
    %c0_11 = arith.constant 0 : index
    %c0_12 = arith.constant 0 : index
    %c0_13 = arith.constant 0 : index
    %c0_14 = arith.constant 0 : index
    %8 = vector.load %arg4[%c0_11, %c0_12, %c0_13, %c0_14] : memref<1x1x8x128xbf16, #tpu.memory_space<vmem>>, vector<1x1x8x128xbf16>
    %9 = arith.extf %8 : vector<1x1x8x128xbf16> to vector<1x1x8x128xf32>
    %c0_15 = arith.constant 0 : index
    %c0_16 = arith.constant 0 : index
    %c0_17 = arith.constant 0 : index
    %c0_18 = arith.constant 0 : index
    %10 = vector.load %arg7[%c0_15, %c0_16, %c0_17, %c0_18] : memref<1x1x1x128xf32, #tpu.memory_space<vmem>>, vector<1x1x1x128xf32>
    %11 = vector.broadcast %10 : vector<1x1x1x128xf32> to vector<1x1x8x128xf32>
    %12 = arith.mulf %9, %11 : vector<1x1x8x128xf32>
    %c0_19 = arith.constant 0 : index
    %c0_20 = arith.constant 0 : index
    %c0_21 = arith.constant 0 : index
    %c0_22 = arith.constant 0 : index
    %13 = vector.load %arg8[%c0_19, %c0_20, %c0_21, %c0_22] : memref<1x1x1x128xf32, #tpu.memory_space<vmem>>, vector<1x1x1x128xf32>
    %14 = vector.broadcast %13 : vector<1x1x1x128xf32> to vector<1x1x8x128xf32>
    %15 = arith.addf %12, %14 : vector<1x1x8x128xf32>
    %16 = arith.addf %7, %15 : vector<1x1x8x128xf32>
    %cst = arith.constant 0.000000e+00 : f32
    %17 = vector.broadcast %cst : f32 to vector<1x1x8x128xf32>
    %18 = arith.maximumf %16, %17 : vector<1x1x8x128xf32>
    %19 = arith.truncf %18 : vector<1x1x8x128xf32> to vector<1x1x8x128xbf16>
    %c0_23 = arith.constant 0 : index
    %c0_24 = arith.constant 0 : index
    %c0_25 = arith.constant 0 : index
    %c0_26 = arith.constant 0 : index
    %20 = vector.load %arg9[%c0_23, %c0_24, %c0_25, %c0_26] : memref<1x1x8x128xbf16, #tpu.memory_space<vmem>>, vector<1x1x8x128xbf16>
    tpu.vector_store %arg9[%c0_23, %c0_24, %c0_25, %c0_26], %19 {strides = array<i32>} : memref<1x1x8x128xbf16, #tpu.memory_space<vmem>>, vector<1x1x8x128xbf16>,
    return
  }
  func.func @transform_0(%arg0: i32, %arg1: i32, %arg2: i32) -> (i32, i32, i32, i32) {
    %c0_i32 = arith.constant 0 : i32
    %c0_i32_0 = arith.constant 0 : i32
    return %arg0, %arg1, %c0_i32, %arg2 : i32, i32, i32, i32
  }
  func.func @transform_1(%arg0: i32, %arg1: i32, %arg2: i32) -> (i32, i32, i32, i32) {
    %c0_i32 = arith.constant 0 : i32
    %c0_i32_0 = arith.constant 0 : i32
    return %arg0, %arg1, %c0_i32, %arg2 : i32, i32, i32, i32
  }
  func.func @transform_2(%arg0: i32, %arg1: i32, %arg2: i32) -> (i32, i32, i32, i32) {
    %c0_i32 = arith.constant 0 : i32
    %c0_i32_0 = arith.constant 0 : i32
    %c0_i32_1 = arith.constant 0 : i32
    %c0_i32_2 = arith.constant 0 : i32
    return %c0_i32, %c0_i32_0, %c0_i32_1, %arg2 : i32, i32, i32, i32
  }
  func.func @transform_3(%arg0: i32, %arg1: i32, %arg2: i32) -> (i32, i32, i32, i32) {
    %c0_i32 = arith.constant 0 : i32
    %c0_i32_0 = arith.constant 0 : i32
    %c0_i32_1 = arith.constant 0 : i32
    %c0_i32_2 = arith.constant 0 : i32
    return %c0_i32, %c0_i32_0, %c0_i32_1, %arg2 : i32, i32, i32, i32
  }
  func.func @transform_4(%arg0: i32, %arg1: i32, %arg2: i32) -> (i32, i32, i32, i32) {
    %c0_i32 = arith.constant 0 : i32
    %c0_i32_0 = arith.constant 0 : i32
    %c0_i32_1 = arith.constant 0 : i32
    %c0_i32_2 = arith.constant 0 : i32
    return %c0_i32, %c0_i32_0, %c0_i32_1, %arg2 : i32, i32, i32, i32
  }
  func.func @transform_5(%arg0: i32, %arg1: i32, %arg2: i32) -> (i32, i32, i32, i32) {
    %c0_i32 = arith.constant 0 : i32
    %c0_i32_0 = arith.constant 0 : i32
    %c0_i32_1 = arith.constant 0 : i32
    %c0_i32_2 = arith.constant 0 : i32
    return %c0_i32, %c0_i32_0, %c0_i32_1, %arg2 : i32, i32, i32, i32
  }
  func.func @transform_6(%arg0: i32, %arg1: i32, %arg2: i32) -> (i32, i32, i32, i32) {
    %c0_i32 = arith.constant 0 : i32
    %c0_i32_0 = arith.constant 0 : i32
    return %arg0, %arg1, %c0_i32, %arg2 : i32, i32, i32, i32
  }
}

</mosaic_0001>

<llo_original>
// kernel: residual_block_3d.6
$region0: #{residual_block_3d.6}
  #allocation0 [shape = 'u32[]', space=smem, size = 0x4, offset = 0x4, fixed_abs, tag = 'smem constant byte address 0x4 - core index']
  #allocation1 [shape = 'u32[72,128]{1,0:T(1,128)}', space=vmem, size = 0x9000, scoped, tag = 'internal scratch']
  %s0 = inlined_call_operand.vmem [shape: bf16[4,1,8,128], index: 0, kind: input, shape index: {}]
  %s1 = inlined_call_operand.vmem [shape: f32[1,1,1,128], index: 1, kind: input, shape index: {}]
  %s2 = inlined_call_operand.vmem [shape: f32[1,1,1,128], index: 2, kind: input, shape index: {}]
  %s3 = inlined_call_operand.vmem [shape: bf16[4,1,8,128], index: 3, kind: output, shape index: {}]
  %s4 = sld [smem:[#allocation0]]
  $region45: #{residual_block_3d.6} parent=0
    _
  %s6 = ssub.s32 1, %s4
  %s7 = scalar_select 0, %s6, %s4
  loop: start=0, step=1, limit=6
  $region2: #{residual_block_3d.6} parent=0 // loop_pre_header
    _
  $region3: #{residual_block_3d.6} parent=0 // loop_header
    %s9 = sphi 0, %s13
    %p10 = scmp.ge.s32.totalorder %s9, 6
    %s16 = sphi 0, %s35
    %s17 = sphi 0, %s31
    %s18 = sphi 0, %s27
    %s19 = sphi 0, %s16
    %s20 = sphi 0, %s17
    %s21 = sphi 0, %s18
    %s22 = sphi 0, %s19
    %s23 = sphi 0, %s20
    %s24 = sphi 0, %s21
    %s42 = sphi 0, %s44
    %s45 = sphi 0, %s42
    %s46 = sphi 0, %s45
    %s62 = sphi 0, %s46
    %s68 = sphi 0, %s70
    %s71 = sphi 0, %s68
    %s72 = sphi 0, %s71
    %s88 = sphi 0, %s72
    %s94 = sphi 0, %s96
    %s97 = sphi 0, %s94
    %s98 = sphi 0, %s97
    %s114 = sphi 0, %s98
    %s124 = sphi 0, %s126
    %s127 = sphi 0, %s124
    %s128 = sphi 0, %s127
    %s144 = sphi 0, %s128
  $region4: #{residual_block_3d.6} parent=0 // loop_header_branch
    %12 = sbr.rel (%p10) target = $region8
  $region5: #{residual_block_3d.6} parent=0 // loop_body
    %s14 = ssub.s32 %s9, 1
    %s15 = ssub.s32 %s9, 2
    %s25 = sadd.s32 1, %s18
    %p26 = scmp.ge.s32.totalorder %s25, 1
    %s27 = scalar_select %p26, 0, %s25
    %s28 = sadd.s32 1, %s17
    %s29 = scalar_select %p26, %s28, %s17
    %p30 = scmp.ge.s32.totalorder %s29, 1
    %s31 = scalar_select %p30, 0, %s29
    %s32 = sadd.s32 1, %s16
    %s33 = scalar_select %p30, %s32, %s16
    %p34 = scmp.ge.s32.totalorder %s33, 4
    %s35 = scalar_select %p34, 0, %s33
    %s36 = ssub.s32 %s16, %s35
    %s37 = ssub.s32 %s17, %s31
    %s38 = sor.u32 %s36, %s37
    %s39 = ssub.s32 %s18, %s27
    %s40 = sor.u32 %s38, %s39
    %p41 = scmp.eq.s32.totalorder %s40, 0
    %s43 = sadd.s32 %s42, 1
    %s44 = scalar_select %p41, %s42, %s43
    %p47 = pneg %p41
    %p48 = scmp.eq.s32.totalorder %s9, 3
    %p49 = por %p47, %p48
    %p50 = scmp.ne.s32.totalorder %s42, %s45
    %p51 = scmp.eq.s32.totalorder %s9, 0
    %p52 = por %p50, %p51
    %p53 = scmp.ne.s32.totalorder %s42, %s45
    %p54 = scmp.eq.s32.totalorder %s14, 3
    %p55 = por %p53, %p54
    %p56 = scmp.ne.s32.totalorder %s45, %s46
    %p57 = scmp.eq.s32.totalorder %s14, 0
    %p58 = por %p56, %p57
    %p59 = scmp.ne.s32.totalorder %s45, %s46
    %p60 = scmp.eq.s32.totalorder %s15, 3
    %p61 = por %p59, %p60
    %p63 = scmp.ne.s32.totalorder %s46, %s62
    %p64 = scmp.eq.s32.totalorder %s15, 0
    %p65 = por %p63, %p64
    %s66 = ssub.s32 %s18, %s27
    %p67 = scmp.eq.s32.totalorder %s66, 0
    %s69 = sadd.s32 %s68, 1
    %s70 = scalar_select %p67, %s68, %s69
    %p73 = pneg %p67
    %p74 = scmp.eq.s32.totalorder %s9, 3
    %p75 = por %p73, %p74
    %p76 = scmp.ne.s32.totalorder %s68, %s71
    %p77 = scmp.eq.s32.totalorder %s9, 0
    %p78 = por %p76, %p77
    %p79 = scmp.ne.s32.totalorder %s68, %s71
    %p80 = scmp.eq.s32.totalorder %s14, 3
    %p81 = por %p79, %p80
    %p82 = scmp.ne.s32.totalorder %s71, %s72
    %p83 = scmp.eq.s32.totalorder %s14, 0
    %p84 = por %p82, %p83
    %p85 = scmp.ne.s32.totalorder %s71, %s72
    %p86 = scmp.eq.s32.totalorder %s15, 3
    %p87 = por %p85, %p86
    %p89 = scmp.ne.s32.totalorder %s72, %s88
    %p90 = scmp.eq.s32.totalorder %s15, 0
    %p91 = por %p89, %p90
    %s92 = ssub.s32 %s18, %s27
    %p93 = scmp.eq.s32.totalorder %s92, 0
    %s95 = sadd.s32 %s94, 1
    %s96 = scalar_select %p93, %s94, %s95
    %p99 = pneg %p93
    %p100 = scmp.eq.s32.totalorder %s9, 3
    %p101 = por %p99, %p100
    %p102 = scmp.ne.s32.totalorder %s94, %s97
    %p103 = scmp.eq.s32.totalorder %s9, 0
    %p104 = por %p102, %p103
    %p105 = scmp.ne.s32.totalorder %s94, %s97
    %p106 = scmp.eq.s32.totalorder %s14, 3
    %p107 = por %p105, %p106
    %p108 = scmp.ne.s32.totalorder %s97, %s98
    %p109 = scmp.eq.s32.totalorder %s14, 0
    %p110 = por %p108, %p109
    %p111 = scmp.ne.s32.totalorder %s97, %s98
    %p112 = scmp.eq.s32.totalorder %s15, 3
    %p113 = por %p111, %p112
    %p115 = scmp.ne.s32.totalorder %s98, %s114
    %p116 = scmp.eq.s32.totalorder %s15, 0
    %p117 = por %p115, %p116
    %s118 = ssub.s32 %s16, %s35
    %s119 = ssub.s32 %s17, %s31
    %s120 = sor.u32 %s118, %s119
    %s121 = ssub.s32 %s18, %s27
    %s122 = sor.u32 %s120, %s121
    %p123 = scmp.eq.s32.totalorder %s122, 0
    %s125 = sadd.s32 %s124, 1
    %s126 = scalar_select %p123, %s124, %s125
    %p129 = pneg %p123
    %p130 = scmp.eq.s32.totalorder %s9, 3
    %p131 = por %p129, %p130
    %p132 = scmp.ne.s32.totalorder %s124, %s127
    %p133 = scmp.eq.s32.totalorder %s9, 0
    %p134 = por %p132, %p133
    %p135 = scmp.ne.s32.totalorder %s124, %s127
    %p136 = scmp.eq.s32.totalorder %s14, 3
    %p137 = por %p135, %p136
    %p138 = scmp.ne.s32.totalorder %s127, %s128
    %p139 = scmp.eq.s32.totalorder %s14, 0
    %p140 = por %p138, %p139
    %p141 = scmp.ne.s32.totalorder %s127, %s128
    %p142 = scmp.eq.s32.totalorder %s15, 3
    %p143 = por %p141, %p142
    %p145 = scmp.ne.s32.totalorder %s128, %s144
    %p146 = scmp.eq.s32.totalorder %s15, 0
    %p147 = por %p145, %p146
    %p148 = scmp.le.s32.totalorder 1, %s9
    %p149 = scmp.lt.s32.totalorder %s9, 5
    %p150 = pnand %p148, %p149
    %p151 = pneg %p150
    // Predicated region
    $region9: #{residual_block_3d.6} parent=5 // pred_check
      _
    $region10: #{residual_block_3d.6} parent=5 // pred_check_branch
      %153 = sbr.rel (%p150) target = $region12
    $region11: #{residual_block_3d.6} parent=5 // pred_region
      %s154 = ssub.s32 %s9, 1
      // Predicated region
      $region13: #{residual_block_3d.6} parent=11 // pred_check
        %p155 = pneg %p84
      $region14: #{residual_block_3d.6} parent=11 // pred_check_branch
        %157 = sbr.rel (%p155) target = $region16
      $region15: #{residual_block_3d.6} parent=11 // pred_region
        %p158 = scmp.lt.s32.totalorder %s21, 0
        %s159 = scalar_select %p158, %s21, 0
        %s160 = scalar_lea.vmem %s1, %s159
      $region16: #{residual_block_3d.6} parent=11 // pred_fallthru
        _
      // Predicated region
      $region17: #{residual_block_3d.6} parent=11 // pred_check
        %p161 = pneg %p110
      $region18: #{residual_block_3d.6} parent=11 // pred_check_branch
        %163 = sbr.rel (%p161) target = $region20
      $region19: #{residual_block_3d.6} parent=11 // pred_region
        %p164 = scmp.lt.s32.totalorder %s21, 0
        %s165 = scalar_select %p164, %s21, 0
        %s166 = scalar_lea.vmem %s2, %s165
      $region20: #{residual_block_3d.6} parent=11 // pred_fallthru
        _
    $region12: #{residual_block_3d.6} parent=5 // pred_fallthru
      _
    %p167 = scmp.lt.s32.totalorder %s9, 4
    // Predicated region
    $region21: #{residual_block_3d.6} parent=5 // pred_check
      %p168 = pneg %p167
    $region22: #{residual_block_3d.6} parent=5 // pred_check_branch
      %170 = sbr.rel (%p168) target = $region24
    $region23: #{residual_block_3d.6} parent=5 // pred_region
      // Predicated region
      $region25: #{residual_block_3d.6} parent=23 // pred_check
        %p171 = pneg %p52
      $region26: #{residual_block_3d.6} parent=23 // pred_check_branch
        %173 = sbr.rel (%p171) target = $region28
      $region27: #{residual_block_3d.6} parent=23 // pred_region
        %p174 = scmp.lt.s32.totalorder %s16, 3
        %s175 = scalar_select %p174, %s16, 3
        %p176 = scmp.lt.s32.totalorder %s17, 0
        %s177 = scalar_select %p176, %s17, 0
        %p178 = scmp.lt.s32.totalorder %s18, 0
        %s179 = scalar_select %p178, %s18, 0
        %s180 = sadd.s32 %s179, %s177
        %s181 = sadd.s32 %s180, %s175
        %s182 = smul.addr %s181, 4
        %s183 = scalar_lea.vmem %s0, %s182
      $region28: #{residual_block_3d.6} parent=23 // pred_fallthru
        _
    $region24: #{residual_block_3d.6} parent=5 // pred_fallthru
      _
    %p184 = scmp.le.s32.totalorder 1, %s9
    %p185 = scmp.lt.s32.totalorder %s9, 5
    %p186 = pnand %p184, %p185
    %p187 = pneg %p186
    // Predicated region
    $region29: #{residual_block_3d.6} parent=5 // pred_check
      _
    $region30: #{residual_block_3d.6} parent=5 // pred_check_branch
      %189 = sbr.rel (%p186) target = $region32
    $region31: #{residual_block_3d.6} parent=5 // pred_region
      %s190 = ssub.s32 %s9, 1
      %p191 = scmp.lt.s32.totalorder %s19, 3
      %s192 = scalar_select %p191, %s19, 3
      %p193 = scmp.lt.s32.totalorder %s20, 0
      %s194 = scalar_select %p193, %s20, 0
      %p195 = scmp.lt.s32.totalorder %s21, 0
      %s196 = scalar_select %p195, %s21, 0
      %s197 = sadd.s32 %s196, %s194
      %s198 = sadd.s32 %s197, %s192
      %s199 = smul.addr %s198, 4
      %s200 = scalar_lea.vmem %s0, %s199
      %p201 = pneg %p58
      %p202 = pneg %p55
      %p203 = scmp.lt.s32.totalorder %s21, 0
      %s204 = scalar_select %p203, %s21, 0
      %s205 = scalar_lea.vmem %s1, %s204
      %p206 = pneg %p84
      %p207 = pneg %p81
      %p208 = scmp.lt.s32.totalorder %s21, 0
      %s209 = scalar_select %p208, %s21, 0
      %s210 = scalar_lea.vmem %s2, %s209
      %p211 = pneg %p110
      %p212 = pneg %p107
      %p213 = pneg %p140
      %p214 = pneg %p137
      %p215 = scmp.lt.s32.totalorder %s19, 3
      %s216 = scalar_select %p215, %s19, 3
      %p217 = scmp.lt.s32.totalorder %s20, 0
      %s218 = scalar_select %p217, %s20, 0
      %p219 = scmp.lt.s32.totalorder %s21, 0
      %s220 = scalar_select %p219, %s21, 0
      %s221 = sadd.s32 %s220, %s218
      %s222 = sadd.s32 %s221, %s216
      %s223 = smul.addr %s222, 4
      %s224 = scalar_lea.vmem %s3, %s223
      %p225 = scmp.lt.s32.totalorder %s19, 3
      %s226 = scalar_select %p225, %s19, 3
      %p227 = scmp.lt.s32.totalorder %s20, 0
      %s228 = scalar_select %p227, %s20, 0
      %p229 = scmp.lt.s32.totalorder %s21, 0
      %s230 = scalar_select %p229, %s21, 0
      %s231 = sadd.s32 %s230, %s228
      %s232 = sadd.s32 %s231, %s226
      %s233 = smul.addr %s232, 4
      %s234 = scalar_lea.vmem %s0, %s233
      %p235 = scmp.lt.s32.totalorder %s21, 0
      %s236 = scalar_select %p235, %s21, 0
      %s237 = scalar_lea.vmem %s1, %s236
      %p238 = scmp.lt.s32.totalorder %s21, 0
      %s239 = scalar_select %p238, %s21, 0
      %s240 = scalar_lea.vmem %s2, %s239
      %p241 = scmp.lt.s32.totalorder %s19, 3
      %s242 = scalar_select %p241, %s19, 3
      %p243 = scmp.lt.s32.totalorder %s20, 0
      %s244 = scalar_select %p243, %s20, 0
      %p245 = scmp.lt.s32.totalorder %s21, 0
      %s246 = scalar_select %p245, %s21, 0
      %s247 = sadd.s32 %s246, %s244
      %s248 = sadd.s32 %s247, %s242
      %s249 = smul.addr %s248, 4
      %s250 = scalar_lea.vmem %s3, %s249
      %v251 = vld [vmem:[%s234] sm:$0xf]
      %v252 = vunpack.c.l.bf16 %v251
      %v253 = vld [vmem:[%s237] sm:$0x1]
      %v255 = vperm.slane %v253, 0
      %v257 = vmul.f32 %v252, %v255
      %v258 = vld [vmem:[%s240] sm:$0x1]
      %v260 = vperm.slane %v258, 0
      %v262 = vadd.f32 %v257, %v260
      %v263 = vmax.f32 %v262, 0.0
      %v264 = vpack.c.bf16 %v263, %v263
      %265 = vst [vmem:[%s250] sm:$0xf] %v264
      %p266 = scmp.lt.s32.totalorder %s19, 3
      %s267 = scalar_select %p266, %s19, 3
      %p268 = scmp.lt.s32.totalorder %s20, 0
      %s269 = scalar_select %p268, %s20, 0
      %p270 = scmp.lt.s32.totalorder %s21, 0
      %s271 = scalar_select %p270, %s21, 0
      %s272 = sadd.s32 %s271, %s269
      %s273 = sadd.s32 %s272, %s267
      %s274 = smul.addr %s273, 4
      %s275 = scalar_lea.vmem %s3, %s274
      // Predicated region
      $region33: #{residual_block_3d.6} parent=31 // pred_check
        %p276 = pneg %p137
      $region34: #{residual_block_3d.6} parent=31 // pred_check_branch
        %278 = sbr.rel (%p276) target = $region36
      $region35: #{residual_block_3d.6} parent=31 // pred_region
        _
      $region36: #{residual_block_3d.6} parent=31 // pred_fallthru
        _
    $region32: #{residual_block_3d.6} parent=5 // pred_fallthru
      _
    %p279 = scmp.le.s32.totalorder 2, %s9
    // Predicated region
    $region37: #{residual_block_3d.6} parent=5 // pred_check
      %p280 = pneg %p279
    $region38: #{residual_block_3d.6} parent=5 // pred_check_branch
      %282 = sbr.rel (%p280) target = $region40
    $region39: #{residual_block_3d.6} parent=5 // pred_region
      %s283 = ssub.s32 %s9, 2
      // Predicated region
      $region41: #{residual_block_3d.6} parent=39 // pred_check
        %p284 = pneg %p143
      $region42: #{residual_block_3d.6} parent=39 // pred_check_branch
        %286 = sbr.rel (%p284) target = $region44
      $region43: #{residual_block_3d.6} parent=39 // pred_region
        %p287 = scmp.lt.s32.totalorder %s22, 3
        %s288 = scalar_select %p287, %s22, 3
        %p289 = scmp.lt.s32.totalorder %s23, 0
        %s290 = scalar_select %p289, %s23, 0
        %p291 = scmp.lt.s32.totalorder %s24, 0
        %s292 = scalar_select %p291, %s24, 0
        %s293 = sadd.s32 %s292, %s290
        %s294 = sadd.s32 %s293, %s288
        %s295 = smul.addr %s294, 4
        %s296 = scalar_lea.vmem %s3, %s295
      $region44: #{residual_block_3d.6} parent=39 // pred_fallthru
        _
    $region40: #{residual_block_3d.6} parent=5 // pred_fallthru
      _
  $region6: #{residual_block_3d.6} parent=0 // loop_footer
    %s13 = sadd.s32 1, %s9
  $region7: #{residual_block_3d.6} parent=0 // loop_footer_branch
    %8 = sbr.rel target = $region3
  $region8: #{residual_block_3d.6} parent=0 // loop_exit
    _

// kernel: residual_block_3d.5
$region0: #{residual_block_3d.5}
  #allocation0 [shape = 'u32[]', space=smem, size = 0x4, offset = 0x4, fixed_abs, tag = 'smem constant byte address 0x4 - core index']
  #allocation1 [shape = 'u32[72,128]{1,0:T(1,128)}', space=vmem, size = 0x9000, scoped, tag = 'internal scratch']
  #allocation2 [shape = 'f32[8,128]{1,0:T(8,128)}', space=vmem, size = 0x1000, scoped, tag = 'scratch operand']
  %s0 = inlined_call_operand.vmem [shape: f32[8,1], index: 0, kind: input, shape index: {}]
  %s1 = inlined_call_operand.vmem [shape: bf16[4,4,23,32], index: 1, kind: input, shape index: {}]
  %s2 = inlined_call_operand.vmem [shape: bf16[4,512,128], index: 2, kind: input, shape index: {}]
  %s3 = inlined_call_operand.vmem [shape: bf16[4,1,8,128], index: 3, kind: output, shape index: {0}]
  %s4 = inlined_call_operand.vmem [shape: f32[4,1,8,128], index: 4, kind: output, shape index: {1}]
  %s5 = inlined_call_operand.vmem [shape: f32[4,1,8,128], index: 5, kind: output, shape index: {2}]
  %6 = xla_tuple %s3, %s4, %s5
  %s7 = sld [smem:[#allocation0]]
  $region69: #{residual_block_3d.5} parent=0
    _
  %s9 = ssub.s32 1, %s7
  %s10 = scalar_select 0, %s9, %s7
  loop: start=0, step=1, limit=18
  $region2: #{residual_block_3d.5} parent=0 // loop_pre_header
    _
  $region3: #{residual_block_3d.5} parent=0 // loop_header
    %s12 = sphi 0, %s16
    %p13 = scmp.ge.s32.totalorder %s12, 18
    %s19 = sphi 0, %s45
    %s20 = sphi 0, %s41
    %s21 = sphi 0, %s37
    %s22 = sphi 0, %s33
    %s23 = sphi 0, %s19
    %s24 = sphi 0, %s20
    %s25 = sphi 0, %s21
    %s26 = sphi 0, %s22
    %s27 = sphi 0, %s23
    %s28 = sphi 0, %s24
    %s29 = sphi 0, %s25
    %s30 = sphi 0, %s26
    %s46 = sphi 0, %s46
    %s48 = sphi 0, %s46
    %s49 = sphi 0, %s48
    %s63 = sphi 0, %s49
    %s73 = sphi 0, %s75
    %s76 = sphi 0, %s73
    %s77 = sphi 0, %s76
    %s93 = sphi 0, %s77
    %s99 = sphi 0, %s101
    %s102 = sphi 0, %s99
    %s103 = sphi 0, %s102
    %s119 = sphi 0, %s103
    %s129 = sphi 0, %s131
    %s132 = sphi 0, %s129
    %s133 = sphi 0, %s132
    %s149 = sphi 0, %s133
    %s159 = sphi 0, %s161
    %s162 = sphi 0, %s159
    %s163 = sphi 0, %s162
    %s179 = sphi 0, %s163
    %s189 = sphi 0, %s191
    %s192 = sphi 0, %s189
    %s193 = sphi 0, %s192
    %s209 = sphi 0, %s193
  $region4: #{residual_block_3d.5} parent=0 // loop_header_branch
    %15 = sbr.rel (%p13) target = $region8
  $region5: #{residual_block_3d.5} parent=0 // loop_body
    %s17 = ssub.s32 %s12, 1
    %s18 = ssub.s32 %s12, 2
    %s31 = sadd.s32 1, %s22
    %p32 = scmp.ge.s32.totalorder %s31, 4
    %s33 = scalar_select %p32, 0, %s31
    %s34 = sadd.s32 1, %s21
    %s35 = scalar_select %p32, %s34, %s21
    %p36 = scmp.ge.s32.totalorder %s35, 1
    %s37 = scalar_select %p36, 0, %s35
    %s38 = sadd.s32 1, %s20
    %s39 = scalar_select %p36, %s38, %s20
    %p40 = scmp.ge.s32.totalorder %s39, 1
    %s41 = scalar_select %p40, 0, %s39
    %s42 = sadd.s32 1, %s19
    %s43 = scalar_select %p40, %s42, %s19
    %p44 = scmp.ge.s32.totalorder %s43, 4
    %s45 = scalar_select %p44, 0, %s43
    %s47 = sadd.s32 %s46, 1
    %p50 = scmp.eq.s32.totalorder %s12, 15
    %p51 = scmp.ne.s32.totalorder %s46, %s48
    %p52 = scmp.eq.s32.totalorder %s12, 0
    %p53 = por %p51, %p52
    %p54 = scmp.ne.s32.totalorder %s46, %s48
    %p55 = scmp.eq.s32.totalorder %s17, 15
    %p56 = por %p54, %p55
    %p57 = scmp.ne.s32.totalorder %s48, %s49
    %p58 = scmp.eq.s32.totalorder %s17, 0
    %p59 = por %p57, %p58
    %p60 = scmp.ne.s32.totalorder %s48, %s49
    %p61 = scmp.eq.s32.totalorder %s18, 15
    %p62 = por %p60, %p61
    %p64 = scmp.ne.s32.totalorder %s49, %s63
    %p65 = scmp.eq.s32.totalorder %s18, 0
    %p66 = por %p64, %p65
    %s67 = sadd.s32 %s20, %s22
    %s68 = sadd.s32 %s41, %s33
    %s69 = ssub.s32 %s19, %s45
    %s70 = ssub.s32 %s67, %s68
    %s71 = sor.u32 %s69, %s70
    %p72 = scmp.eq.s32.totalorder %s71, 0
    %s74 = sadd.s32 %s73, 1
    %s75 = scalar_select %p72, %s73, %s74
    %p78 = pneg %p72
    %p79 = scmp.eq.s32.totalorder %s12, 15
    %p80 = por %p78, %p79
    %p81 = scmp.ne.s32.totalorder %s73, %s76
    %p82 = scmp.eq.s32.totalorder %s12, 0
    %p83 = por %p81, %p82
    %p84 = scmp.ne.s32.totalorder %s73, %s76
    %p85 = scmp.eq.s32.totalorder %s17, 15
    %p86 = por %p84, %p85
    %p87 = scmp.ne.s32.totalorder %s76, %s77
    %p88 = scmp.eq.s32.totalorder %s17, 0
    %p89 = por %p87, %p88
    %p90 = scmp.ne.s32.totalorder %s76, %s77
    %p91 = scmp.eq.s32.totalorder %s18, 15
    %p92 = por %p90, %p91
    %p94 = scmp.ne.s32.totalorder %s77, %s93
    %p95 = scmp.eq.s32.totalorder %s18, 0
    %p96 = por %p94, %p95
    %s97 = ssub.s32 %s21, %s37
    %p98 = scmp.eq.s32.totalorder %s97, 0
    %s100 = sadd.s32 %s99, 1
    %s101 = scalar_select %p98, %s99, %s100
    %p104 = pneg %p98
    %p105 = scmp.eq.s32.totalorder %s12, 15
    %p106 = por %p104, %p105
    %p107 = scmp.ne.s32.totalorder %s99, %s102
    %p108 = scmp.eq.s32.totalorder %s12, 0
    %p109 = por %p107, %p108
    %p110 = scmp.ne.s32.totalorder %s99, %s102
    %p111 = scmp.eq.s32.totalorder %s17, 15
    %p112 = por %p110, %p111
    %p113 = scmp.ne.s32.totalorder %s102, %s103
    %p114 = scmp.eq.s32.totalorder %s17, 0
    %p115 = por %p113, %p114
    %p116 = scmp.ne.s32.totalorder %s102, %s103
    %p117 = scmp.eq.s32.totalorder %s18, 15
    %p118 = por %p116, %p117
    %p120 = scmp.ne.s32.totalorder %s103, %s119
    %p121 = scmp.eq.s32.totalorder %s18, 0
    %p122 = por %p120, %p121
    %s123 = ssub.s32 %s19, %s45
    %s124 = ssub.s32 %s20, %s41
    %s125 = sor.u32 %s123, %s124
    %s126 = ssub.s32 %s21, %s37
    %s127 = sor.u32 %s125, %s126
    %p128 = scmp.eq.s32.totalorder %s127, 0
    %s130 = sadd.s32 %s129, 1
    %s131 = scalar_select %p128, %s129, %s130
    %p134 = pneg %p128
    %p135 = scmp.eq.s32.totalorder %s12, 15
    %p136 = por %p134, %p135
    %p137 = scmp.ne.s32.totalorder %s129, %s132
    %p138 = scmp.eq.s32.totalorder %s12, 0
    %p139 = por %p137, %p138
    %p140 = scmp.ne.s32.totalorder %s129, %s132
    %p141 = scmp.eq.s32.totalorder %s17, 15
    %p142 = por %p140, %p141
    %p143 = scmp.ne.s32.totalorder %s132, %s133
    %p144 = scmp.eq.s32.totalorder %s17, 0
    %p145 = por %p143, %p144
    %p146 = scmp.ne.s32.totalorder %s132, %s133
    %p147 = scmp.eq.s32.totalorder %s18, 15
    %p148 = por %p146, %p147
    %p150 = scmp.ne.s32.totalorder %s133, %s149
    %p151 = scmp.eq.s32.totalorder %s18, 0
    %p152 = por %p150, %p151
    %s153 = ssub.s32 %s19, %s45
    %s154 = ssub.s32 %s20, %s41
    %s155 = sor.u32 %s153, %s154
    %s156 = ssub.s32 %s21, %s37
    %s157 = sor.u32 %s155, %s156
    %p158 = scmp.eq.s32.totalorder %s157, 0
    %s160 = sadd.s32 %s159, 1
    %s161 = scalar_select %p158, %s159, %s160
    %p164 = pneg %p158
    %p165 = scmp.eq.s32.totalorder %s12, 15
    %p166 = por %p164, %p165
    %p167 = scmp.ne.s32.totalorder %s159, %s162
    %p168 = scmp.eq.s32.totalorder %s12, 0
    %p169 = por %p167, %p168
    %p170 = scmp.ne.s32.totalorder %s159, %s162
    %p171 = scmp.eq.s32.totalorder %s17, 15
    %p172 = por %p170, %p171
    %p173 = scmp.ne.s32.totalorder %s162, %s163
    %p174 = scmp.eq.s32.totalorder %s17, 0
    %p175 = por %p173, %p174
    %p176 = scmp.ne.s32.totalorder %s162, %s163
    %p177 = scmp.eq.s32.totalorder %s18, 15
    %p178 = por %p176, %p177
    %p180 = scmp.ne.s32.totalorder %s163, %s179
    %p181 = scmp.eq.s32.totalorder %s18, 0
    %p182 = por %p180, %p181
    %s183 = ssub.s32 %s19, %s45
    %s184 = ssub.s32 %s20, %s41
    %s185 = sor.u32 %s183, %s184
    %s186 = ssub.s32 %s21, %s37
    %s187 = sor.u32 %s185, %s186
    %p188 = scmp.eq.s32.totalorder %s187, 0
    %s190 = sadd.s32 %s189, 1
    %s191 = scalar_select %p188, %s189, %s190
    %p194 = pneg %p188
    %p195 = scmp.eq.s32.totalorder %s12, 15
    %p196 = por %p194, %p195
    %p197 = scmp.ne.s32.totalorder %s189, %s192
    %p198 = scmp.eq.s32.totalorder %s12, 0
    %p199 = por %p197, %p198
    %p200 = scmp.ne.s32.totalorder %s189, %s192
    %p201 = scmp.eq.s32.totalorder %s17, 15
    %p202 = por %p200, %p201
    %p203 = scmp.ne.s32.totalorder %s192, %s193
    %p204 = scmp.eq.s32.totalorder %s17, 0
    %p205 = por %p203, %p204
    %p206 = scmp.ne.s32.totalorder %s192, %s193
    %p207 = scmp.eq.s32.totalorder %s18, 15
    %p208 = por %p206, %p207
    %p210 = scmp.ne.s32.totalorder %s193, %s209
    %p211 = scmp.eq.s32.totalorder %s18, 0
    %p212 = por %p210, %p211
    %p213 = scmp.le.s32.totalorder 1, %s12
    %p214 = scmp.lt.s32.totalorder %s12, 17
    %p215 = pnand %p213, %p214
    %p216 = pneg %p215
    // Predicated region
    $region9: #{residual_block_3d.5} parent=5 // pred_check
      _
    $region10: #{residual_block_3d.5} parent=5 // pred_check_branch
      %218 = sbr.rel (%p215) target = $region12
    $region11: #{residual_block_3d.5} parent=5 // pred_region
      %s219 = ssub.s32 %s12, 1
      // Predicated region
      $region13: #{residual_block_3d.5} parent=11 // pred_check
        %p220 = pneg %p59
      $region14: #{residual_block_3d.5} parent=11 // pred_check_branch
        %222 = sbr.rel (%p220) target = $region16
      $region15: #{residual_block_3d.5} parent=11 // pred_region
        _
      $region16: #{residual_block_3d.5} parent=11 // pred_fallthru
        _
      // Predicated region
      $region17: #{residual_block_3d.5} parent=11 // pred_check
        %p223 = pneg %p115
      $region18: #{residual_block_3d.5} parent=11 // pred_check_branch
        %225 = sbr.rel (%p223) target = $region20
      $region19: #{residual_block_3d.5} parent=11 // pred_region
        %p226 = scmp.lt.s32.totalorder %s25, 0
        %s227 = scalar_select %p226, %s25, 0
        %s228 = smul.addr %s227, 4
        %s229 = scalar_lea.vmem %s2, %s228
      $region20: #{residual_block_3d.5} parent=11 // pred_fallthru
        _
    $region12: #{residual_block_3d.5} parent=5 // pred_fallthru
      _
    %p230 = scmp.lt.s32.totalorder %s12, 16
    // Predicated region
    $region21: #{residual_block_3d.5} parent=5 // pred_check
      %p231 = pneg %p230
    $region22: #{residual_block_3d.5} parent=5 // pred_check_branch
      %233 = sbr.rel (%p231) target = $region24
    $region23: #{residual_block_3d.5} parent=5 // pred_region
      // Predicated region
      $region25: #{residual_block_3d.5} parent=23 // pred_check
        %p234 = pneg %p83
      $region26: #{residual_block_3d.5} parent=23 // pred_check_branch
        %236 = sbr.rel (%p234) target = $region28
      $region27: #{residual_block_3d.5} parent=23 // pred_region
        %s237 = sadd.s32 %s20, %s22
        %p238 = scmp.lt.s32.totalorder %s19, 3
        %s239 = scalar_select %p238, %s19, 3
        %p240 = scmp.lt.s32.totalorder %s237, 3
        %s241 = scalar_select %p240, %s237, 3
        %s242 = smul.addr %s241, 3
        %s243 = smul.addr %s239, 12
        %s244 = sadd.s32 %s242, %s243
        %s245 = smul.addr %s244, 4
        %s246 = scalar_lea.vmem %s1, %s245
        %s247 = sadd.s32 %s20, %s22
      $region28: #{residual_block_3d.5} parent=23 // pred_fallthru
        _
    $region24: #{residual_block_3d.5} parent=5 // pred_fallthru
      _
    %p248 = scmp.le.s32.totalorder 1, %s12
    %p249 = scmp.lt.s32.totalorder %s12, 17
    %p250 = pnand %p248, %p249
    %p251 = pneg %p250
    // Predicated region
    $region29: #{residual_block_3d.5} parent=5 // pred_check
      _
    $region30: #{residual_block_3d.5} parent=5 // pred_check_branch
      %253 = sbr.rel (%p250) target = $region32
    $region31: #{residual_block_3d.5} parent=5 // pred_region
      %s254 = ssub.s32 %s12, 1
      %p255 = pneg %p59
      %p256 = pneg %p56
      %s257 = sadd.s32 %s24, %s26
      %p258 = scmp.lt.s32.totalorder %s23, 3
      %s259 = scalar_select %p258, %s23, 3
      %p260 = scmp.lt.s32.totalorder %s257, 3
      %s261 = scalar_select %p260, %s257, 3
      %s262 = smul.addr %s261, 3
      %s263 = smul.addr %s259, 12
      %s264 = sadd.s32 %s262, %s263
      %s265 = smul.addr %s264, 4
      %s266 = scalar_lea.vmem %s1, %s265
      %p267 = pneg %p89
      %p268 = pneg %p86
      %p269 = scmp.lt.s32.totalorder %s25, 0
      %s270 = scalar_select %p269, %s25, 0
      %s271 = smul.addr %s270, 4
      %s272 = scalar_lea.vmem %s2, %s271
      %p273 = pneg %p115
      %p274 = pneg %p112
      %p275 = pneg %p145
      %p276 = pneg %p142
      %p277 = scmp.lt.s32.totalorder %s23, 3
      %s278 = scalar_select %p277, %s23, 3
      %p279 = scmp.lt.s32.totalorder %s24, 0
      %s280 = scalar_select %p279, %s24, 0
      %p281 = scmp.lt.s32.totalorder %s25, 0
      %s282 = scalar_select %p281, %s25, 0
      %s283 = sadd.s32 %s282, %s280
      %s284 = sadd.s32 %s283, %s278
      %s285 = smul.addr %s284, 4
      %s286 = scalar_lea.vmem %s3, %s285
      %p287 = pneg %p175
      %p288 = pneg %p172
      %p289 = scmp.lt.s32.totalorder %s23, 3
      %s290 = scalar_select %p289, %s23, 3
      %p291 = scmp.lt.s32.totalorder %s24, 0
      %s292 = scalar_select %p291, %s24, 0
      %p293 = scmp.lt.s32.totalorder %s25, 0
      %s294 = scalar_select %p293, %s25, 0
      %s295 = sadd.s32 %s294, %s292
      %s296 = sadd.s32 %s295, %s290
      %s297 = smul.addr %s296, 8
      %s298 = scalar_lea.vmem %s4, %s297
      %p299 = pneg %p205
      %p300 = pneg %p202
      %p301 = scmp.lt.s32.totalorder %s23, 3
      %s302 = scalar_select %p301, %s23, 3
      %p303 = scmp.lt.s32.totalorder %s24, 0
      %s304 = scalar_select %p303, %s24, 0
      %p305 = scmp.lt.s32.totalorder %s25, 0
      %s306 = scalar_select %p305, %s25, 0
      %s307 = sadd.s32 %s306, %s304
      %s308 = sadd.s32 %s307, %s302
      %s309 = smul.addr %s308, 8
      %s310 = scalar_lea.vmem %s5, %s309
      %s311 = sadd.s32 %s24, %s26
      %p312 = scmp.lt.s32.totalorder %s23, 3
      %s313 = scalar_select %p312, %s23, 3
      %p314 = scmp.lt.s32.totalorder %s311, 3
      %s315 = scalar_select %p314, %s311, 3
      %s316 = smul.addr %s315, 3
      %s317 = smul.addr %s313, 12
      %s318 = sadd.s32 %s316, %s317
      %s319 = smul.addr %s318, 4
      %s320 = scalar_lea.vmem %s1, %s319
      %s321 = sadd.s32 %s24, %s26
      %p322 = scmp.lt.s32.totalorder %s25, 0
      %s323 = scalar_select %p322, %s25, 0
      %s324 = smul.addr %s323, 4
      %s325 = scalar_lea.vmem %s2, %s324
      %p326 = scmp.lt.s32.totalorder %s23, 3
      %s327 = scalar_select %p326, %s23, 3
      %p328 = scmp.lt.s32.totalorder %s24, 0
      %s329 = scalar_select %p328, %s24, 0
      %p330 = scmp.lt.s32.totalorder %s25, 0
      %s331 = scalar_select %p330, %s25, 0
      %s332 = sadd.s32 %s331, %s329
      %s333 = sadd.s32 %s332, %s327
      %s334 = smul.addr %s333, 4
      %s335 = scalar_lea.vmem %s3, %s334
      %p336 = scmp.lt.s32.totalorder %s23, 3
      %s337 = scalar_select %p336, %s23, 3
      %p338 = scmp.lt.s32.totalorder %s24, 0
      %s339 = scalar_select %p338, %s24, 0
      %p340 = scmp.lt.s32.totalorder %s25, 0
      %s341 = scalar_select %p340, %s25, 0
      %s342 = sadd.s32 %s341, %s339
      %s343 = sadd.s32 %s342, %s337
      %s344 = smul.addr %s343, 8
      %s345 = scalar_lea.vmem %s4, %s344
      %p346 = scmp.lt.s32.totalorder %s23, 3
      %s347 = scalar_select %p346, %s23, 3
      %p348 = scmp.lt.s32.totalorder %s24, 0
      %s349 = scalar_select %p348, %s24, 0
      %p350 = scmp.lt.s32.totalorder %s25, 0
      %s351 = scalar_select %p350, %s25, 0
      %s352 = sadd.s32 %s351, %s349
      %s353 = sadd.s32 %s352, %s347
      %s354 = smul.addr %s353, 8
      %s355 = scalar_lea.vmem %s5, %s354
      %p357 = scmp.eq.s32.totalorder %s26, 0
      // Predicated region
      $region33: #{residual_block_3d.5} parent=31 // pred_check
        %p358 = pneg %p357
      $region34: #{residual_block_3d.5} parent=31 // pred_check_branch
        %360 = sbr.rel (%p358) target = $region36
      $region35: #{residual_block_3d.5} parent=31 // pred_region
        %361 = vst [vmem:[#allocation2] sm:$0xff] 0.0
      $region36: #{residual_block_3d.5} parent=31 // pred_fallthru
        _
      %v362 = vld [vmem:[%s320] sm:$0xf]
      %s363 = smul.u32 %s26, 64
      %s364 = smul.addr %s363, 4
      %s365 = scalar_lea.vmem %s325, %s364
      %v366 = vld [vmem:[%s365] sm:$0xf]
      %v367 = vld [vmem:[%s365 + $0x4] sm:$0xf]
      %v368 = vld [vmem:[%s365 + $0x8] sm:$0xf]
      %v369 = vld [vmem:[%s365 + $0xc] sm:$0xf]
      %v370 = vld [vmem:[%s320 + $0x4] sm:$0x1]
      %v371 = vld [vmem:[%s365 + $0x10] sm:$0xf]
      %v372 = vld [vmem:[%s365 + $0x14] sm:$0xf]
      %v373 = vld [vmem:[%s365 + $0x18] sm:$0xf]
      %v374 = vld [vmem:[%s365 + $0x1c] sm:$0xf]
      %v377 = vunpack.c.l.b16 %v362
      %v378 = vunpack.c.l.b16 %v370
      %v379 = vpack.c.b16 %v378, %v377
      %v381 = vshrl.u32 %v379, 16
      %v383 = vshll.u32 %v379, 16
      %v385 = vrot.slane %v383, 1
      %v386 = vor.u32 %v381, %v385
      %v391 = vunpack.c.l.b16 %v371
      %v392 = vunpack.c.l.b16 %v372
      %v393 = vunpack.c.l.b16 %v373
      %v394 = vunpack.c.l.b16 %v374
      %v395 = vpack.c.b16 %v392, %v391
      %v396 = vpack.c.b16 %v394, %v393
      %vm399 = vcmask 261120
      %v401 = vsel %vm399, %v386, 0
      %403 = vmatpush.bf16.msra.mxu0 0
      %404 = vmatpush.bf16.msra.mxu0 0
      %405 = vmatpush.bf16.msra.mxu0 0
      %406 = vmatpush.bf16.msra.mxu0 0
      %407 = vmatpush.bf16.msra.mxu0 0
      %408 = vmatpush.bf16.msra.mxu0 0
      %409 = vmatpush.bf16.msra.mxu0 %v396
      %410 = vmatpush.bf16.msra.mxu0 %v395
      %411 = vmatmul.bf16.gmra.mxu0 %v401
      %v412 = vpop.f32.mrf.mxu0
      %v413 = vadd.f32 0.0, %v412
      %v414 = vpop.f32.mrf.mxu0
      %415 = vdwg.mxu0
      %v420 = vunpack.c.l.b16 %v366
      %v421 = vunpack.c.l.b16 %v367
      %v422 = vunpack.c.l.b16 %v368
      %v423 = vunpack.c.l.b16 %v369
      %v424 = vpack.c.b16 %v421, %v420
      %v425 = vpack.c.b16 %v423, %v422
      %v429 = vsel %vm399, %v362, 0
      %431 = vmatpush.bf16.msra.mxu0 0
      %432 = vmatpush.bf16.msra.mxu0 0
      %433 = vmatpush.bf16.msra.mxu0 0
      %434 = vmatpush.bf16.msra.mxu0 0
      %435 = vmatpush.bf16.msra.mxu0 0
      %436 = vmatpush.bf16.msra.mxu0 0
      %437 = vmatpush.bf16.msra.mxu0 %v425
      %438 = vmatpush.bf16.msra.mxu0 %v424
      %439 = vmatmul.bf16.gmra.mxu0 %v429
      %v440 = vpop.f32.mrf.mxu0
      %v441 = vadd.f32 %v413, %v440
      %v442 = vpop.f32.mrf.mxu0
      %443 = vdwg.mxu0
      %v444 = vld [vmem:[%s320] sm:$0xe]
      %v445 = vld [vmem:[%s365 + $0x20] sm:$0xf]
      %v446 = vld [vmem:[%s365 + $0x24] sm:$0xf]
      %v447 = vld [vmem:[%s365 + $0x28] sm:$0xf]
      %v448 = vld [vmem:[%s365 + $0x2c] sm:$0xf]
      %v450 = vunpack.c.l.b16 %v444
      %v451 = vpack.c.b16 %v378, %v450
      %v452 = vrot.slane %v451, 1
      %v457 = vunpack.c.l.b16 %v445
      %v458 = vunpack.c.l.b16 %v446
      %v459 = vunpack.c.l.b16 %v447
      %v460 = vunpack.c.l.b16 %v448
      %v461 = vpack.c.b16 %v458, %v457
      %v462 = vpack.c.b16 %v460, %v459
      %v466 = vsel %vm399, %v452, 0
      %468 = vmatpush.bf16.msra.mxu0 0
      %469 = vmatpush.bf16.msra.mxu0 0
      %470 = vmatpush.bf16.msra.mxu0 0
      %471 = vmatpush.bf16.msra.mxu0 0
      %472 = vmatpush.bf16.msra.mxu0 0
      %473 = vmatpush.bf16.msra.mxu0 0
      %474 = vmatpush.bf16.msra.mxu0 %v462
      %475 = vmatpush.bf16.msra.mxu0 %v461
      %476 = vmatmul.bf16.gmra.mxu0 %v466
      %v477 = vpop.f32.mrf.mxu0
      %v478 = vadd.f32 0.0, %v477
      %v479 = vpop.f32.mrf.mxu0
      %480 = vdwg.mxu0
      %v481 = vadd.f32 %v441, %v478
      %v482 = vld [vmem:[%s320 + $0x4] sm:$0x3]
      %v483 = vld [vmem:[%s365 + $0x30] sm:$0xf]
      %v484 = vld [vmem:[%s365 + $0x34] sm:$0xf]
      %v485 = vld [vmem:[%s365 + $0x38] sm:$0xf]
      %v486 = vld [vmem:[%s365 + $0x3c] sm:$0xf]
      %v488 = vunpack.c.l.b16 %v482
      %v489 = vpack.c.b16 %v488, %v450
      %v491 = vshrl.u32 %v489, 16
      %v493 = vrot.slane %v491, 1
      %v494 = vshll.u32 %v489, 16
      %v496 = vrot.slane %v494, 2
      %v497 = vor.u32 %v493, %v496
      %v502 = vunpack.c.l.b16 %v483
      %v503 = vunpack.c.l.b16 %v484
      %v504 = vunpack.c.l.b16 %v485
      %v505 = vunpack.c.l.b16 %v486
      %v506 = vpack.c.b16 %v503, %v502
      %v507 = vpack.c.b16 %v505, %v504
      %v511 = vsel %vm399, %v497, 0
      %513 = vmatpush.bf16.msra.mxu0 0
      %514 = vmatpush.bf16.msra.mxu0 0
      %515 = vmatpush.bf16.msra.mxu0 0
      %516 = vmatpush.bf16.msra.mxu0 0
      %517 = vmatpush.bf16.msra.mxu0 0
      %518 = vmatpush.bf16.msra.mxu0 0
      %519 = vmatpush.bf16.msra.mxu0 %v507
      %520 = vmatpush.bf16.msra.mxu0 %v506
      %521 = vmatmul.bf16.gmra.mxu0 %v511
      %v522 = vpop.f32.mrf.mxu0
      %v523 = vadd.f32 0.0, %v522
      %v524 = vpop.f32.mrf.mxu0
      %525 = vdwg.mxu0
      %v526 = vadd.f32 %v481, %v523
      %v527 = vld [vmem:[%s320] sm:$0xc]
      %v528 = vld [vmem:[%s365 + $0x40] sm:$0xf]
      %v529 = vld [vmem:[%s365 + $0x44] sm:$0xf]
      %v530 = vld [vmem:[%s365 + $0x48] sm:$0xf]
      %v531 = vld [vmem:[%s365 + $0x4c] sm:$0xf]
      %v533 = vunpack.c.l.b16 %v527
      %v534 = vpack.c.b16 %v488, %v533
      %v535 = vrot.slane %v534, 2
      %v540 = vunpack.c.l.b16 %v528
      %v541 = vunpack.c.l.b16 %v529
      %v542 = vunpack.c.l.b16 %v530
      %v543 = vunpack.c.l.b16 %v531
      %v544 = vpack.c.b16 %v541, %v540
      %v545 = vpack.c.b16 %v543, %v542
      %v549 = vsel %vm399, %v535, 0
      %551 = vmatpush.bf16.msra.mxu0 0
      %552 = vmatpush.bf16.msra.mxu0 0
      %553 = vmatpush.bf16.msra.mxu0 0
      %554 = vmatpush.bf16.msra.mxu0 0
      %555 = vmatpush.bf16.msra.mxu0 0
      %556 = vmatpush.bf16.msra.mxu0 0
      %557 = vmatpush.bf16.msra.mxu0 %v545
      %558 = vmatpush.bf16.msra.mxu0 %v544
      %559 = vmatmul.bf16.gmra.mxu0 %v549
      %v560 = vpop.f32.mrf.mxu0
      %v561 = vadd.f32 0.0, %v560
      %v562 = vpop.f32.mrf.mxu0
      %563 = vdwg.mxu0
      %v564 = vadd.f32 %v526, %v561
      %v565 = vld [vmem:[%s320 + $0x4] sm:$0x7]
      %v566 = vld [vmem:[%s365 + $0x50] sm:$0xf]
      %v567 = vld [vmem:[%s365 + $0x54] sm:$0xf]
      %v568 = vld [vmem:[%s365 + $0x58] sm:$0xf]
      %v569 = vld [vmem:[%s365 + $0x5c] sm:$0xf]
      %v571 = vunpack.c.l.b16 %v565
      %v572 = vpack.c.b16 %v571, %v533
      %v574 = vshrl.u32 %v572, 16
      %v576 = vrot.slane %v574, 2
      %v577 = vshll.u32 %v572, 16
      %v579 = vrot.slane %v577, 3
      %v580 = vor.u32 %v576, %v579
      %v585 = vunpack.c.l.b16 %v566
      %v586 = vunpack.c.l.b16 %v567
      %v587 = vunpack.c.l.b16 %v568
      %v588 = vunpack.c.l.b16 %v569
      %v589 = vpack.c.b16 %v586, %v585
      %v590 = vpack.c.b16 %v588, %v587
      %v594 = vsel %vm399, %v580, 0
      %596 = vmatpush.bf16.msra.mxu0 0
      %597 = vmatpush.bf16.msra.mxu0 0
      %598 = vmatpush.bf16.msra.mxu0 0
      %599 = vmatpush.bf16.msra.mxu0 0
      %600 = vmatpush.bf16.msra.mxu0 0
      %601 = vmatpush.bf16.msra.mxu0 0
      %602 = vmatpush.bf16.msra.mxu0 %v590
      %603 = vmatpush.bf16.msra.mxu0 %v589
      %604 = vmatmul.bf16.gmra.mxu0 %v594
      %v605 = vpop.f32.mrf.mxu0
      %v606 = vadd.f32 0.0, %v605
      %v607 = vpop.f32.mrf.mxu0
      %608 = vdwg.mxu0
      %v609 = vadd.f32 %v564, %v606
      %v610 = vld [vmem:[%s320] sm:$0x8]
      %v611 = vld [vmem:[%s365 + $0x60] sm:$0xf]
      %v612 = vld [vmem:[%s365 + $0x64] sm:$0xf]
      %v613 = vld [vmem:[%s365 + $0x68] sm:$0xf]
      %v614 = vld [vmem:[%s365 + $0x6c] sm:$0xf]
      %v616 = vunpack.c.l.b16 %v610
      %v617 = vpack.c.b16 %v571, %v616
      %v618 = vrot.slane %v617, 3
      %v623 = vunpack.c.l.b16 %v611
      %v624 = vunpack.c.l.b16 %v612
      %v625 = vunpack.c.l.b16 %v613
      %v626 = vunpack.c.l.b16 %v614
      %v627 = vpack.c.b16 %v624, %v623
      %v628 = vpack.c.b16 %v626, %v625
      %v632 = vsel %vm399, %v618, 0
      %634 = vmatpush.bf16.msra.mxu0 0
      %635 = vmatpush.bf16.msra.mxu0 0
      %636 = vmatpush.bf16.msra.mxu0 0
      %637 = vmatpush.bf16.msra.mxu0 0
      %638 = vmatpush.bf16.msra.mxu0 0
      %639 = vmatpush.bf16.msra.mxu0 0
      %640 = vmatpush.bf16.msra.mxu0 %v628
      %641 = vmatpush.bf16.msra.mxu0 %v627
      %642 = vmatmul.bf16.gmra.mxu0 %v632
      %v643 = vpop.f32.mrf.mxu0
      %v644 = vadd.f32 0.0, %v643
      %v645 = vpop.f32.mrf.mxu0
      %646 = vdwg.mxu0
      %v647 = vadd.f32 %v609, %v644
      %v648 = vld [vmem:[%s320 + $0x4] sm:$0xf]
      %v649 = vld [vmem:[%s365 + $0x70] sm:$0xf]
      %v650 = vld [vmem:[%s365 + $0x74] sm:$0xf]
      %v651 = vld [vmem:[%s365 + $0x78] sm:$0xf]
      %v652 = vld [vmem:[%s365 + $0x7c] sm:$0xf]
      %v654 = vunpack.c.l.b16 %v648
      %v655 = vpack.c.b16 %v654, %v616
      %v657 = vshrl.u32 %v655, 16
      %v659 = vrot.slane %v657, 3
      %v660 = vshll.u32 %v655, 16
      %v662 = vrot.slane %v660, 4
      %v663 = vor.u32 %v659, %v662
      %v668 = vunpack.c.l.b16 %v649
      %v669 = vunpack.c.l.b16 %v650
      %v670 = vunpack.c.l.b16 %v651
      %v671 = vunpack.c.l.b16 %v652
      %v672 = vpack.c.b16 %v669, %v668
      %v673 = vpack.c.b16 %v671, %v670
      %v677 = vsel %vm399, %v663, 0
      %679 = vmatpush.bf16.msra.mxu0 0
      %680 = vmatpush.bf16.msra.mxu0 0
      %681 = vmatpush.bf16.msra.mxu0 0
      %682 = vmatpush.bf16.msra.mxu0 0
      %683 = vmatpush.bf16.msra.mxu0 0
      %684 = vmatpush.bf16.msra.mxu0 0
      %685 = vmatpush.bf16.msra.mxu0 %v673
      %686 = vmatpush.bf16.msra.mxu0 %v672
      %687 = vmatmul.bf16.gmra.mxu0 %v677
      %v688 = vpop.f32.mrf.mxu0
      %v689 = vadd.f32 0.0, %v688
      %v690 = vpop.f32.mrf.mxu0
      %691 = vdwg.mxu0
      %v692 = vadd.f32 %v647, %v689
      %v693 = vld [vmem:[%s365 + $0x80] sm:$0xf]
      %v694 = vld [vmem:[%s365 + $0x84] sm:$0xf]
      %v695 = vld [vmem:[%s365 + $0x88] sm:$0xf]
      %v696 = vld [vmem:[%s365 + $0x8c] sm:$0xf]
      %v701 = vunpack.c.l.b16 %v693
      %v702 = vunpack.c.l.b16 %v694
      %v703 = vunpack.c.l.b16 %v695
      %v704 = vunpack.c.l.b16 %v696
      %v705 = vpack.c.b16 %v702, %v701
      %v706 = vpack.c.b16 %v704, %v703
      %v710 = vsel %vm399, %v648, 0
      %712 = vmatpush.bf16.msra.mxu0 0
      %713 = vmatpush.bf16.msra.mxu0 0
      %714 = vmatpush.bf16.msra.mxu0 0
      %715 = vmatpush.bf16.msra.mxu0 0
      %716 = vmatpush.bf16.msra.mxu0 0
      %717 = vmatpush.bf16.msra.mxu0 0
      %718 = vmatpush.bf16.msra.mxu0 %v706
      %719 = vmatpush.bf16.msra.mxu0 %v705
      %720 = vmatmul.bf16.gmra.mxu0 %v710
      %v721 = vpop.f32.mrf.mxu0
      %v722 = vadd.f32 0.0, %v721
      %v723 = vpop.f32.mrf.mxu0
      %724 = vdwg.mxu0
      %v725 = vadd.f32 %v692, %v722
      %v726 = vld [vmem:[%s320 + $0x4] sm:$0xf]
      %v727 = vld [vmem:[%s320 + $0x8] sm:$0x1]
      %v728 = vld [vmem:[%s365 + $0x90] sm:$0xf]
      %v729 = vld [vmem:[%s365 + $0x94] sm:$0xf]
      %v730 = vld [vmem:[%s365 + $0x98] sm:$0xf]
      %v731 = vld [vmem:[%s365 + $0x9c] sm:$0xf]
      %v734 = vunpack.c.l.b16 %v726
      %v735 = vunpack.c.l.b16 %v727
      %v736 = vpack.c.b16 %v735, %v734
      %v738 = vshrl.u32 %v736, 16
      %v740 = vshll.u32 %v736, 16
      %v742 = vrot.slane %v740, 1
      %v743 = vor.u32 %v738, %v742
      %v748 = vunpack.c.l.b16 %v728
      %v749 = vunpack.c.l.b16 %v729
      %v750 = vunpack.c.l.b16 %v730
      %v751 = vunpack.c.l.b16 %v731
      %v752 = vpack.c.b16 %v749, %v748
      %v753 = vpack.c.b16 %v751, %v750
      %v757 = vsel %vm399, %v743, 0
      %759 = vmatpush.bf16.msra.mxu0 0
      %760 = vmatpush.bf16.msra.mxu0 0
      %761 = vmatpush.bf16.msra.mxu0 0
      %762 = vmatpush.bf16.msra.mxu0 0
      %763 = vmatpush.bf16.msra.mxu0 0
      %764 = vmatpush.bf16.msra.mxu0 0
      %765 = vmatpush.bf16.msra.mxu0 %v753
      %766 = vmatpush.bf16.msra.mxu0 %v752
      %767 = vmatmul.bf16.gmra.mxu0 %v757
      %v768 = vpop.f32.mrf.mxu0
      %v769 = vadd.f32 0.0, %v768
      %v770 = vpop.f32.mrf.mxu0
      %771 = vdwg.mxu0
      %v772 = vadd.f32 %v725, %v769
      %v773 = vld [vmem:[%s320 + $0x4] sm:$0xe]
      %v774 = vld [vmem:[%s365 + $0xa0] sm:$0xf]
      %v775 = vld [vmem:[%s365 + $0xa4] sm:$0xf]
      %v776 = vld [vmem:[%s365 + $0xa8] sm:$0xf]
      %v777 = vld [vmem:[%s365 + $0xac] sm:$0xf]
      %v779 = vunpack.c.l.b16 %v773
      %v780 = vpack.c.b16 %v735, %v779
      %v781 = vrot.slane %v780, 1
      %v786 = vunpack.c.l.b16 %v774
      %v787 = vunpack.c.l.b16 %v775
      %v788 = vunpack.c.l.b16 %v776
      %v789 = vunpack.c.l.b16 %v777
      %v790 = vpack.c.b16 %v787, %v786
      %v791 = vpack.c.b16 %v789, %v788
      %v795 = vsel %vm399, %v781, 0
      %797 = vmatpush.bf16.msra.mxu0 0
      %798 = vmatpush.bf16.msra.mxu0 0
      %799 = vmatpush.bf16.msra.mxu0 0
      %800 = vmatpush.bf16.msra.mxu0 0
      %801 = vmatpush.bf16.msra.mxu0 0
      %802 = vmatpush.bf16.msra.mxu0 0
      %803 = vmatpush.bf16.msra.mxu0 %v791
      %804 = vmatpush.bf16.msra.mxu0 %v790
      %805 = vmatmul.bf16.gmra.mxu0 %v795
      %v806 = vpop.f32.mrf.mxu0
      %v807 = vadd.f32 0.0, %v806
      %v808 = vpop.f32.mrf.mxu0
      %809 = vdwg.mxu0
      %v810 = vadd.f32 %v772, %v807
      %v811 = vld [vmem:[%s320 + $0x8] sm:$0x3]
      %v812 = vld [vmem:[%s365 + $0xb0] sm:$0xf]
      %v813 = vld [vmem:[%s365 + $0xb4] sm:$0xf]
      %v814 = vld [vmem:[%s365 + $0xb8] sm:$0xf]
      %v815 = vld [vmem:[%s365 + $0xbc] sm:$0xf]
      %v817 = vunpack.c.l.b16 %v811
      %v818 = vpack.c.b16 %v817, %v779
      %v820 = vshrl.u32 %v818, 16
      %v822 = vrot.slane %v820, 1
      %v823 = vshll.u32 %v818, 16
      %v825 = vrot.slane %v823, 2
      %v826 = vor.u32 %v822, %v825
      %v831 = vunpack.c.l.b16 %v812
      %v832 = vunpack.c.l.b16 %v813
      %v833 = vunpack.c.l.b16 %v814
      %v834 = vunpack.c.l.b16 %v815
      %v835 = vpack.c.b16 %v832, %v831
      %v836 = vpack.c.b16 %v834, %v833
      %v840 = vsel %vm399, %v826, 0
      %842 = vmatpush.bf16.msra.mxu0 0
      %843 = vmatpush.bf16.msra.mxu0 0
      %844 = vmatpush.bf16.msra.mxu0 0
      %845 = vmatpush.bf16.msra.mxu0 0
      %846 = vmatpush.bf16.msra.mxu0 0
      %847 = vmatpush.bf16.msra.mxu0 0
      %848 = vmatpush.bf16.msra.mxu0 %v836
      %849 = vmatpush.bf16.msra.mxu0 %v835
      %850 = vmatmul.bf16.gmra.mxu0 %v840
      %v851 = vpop.f32.mrf.mxu0
      %v852 = vadd.f32 0.0, %v851
      %v853 = vpop.f32.mrf.mxu0
      %854 = vdwg.mxu0
      %v855 = vadd.f32 %v810, %v852
      %v856 = vld [vmem:[%s320 + $0x4] sm:$0xc]
      %v857 = vld [vmem:[%s365 + $0xc0] sm:$0xf]
      %v858 = vld [vmem:[%s365 + $0xc4] sm:$0xf]
      %v859 = vld [vmem:[%s365 + $0xc8] sm:$0xf]
      %v860 = vld [vmem:[%s365 + $0xcc] sm:$0xf]
      %v862 = vunpack.c.l.b16 %v856
      %v863 = vpack.c.b16 %v817, %v862
      %v864 = vrot.slane %v863, 2
      %v869 = vunpack.c.l.b16 %v857
      %v870 = vunpack.c.l.b16 %v858
      %v871 = vunpack.c.l.b16 %v859
      %v872 = vunpack.c.l.b16 %v860
      %v873 = vpack.c.b16 %v870, %v869
      %v874 = vpack.c.b16 %v872, %v871
      %v878 = vsel %vm399, %v864, 0
      %880 = vmatpush.bf16.msra.mxu0 0
      %881 = vmatpush.bf16.msra.mxu0 0
      %882 = vmatpush.bf16.msra.mxu0 0
      %883 = vmatpush.bf16.msra.mxu0 0
      %884 = vmatpush.bf16.msra.mxu0 0
      %885 = vmatpush.bf16.msra.mxu0 0
      %886 = vmatpush.bf16.msra.mxu0 %v874
      %887 = vmatpush.bf16.msra.mxu0 %v873
      %888 = vmatmul.bf16.gmra.mxu0 %v878
      %v889 = vpop.f32.mrf.mxu0
      %v890 = vadd.f32 0.0, %v889
      %v891 = vpop.f32.mrf.mxu0
      %892 = vdwg.mxu0
      %v893 = vadd.f32 %v855, %v890
      %v894 = vld [vmem:[%s320 + $0x8] sm:$0x7]
      %v895 = vld [vmem:[%s365 + $0xd0] sm:$0xf]
      %v896 = vld [vmem:[%s365 + $0xd4] sm:$0xf]
      %v897 = vld [vmem:[%s365 + $0xd8] sm:$0xf]
      %v898 = vld [vmem:[%s365 + $0xdc] sm:$0xf]
      %v900 = vunpack.c.l.b16 %v894
      %v901 = vpack.c.b16 %v900, %v862
      %v903 = vshrl.u32 %v901, 16
      %v905 = vrot.slane %v903, 2
      %v906 = vshll.u32 %v901, 16
      %v908 = vrot.slane %v906, 3
      %v909 = vor.u32 %v905, %v908
      %v914 = vunpack.c.l.b16 %v895
      %v915 = vunpack.c.l.b16 %v896
      %v916 = vunpack.c.l.b16 %v897
      %v917 = vunpack.c.l.b16 %v898
      %v918 = vpack.c.b16 %v915, %v914
      %v919 = vpack.c.b16 %v917, %v916
      %v923 = vsel %vm399, %v909, 0
      %925 = vmatpush.bf16.msra.mxu0 0
      %926 = vmatpush.bf16.msra.mxu0 0
      %927 = vmatpush.bf16.msra.mxu0 0
      %928 = vmatpush.bf16.msra.mxu0 0
      %929 = vmatpush.bf16.msra.mxu0 0
      %930 = vmatpush.bf16.msra.mxu0 0
      %931 = vmatpush.bf16.msra.mxu0 %v919
      %932 = vmatpush.bf16.msra.mxu0 %v918
      %933 = vmatmul.bf16.gmra.mxu0 %v923
      %v934 = vpop.f32.mrf.mxu0
      %v935 = vadd.f32 0.0, %v934
      %v936 = vpop.f32.mrf.mxu0
      %937 = vdwg.mxu0
      %v938 = vadd.f32 %v893, %v935
      %v939 = vld [vmem:[%s320 + $0x4] sm:$0x8]
      %v940 = vld [vmem:[%s365 + $0xe0] sm:$0xf]
      %v941 = vld [vmem:[%s365 + $0xe4] sm:$0xf]
      %v942 = vld [vmem:[%s365 + $0xe8] sm:$0xf]
      %v943 = vld [vmem:[%s365 + $0xec] sm:$0xf]
      %v945 = vunpack.c.l.b16 %v939
      %v946 = vpack.c.b16 %v900, %v945
      %v947 = vrot.slane %v946, 3
      %v952 = vunpack.c.l.b16 %v940
      %v953 = vunpack.c.l.b16 %v941
      %v954 = vunpack.c.l.b16 %v942
      %v955 = vunpack.c.l.b16 %v943
      %v956 = vpack.c.b16 %v953, %v952
      %v957 = vpack.c.b16 %v955, %v954
      %v961 = vsel %vm399, %v947, 0
      %963 = vmatpush.bf16.msra.mxu0 0
      %964 = vmatpush.bf16.msra.mxu0 0
      %965 = vmatpush.bf16.msra.mxu0 0
      %966 = vmatpush.bf16.msra.mxu0 0
      %967 = vmatpush.bf16.msra.mxu0 0
      %968 = vmatpush.bf16.msra.mxu0 0
      %969 = vmatpush.bf16.msra.mxu0 %v957
      %970 = vmatpush.bf16.msra.mxu0 %v956
      %971 = vmatmul.bf16.gmra.mxu0 %v961
      %v972 = vpop.f32.mrf.mxu0
      %v973 = vadd.f32 0.0, %v972
      %v974 = vpop.f32.mrf.mxu0
      %975 = vdwg.mxu0
      %v976 = vadd.f32 %v938, %v973
      %v977 = vld [vmem:[%s320 + $0x8] sm:$0xf]
      %v978 = vld [vmem:[%s365 + $0xf0] sm:$0xf]
      %v979 = vld [vmem:[%s365 + $0xf4] sm:$0xf]
      %v980 = vld [vmem:[%s365 + $0xf8] sm:$0xf]
      %v981 = vld [vmem:[%s365 + $0xfc] sm:$0xf]
      %v983 = vunpack.c.l.b16 %v977
      %v984 = vpack.c.b16 %v983, %v945
      %v986 = vshrl.u32 %v984, 16
      %v988 = vrot.slane %v986, 3
      %v989 = vshll.u32 %v984, 16
      %v991 = vrot.slane %v989, 4
      %v992 = vor.u32 %v988, %v991
      %v997 = vunpack.c.l.b16 %v978
      %v998 = vunpack.c.l.b16 %v979
      %v999 = vunpack.c.l.b16 %v980
      %v1000 = vunpack.c.l.b16 %v981
      %v1001 = vpack.c.b16 %v998, %v997
      %v1002 = vpack.c.b16 %v1000, %v999
      %v1006 = vsel %vm399, %v992, 0
      %1008 = vmatpush.bf16.msra.mxu0 0
      %1009 = vmatpush.bf16.msra.mxu0 0
      %1010 = vmatpush.bf16.msra.mxu0 0
      %1011 = vmatpush.bf16.msra.mxu0 0
      %1012 = vmatpush.bf16.msra.mxu0 0
      %1013 = vmatpush.bf16.msra.mxu0 0
      %1014 = vmatpush.bf16.msra.mxu0 %v1002
      %1015 = vmatpush.bf16.msra.mxu0 %v1001
      %1016 = vmatmul.bf16.gmra.mxu0 %v1006
      %v1017 = vpop.f32.mrf.mxu0
      %v1018 = vadd.f32 0.0, %v1017
      %v1019 = vpop.f32.mrf.mxu0
      %1020 = vdwg.mxu0
      %v1021 = vadd.f32 %v976, %v1018
      %v1022 = vld [vmem:[#allocation2] sm:$0xff]
      %v1023 = vadd.f32 %v1022, %v1021
      %1024 = vst [vmem:[#allocation2] sm:$0xff] %v1023
      %p1025 = scmp.eq.s32.totalorder %s26, 3
      // Predicated region
      $region37: #{residual_block_3d.5} parent=31 // pred_check
        %p1026 = pneg %p1025
      $region38: #{residual_block_3d.5} parent=31 // pred_check_branch
        %1028 = sbr.rel (%p1026) target = $region40
      $region39: #{residual_block_3d.5} parent=31 // pred_region
        %v1029 = vld [vmem:[#allocation2] sm:$0xff]
        %v1030 = vpack.c.bf16 %v1029, %v1029
        %1031 = vst [vmem:[%s335] sm:$0xf] %v1030
        %v1032 = vld [vmem:[%s0] sm:$0xff]
        %1034 = vset.pattern.permute.xlu0 0
        %1035 = vperm.xlu0 %1034, %v1032
        %v1036 = vpop.permute.xlu0 %1035
        %v1038 = vmul.f32 %v1029, %v1036
        %v1039 = vrot.slane %v1038, 4
        %v1040 = vadd.f32 %v1038, %v1039
        %v1041 = vrot.slane %v1040, 2
        %v1042 = vadd.f32 %v1040, %v1041
        %v1043 = vrot.slane %v1042, 1
        %v1044 = vadd.f32 %v1042, %v1043
        %v1045 = vmul.f32 %v1038, %v1029
        %v1046 = vrot.slane %v1045, 4
        %v1047 = vadd.f32 %v1045, %v1046
        %v1048 = vrot.slane %v1047, 2
        %v1049 = vadd.f32 %v1047, %v1048
        %v1050 = vrot.slane %v1049, 1
        %v1051 = vadd.f32 %v1049, %v1050
        %1052 = vst [vmem:[%s345] sm:$0xff] %v1044
        %1053 = vst [vmem:[%s355] sm:$0xff] %v1051
      $region40: #{residual_block_3d.5} parent=31 // pred_fallthru
        _
      %p1054 = scmp.lt.s32.totalorder %s23, 3
      %s1055 = scalar_select %p1054, %s23, 3
      %p1056 = scmp.lt.s32.totalorder %s24, 0
      %s1057 = scalar_select %p1056, %s24, 0
      %p1058 = scmp.lt.s32.totalorder %s25, 0
      %s1059 = scalar_select %p1058, %s25, 0
      %s1060 = sadd.s32 %s1059, %s1057
      %s1061 = sadd.s32 %s1060, %s1055
      %s1062 = smul.addr %s1061, 4
      %s1063 = scalar_lea.vmem %s3, %s1062
      %p1064 = scmp.lt.s32.totalorder %s23, 3
      %s1065 = scalar_select %p1064, %s23, 3
      %p1066 = scmp.lt.s32.totalorder %s24, 0
      %s1067 = scalar_select %p1066, %s24, 0
      %p1068 = scmp.lt.s32.totalorder %s25, 0
      %s1069 = scalar_select %p1068, %s25, 0
      %s1070 = sadd.s32 %s1069, %s1067
      %s1071 = sadd.s32 %s1070, %s1065
      %s1072 = smul.addr %s1071, 8
      %s1073 = scalar_lea.vmem %s4, %s1072
      %p1074 = scmp.lt.s32.totalorder %s23, 3
      %s1075 = scalar_select %p1074, %s23, 3
      %p1076 = scmp.lt.s32.totalorder %s24, 0
      %s1077 = scalar_select %p1076, %s24, 0
      %p1078 = scmp.lt.s32.totalorder %s25, 0
      %s1079 = scalar_select %p1078, %s25, 0
      %s1080 = sadd.s32 %s1079, %s1077
      %s1081 = sadd.s32 %s1080, %s1075
      %s1082 = smul.addr %s1081, 8
      %s1083 = scalar_lea.vmem %s5, %s1082
      // Predicated region
      $region41: #{residual_block_3d.5} parent=31 // pred_check
        %p1084 = pneg %p142
      $region42: #{residual_block_3d.5} parent=31 // pred_check_branch
        %1086 = sbr.rel (%p1084) target = $region44
      $region43: #{residual_block_3d.5} parent=31 // pred_region
        _
      $region44: #{residual_block_3d.5} parent=31 // pred_fallthru
        _
      // Predicated region
      $region45: #{residual_block_3d.5} parent=31 // pred_check
        %p1087 = pneg %p172
      $region46: #{residual_block_3d.5} parent=31 // pred_check_branch
        %1089 = sbr.rel (%p1087) target = $region48
      $region47: #{residual_block_3d.5} parent=31 // pred_region
        _
      $region48: #{residual_block_3d.5} parent=31 // pred_fallthru
        _
      // Predicated region
      $region49: #{residual_block_3d.5} parent=31 // pred_check
        %p1090 = pneg %p202
      $region50: #{residual_block_3d.5} parent=31 // pred_check_branch
        %1092 = sbr.rel (%p1090) target = $region52
      $region51: #{residual_block_3d.5} parent=31 // pred_region
        _
      $region52: #{residual_block_3d.5} parent=31 // pred_fallthru
        _
    $region32: #{residual_block_3d.5} parent=5 // pred_fallthru
      _
    %p1093 = scmp.le.s32.totalorder 2, %s12
    // Predicated region
    $region53: #{residual_block_3d.5} parent=5 // pred_check
      %p1094 = pneg %p1093
    $region54: #{residual_block_3d.5} parent=5 // pred_check_branch
      %1096 = sbr.rel (%p1094) target = $region56
    $region55: #{residual_block_3d.5} parent=5 // pred_region
      %s1097 = ssub.s32 %s12, 2
      // Predicated region
      $region57: #{residual_block_3d.5} parent=55 // pred_check
        %p1098 = pneg %p148
      $region58: #{residual_block_3d.5} parent=55 // pred_check_branch
        %1100 = sbr.rel (%p1098) target = $region60
      $region59: #{residual_block_3d.5} parent=55 // pred_region
        %p1101 = scmp.lt.s32.totalorder %s27, 3
        %s1102 = scalar_select %p1101, %s27, 3
        %p1103 = scmp.lt.s32.totalorder %s28, 0
        %s1104 = scalar_select %p1103, %s28, 0
        %p1105 = scmp.lt.s32.totalorder %s29, 0
        %s1106 = scalar_select %p1105, %s29, 0
        %s1107 = sadd.s32 %s1106, %s1104
        %s1108 = sadd.s32 %s1107, %s1102
        %s1109 = smul.addr %s1108, 4
        %s1110 = scalar_lea.vmem %s3, %s1109
      $region60: #{residual_block_3d.5} parent=55 // pred_fallthru
        _
      // Predicated region
      $region61: #{residual_block_3d.5} parent=55 // pred_check
        %p1111 = pneg %p178
      $region62: #{residual_block_3d.5} parent=55 // pred_check_branch
        %1113 = sbr.rel (%p1111) target = $region64
      $region63: #{residual_block_3d.5} parent=55 // pred_region
        %p1114 = scmp.lt.s32.totalorder %s27, 3
        %s1115 = scalar_select %p1114, %s27, 3
        %p1116 = scmp.lt.s32.totalorder %s28, 0
        %s1117 = scalar_select %p1116, %s28, 0
        %p1118 = scmp.lt.s32.totalorder %s29, 0
        %s1119 = scalar_select %p1118, %s29, 0
        %s1120 = sadd.s32 %s1119, %s1117
        %s1121 = sadd.s32 %s1120, %s1115
        %s1122 = smul.addr %s1121, 8
        %s1123 = scalar_lea.vmem %s4, %s1122
      $region64: #{residual_block_3d.5} parent=55 // pred_fallthru
        _
      // Predicated region
      $region65: #{residual_block_3d.5} parent=55 // pred_check
        %p1124 = pneg %p208
      $region66: #{residual_block_3d.5} parent=55 // pred_check_branch
        %1126 = sbr.rel (%p1124) target = $region68
      $region67: #{residual_block_3d.5} parent=55 // pred_region
        %p1127 = scmp.lt.s32.totalorder %s27, 3
        %s1128 = scalar_select %p1127, %s27, 3
        %p1129 = scmp.lt.s32.totalorder %s28, 0
        %s1130 = scalar_select %p1129, %s28, 0
        %p1131 = scmp.lt.s32.totalorder %s29, 0
        %s1132 = scalar_select %p1131, %s29, 0
        %s1133 = sadd.s32 %s1132, %s1130
        %s1134 = sadd.s32 %s1133, %s1128
        %s1135 = smul.addr %s1134, 8
        %s1136 = scalar_lea.vmem %s5, %s1135
      $region68: #{residual_block_3d.5} parent=55 // pred_fallthru
        _
    $region56: #{residual_block_3d.5} parent=5 // pred_fallthru
      _
  $region6: #{residual_block_3d.5} parent=0 // loop_footer
    %s16 = sadd.s32 1, %s12
  $region7: #{residual_block_3d.5} parent=0 // loop_footer_branch
    %11 = sbr.rel target = $region3
  $region8: #{residual_block_3d.5} parent=0 // loop_exit
    _

// kernel: residual_block_3d.7
$region0: #{residual_block_3d.7}
  #allocation0 [shape = 'u32[]', space=smem, size = 0x4, offset = 0x4, fixed_abs, tag = 'smem constant byte address 0x4 - core index']
  #allocation1 [shape = 'u32[72,128]{1,0:T(1,128)}', space=vmem, size = 0x9000, scoped, tag = 'internal scratch']
  #allocation2 [shape = 'f32[8,128]{1,0:T(8,128)}', space=vmem, size = 0x1000, scoped, tag = 'scratch operand']
  %s0 = inlined_call_operand.vmem [shape: f32[8,1], index: 0, kind: input, shape index: {}]
  %s1 = inlined_call_operand.vmem [shape: bf16[4,2,11,64], index: 1, kind: input, shape index: {}]
  %s2 = inlined_call_operand.vmem [shape: bf16[2,256,128], index: 2, kind: input, shape index: {}]
  %s3 = inlined_call_operand.vmem [shape: bf16[4,1,8,128], index: 3, kind: output, shape index: {0}]
  %s4 = inlined_call_operand.vmem [shape: f32[4,1,8,128], index: 4, kind: output, shape index: {1}]
  %s5 = inlined_call_operand.vmem [shape: f32[4,1,8,128], index: 5, kind: output, shape index: {2}]
  %6 = xla_tuple %s3, %s4, %s5
  %s7 = sld [smem:[#allocation0]]
  $region69: #{residual_block_3d.7} parent=0
    _
  %s9 = ssub.s32 1, %s7
  %s10 = scalar_select 0, %s9, %s7
  loop: start=0, step=1, limit=10
  $region2: #{residual_block_3d.7} parent=0 // loop_pre_header
    _
  $region3: #{residual_block_3d.7} parent=0 // loop_header
    %s12 = sphi 0, %s16
    %p13 = scmp.ge.s32.totalorder %s12, 10
    %s19 = sphi 0, %s45
    %s20 = sphi 0, %s41
    %s21 = sphi 0, %s37
    %s22 = sphi 0, %s33
    %s23 = sphi 0, %s19
    %s24 = sphi 0, %s20
    %s25 = sphi 0, %s21
    %s26 = sphi 0, %s22
    %s27 = sphi 0, %s23
    %s28 = sphi 0, %s24
    %s29 = sphi 0, %s25
    %s30 = sphi 0, %s26
    %s46 = sphi 0, %s46
    %s48 = sphi 0, %s46
    %s49 = sphi 0, %s48
    %s63 = sphi 0, %s49
    %s73 = sphi 0, %s75
    %s76 = sphi 0, %s73
    %s77 = sphi 0, %s76
    %s93 = sphi 0, %s77
    %s99 = sphi 0, %s101
    %s102 = sphi 0, %s99
    %s103 = sphi 0, %s102
    %s119 = sphi 0, %s103
    %s129 = sphi 0, %s131
    %s132 = sphi 0, %s129
    %s133 = sphi 0, %s132
    %s149 = sphi 0, %s133
    %s159 = sphi 0, %s161
    %s162 = sphi 0, %s159
    %s163 = sphi 0, %s162
    %s179 = sphi 0, %s163
    %s189 = sphi 0, %s191
    %s192 = sphi 0, %s189
    %s193 = sphi 0, %s192
    %s209 = sphi 0, %s193
  $region4: #{residual_block_3d.7} parent=0 // loop_header_branch
    %15 = sbr.rel (%p13) target = $region8
  $region5: #{residual_block_3d.7} parent=0 // loop_body
    %s17 = ssub.s32 %s12, 1
    %s18 = ssub.s32 %s12, 2
    %s31 = sadd.s32 1, %s22
    %p32 = scmp.ge.s32.totalorder %s31, 2
    %s33 = scalar_select %p32, 0, %s31
    %s34 = sadd.s32 1, %s21
    %s35 = scalar_select %p32, %s34, %s21
    %p36 = scmp.ge.s32.totalorder %s35, 1
    %s37 = scalar_select %p36, 0, %s35
    %s38 = sadd.s32 1, %s20
    %s39 = scalar_select %p36, %s38, %s20
    %p40 = scmp.ge.s32.totalorder %s39, 1
    %s41 = scalar_select %p40, 0, %s39
    %s42 = sadd.s32 1, %s19
    %s43 = scalar_select %p40, %s42, %s19
    %p44 = scmp.ge.s32.totalorder %s43, 4
    %s45 = scalar_select %p44, 0, %s43
    %s47 = sadd.s32 %s46, 1
    %p50 = scmp.eq.s32.totalorder %s12, 7
    %p51 = scmp.ne.s32.totalorder %s46, %s48
    %p52 = scmp.eq.s32.totalorder %s12, 0
    %p53 = por %p51, %p52
    %p54 = scmp.ne.s32.totalorder %s46, %s48
    %p55 = scmp.eq.s32.totalorder %s17, 7
    %p56 = por %p54, %p55
    %p57 = scmp.ne.s32.totalorder %s48, %s49
    %p58 = scmp.eq.s32.totalorder %s17, 0
    %p59 = por %p57, %p58
    %p60 = scmp.ne.s32.totalorder %s48, %s49
    %p61 = scmp.eq.s32.totalorder %s18, 7
    %p62 = por %p60, %p61
    %p64 = scmp.ne.s32.totalorder %s49, %s63
    %p65 = scmp.eq.s32.totalorder %s18, 0
    %p66 = por %p64, %p65
    %s67 = sadd.s32 %s20, %s22
    %s68 = sadd.s32 %s41, %s33
    %s69 = ssub.s32 %s19, %s45
    %s70 = ssub.s32 %s67, %s68
    %s71 = sor.u32 %s69, %s70
    %p72 = scmp.eq.s32.totalorder %s71, 0
    %s74 = sadd.s32 %s73, 1
    %s75 = scalar_select %p72, %s73, %s74
    %p78 = pneg %p72
    %p79 = scmp.eq.s32.totalorder %s12, 7
    %p80 = por %p78, %p79
    %p81 = scmp.ne.s32.totalorder %s73, %s76
    %p82 = scmp.eq.s32.totalorder %s12, 0
    %p83 = por %p81, %p82
    %p84 = scmp.ne.s32.totalorder %s73, %s76
    %p85 = scmp.eq.s32.totalorder %s17, 7
    %p86 = por %p84, %p85
    %p87 = scmp.ne.s32.totalorder %s76, %s77
    %p88 = scmp.eq.s32.totalorder %s17, 0
    %p89 = por %p87, %p88
    %p90 = scmp.ne.s32.totalorder %s76, %s77
    %p91 = scmp.eq.s32.totalorder %s18, 7
    %p92 = por %p90, %p91
    %p94 = scmp.ne.s32.totalorder %s77, %s93
    %p95 = scmp.eq.s32.totalorder %s18, 0
    %p96 = por %p94, %p95
    %s97 = ssub.s32 %s21, %s37
    %p98 = scmp.eq.s32.totalorder %s97, 0
    %s100 = sadd.s32 %s99, 1
    %s101 = scalar_select %p98, %s99, %s100
    %p104 = pneg %p98
    %p105 = scmp.eq.s32.totalorder %s12, 7
    %p106 = por %p104, %p105
    %p107 = scmp.ne.s32.totalorder %s99, %s102
    %p108 = scmp.eq.s32.totalorder %s12, 0
    %p109 = por %p107, %p108
    %p110 = scmp.ne.s32.totalorder %s99, %s102
    %p111 = scmp.eq.s32.totalorder %s17, 7
    %p112 = por %p110, %p111
    %p113 = scmp.ne.s32.totalorder %s102, %s103
    %p114 = scmp.eq.s32.totalorder %s17, 0
    %p115 = por %p113, %p114
    %p116 = scmp.ne.s32.totalorder %s102, %s103
    %p117 = scmp.eq.s32.totalorder %s18, 7
    %p118 = por %p116, %p117
    %p120 = scmp.ne.s32.totalorder %s103, %s119
    %p121 = scmp.eq.s32.totalorder %s18, 0
    %p122 = por %p120, %p121
    %s123 = ssub.s32 %s19, %s45
    %s124 = ssub.s32 %s20, %s41
    %s125 = sor.u32 %s123, %s124
    %s126 = ssub.s32 %s21, %s37
    %s127 = sor.u32 %s125, %s126
    %p128 = scmp.eq.s32.totalorder %s127, 0
    %s130 = sadd.s32 %s129, 1
    %s131 = scalar_select %p128, %s129, %s130
    %p134 = pneg %p128
    %p135 = scmp.eq.s32.totalorder %s12, 7
    %p136 = por %p134, %p135
    %p137 = scmp.ne.s32.totalorder %s129, %s132
    %p138 = scmp.eq.s32.totalorder %s12, 0
    %p139 = por %p137, %p138
    %p140 = scmp.ne.s32.totalorder %s129, %s132
    %p141 = scmp.eq.s32.totalorder %s17, 7
    %p142 = por %p140, %p141
    %p143 = scmp.ne.s32.totalorder %s132, %s133
    %p144 = scmp.eq.s32.totalorder %s17, 0
    %p145 = por %p143, %p144
    %p146 = scmp.ne.s32.totalorder %s132, %s133
    %p147 = scmp.eq.s32.totalorder %s18, 7
    %p148 = por %p146, %p147
    %p150 = scmp.ne.s32.totalorder %s133, %s149
    %p151 = scmp.eq.s32.totalorder %s18, 0
    %p152 = por %p150, %p151
    %s153 = ssub.s32 %s19, %s45
    %s154 = ssub.s32 %s20, %s41
    %s155 = sor.u32 %s153, %s154
    %s156 = ssub.s32 %s21, %s37
    %s157 = sor.u32 %s155, %s156
    %p158 = scmp.eq.s32.totalorder %s157, 0
    %s160 = sadd.s32 %s159, 1
    %s161 = scalar_select %p158, %s159, %s160
    %p164 = pneg %p158
    %p165 = scmp.eq.s32.totalorder %s12, 7
    %p166 = por %p164, %p165
    %p167 = scmp.ne.s32.totalorder %s159, %s162
    %p168 = scmp.eq.s32.totalorder %s12, 0
    %p169 = por %p167, %p168
    %p170 = scmp.ne.s32.totalorder %s159, %s162
    %p171 = scmp.eq.s32.totalorder %s17, 7
    %p172 = por %p170, %p171
    %p173 = scmp.ne.s32.totalorder %s162, %s163
    %p174 = scmp.eq.s32.totalorder %s17, 0
    %p175 = por %p173, %p174
    %p176 = scmp.ne.s32.totalorder %s162, %s163
    %p177 = scmp.eq.s32.totalorder %s18, 7
    %p178 = por %p176, %p177
    %p180 = scmp.ne.s32.totalorder %s163, %s179
    %p181 = scmp.eq.s32.totalorder %s18, 0
    %p182 = por %p180, %p181
    %s183 = ssub.s32 %s19, %s45
    %s184 = ssub.s32 %s20, %s41
    %s185 = sor.u32 %s183, %s184
    %s186 = ssub.s32 %s21, %s37
    %s187 = sor.u32 %s185, %s186
    %p188 = scmp.eq.s32.totalorder %s187, 0
    %s190 = sadd.s32 %s189, 1
    %s191 = scalar_select %p188, %s189, %s190
    %p194 = pneg %p188
    %p195 = scmp.eq.s32.totalorder %s12, 7
    %p196 = por %p194, %p195
    %p197 = scmp.ne.s32.totalorder %s189, %s192
    %p198 = scmp.eq.s32.totalorder %s12, 0
    %p199 = por %p197, %p198
    %p200 = scmp.ne.s32.totalorder %s189, %s192
    %p201 = scmp.eq.s32.totalorder %s17, 7
    %p202 = por %p200, %p201
    %p203 = scmp.ne.s32.totalorder %s192, %s193
    %p204 = scmp.eq.s32.totalorder %s17, 0
    %p205 = por %p203, %p204
    %p206 = scmp.ne.s32.totalorder %s192, %s193
    %p207 = scmp.eq.s32.totalorder %s18, 7
    %p208 = por %p206, %p207
    %p210 = scmp.ne.s32.totalorder %s193, %s209
    %p211 = scmp.eq.s32.totalorder %s18, 0
    %p212 = por %p210, %p211
    %p213 = scmp.le.s32.totalorder 1, %s12
    %p214 = scmp.lt.s32.totalorder %s12, 9
    %p215 = pnand %p213, %p214
    %p216 = pneg %p215
    // Predicated region
    $region9: #{residual_block_3d.7} parent=5 // pred_check
      _
    $region10: #{residual_block_3d.7} parent=5 // pred_check_branch
      %218 = sbr.rel (%p215) target = $region12
    $region11: #{residual_block_3d.7} parent=5 // pred_region
      %s219 = ssub.s32 %s12, 1
      // Predicated region
      $region13: #{residual_block_3d.7} parent=11 // pred_check
        %p220 = pneg %p59
      $region14: #{residual_block_3d.7} parent=11 // pred_check_branch
        %222 = sbr.rel (%p220) target = $region16
      $region15: #{residual_block_3d.7} parent=11 // pred_region
        _
      $region16: #{residual_block_3d.7} parent=11 // pred_fallthru
        _
      // Predicated region
      $region17: #{residual_block_3d.7} parent=11 // pred_check
        %p223 = pneg %p115
      $region18: #{residual_block_3d.7} parent=11 // pred_check_branch
        %225 = sbr.rel (%p223) target = $region20
      $region19: #{residual_block_3d.7} parent=11 // pred_region
        %p226 = scmp.lt.s32.totalorder %s25, 0
        %s227 = scalar_select %p226, %s25, 0
        %s228 = smul.addr %s227, 4
        %s229 = scalar_lea.vmem %s2, %s228
      $region20: #{residual_block_3d.7} parent=11 // pred_fallthru
        _
    $region12: #{residual_block_3d.7} parent=5 // pred_fallthru
      _
    %p230 = scmp.lt.s32.totalorder %s12, 8
    // Predicated region
    $region21: #{residual_block_3d.7} parent=5 // pred_check
      %p231 = pneg %p230
    $region22: #{residual_block_3d.7} parent=5 // pred_check_branch
      %233 = sbr.rel (%p231) target = $region24
    $region23: #{residual_block_3d.7} parent=5 // pred_region
      // Predicated region
      $region25: #{residual_block_3d.7} parent=23 // pred_check
        %p234 = pneg %p83
      $region26: #{residual_block_3d.7} parent=23 // pred_check_branch
        %236 = sbr.rel (%p234) target = $region28
      $region27: #{residual_block_3d.7} parent=23 // pred_region
        %s237 = sadd.s32 %s20, %s22
        %p238 = scmp.lt.s32.totalorder %s19, 3
        %s239 = scalar_select %p238, %s19, 3
        %p240 = scmp.lt.s32.totalorder %s237, 1
        %s241 = scalar_select %p240, %s237, 1
        %s242 = smul.addr %s241, 2
        %s243 = smul.addr %s239, 4
        %s244 = sadd.s32 %s242, %s243
        %s245 = smul.addr %s244, 4
        %s246 = scalar_lea.vmem %s1, %s245
        %s247 = sadd.s32 %s20, %s22
      $region28: #{residual_block_3d.7} parent=23 // pred_fallthru
        _
    $region24: #{residual_block_3d.7} parent=5 // pred_fallthru
      _
    %p248 = scmp.le.s32.totalorder 1, %s12
    %p249 = scmp.lt.s32.totalorder %s12, 9
    %p250 = pnand %p248, %p249
    %p251 = pneg %p250
    // Predicated region
    $region29: #{residual_block_3d.7} parent=5 // pred_check
      _
    $region30: #{residual_block_3d.7} parent=5 // pred_check_branch
      %253 = sbr.rel (%p250) target = $region32
    $region31: #{residual_block_3d.7} parent=5 // pred_region
      %s254 = ssub.s32 %s12, 1
      %p255 = pneg %p59
      %p256 = pneg %p56
      %s257 = sadd.s32 %s24, %s26
      %p258 = scmp.lt.s32.totalorder %s23, 3
      %s259 = scalar_select %p258, %s23, 3
      %p260 = scmp.lt.s32.totalorder %s257, 1
      %s261 = scalar_select %p260, %s257, 1
      %s262 = smul.addr %s261, 2
      %s263 = smul.addr %s259, 4
      %s264 = sadd.s32 %s262, %s263
      %s265 = smul.addr %s264, 4
      %s266 = scalar_lea.vmem %s1, %s265
      %p267 = pneg %p89
      %p268 = pneg %p86
      %p269 = scmp.lt.s32.totalorder %s25, 0
      %s270 = scalar_select %p269, %s25, 0
      %s271 = smul.addr %s270, 4
      %s272 = scalar_lea.vmem %s2, %s271
      %p273 = pneg %p115
      %p274 = pneg %p112
      %p275 = pneg %p145
      %p276 = pneg %p142
      %p277 = scmp.lt.s32.totalorder %s23, 3
      %s278 = scalar_select %p277, %s23, 3
      %p279 = scmp.lt.s32.totalorder %s24, 0
      %s280 = scalar_select %p279, %s24, 0
      %p281 = scmp.lt.s32.totalorder %s25, 0
      %s282 = scalar_select %p281, %s25, 0
      %s283 = sadd.s32 %s282, %s280
      %s284 = sadd.s32 %s283, %s278
      %s285 = smul.addr %s284, 4
      %s286 = scalar_lea.vmem %s3, %s285
      %p287 = pneg %p175
      %p288 = pneg %p172
      %p289 = scmp.lt.s32.totalorder %s23, 3
      %s290 = scalar_select %p289, %s23, 3
      %p291 = scmp.lt.s32.totalorder %s24, 0
      %s292 = scalar_select %p291, %s24, 0
      %p293 = scmp.lt.s32.totalorder %s25, 0
      %s294 = scalar_select %p293, %s25, 0
      %s295 = sadd.s32 %s294, %s292
      %s296 = sadd.s32 %s295, %s290
      %s297 = smul.addr %s296, 8
      %s298 = scalar_lea.vmem %s4, %s297
      %p299 = pneg %p205
      %p300 = pneg %p202
      %p301 = scmp.lt.s32.totalorder %s23, 3
      %s302 = scalar_select %p301, %s23, 3
      %p303 = scmp.lt.s32.totalorder %s24, 0
      %s304 = scalar_select %p303, %s24, 0
      %p305 = scmp.lt.s32.totalorder %s25, 0
      %s306 = scalar_select %p305, %s25, 0
      %s307 = sadd.s32 %s306, %s304
      %s308 = sadd.s32 %s307, %s302
      %s309 = smul.addr %s308, 8
      %s310 = scalar_lea.vmem %s5, %s309
      %s311 = sadd.s32 %s24, %s26
      %p312 = scmp.lt.s32.totalorder %s23, 3
      %s313 = scalar_select %p312, %s23, 3
      %p314 = scmp.lt.s32.totalorder %s311, 1
      %s315 = scalar_select %p314, %s311, 1
      %s316 = smul.addr %s315, 2
      %s317 = smul.addr %s313, 4
      %s318 = sadd.s32 %s316, %s317
      %s319 = smul.addr %s318, 4
      %s320 = scalar_lea.vmem %s1, %s319
      %s321 = sadd.s32 %s24, %s26
      %p322 = scmp.lt.s32.totalorder %s25, 0
      %s323 = scalar_select %p322, %s25, 0
      %s324 = smul.addr %s323, 4
      %s325 = scalar_lea.vmem %s2, %s324
      %p326 = scmp.lt.s32.totalorder %s23, 3
      %s327 = scalar_select %p326, %s23, 3
      %p328 = scmp.lt.s32.totalorder %s24, 0
      %s329 = scalar_select %p328, %s24, 0
      %p330 = scmp.lt.s32.totalorder %s25, 0
      %s331 = scalar_select %p330, %s25, 0
      %s332 = sadd.s32 %s331, %s329
      %s333 = sadd.s32 %s332, %s327
      %s334 = smul.addr %s333, 4
      %s335 = scalar_lea.vmem %s3, %s334
      %p336 = scmp.lt.s32.totalorder %s23, 3
      %s337 = scalar_select %p336, %s23, 3
      %p338 = scmp.lt.s32.totalorder %s24, 0
      %s339 = scalar_select %p338, %s24, 0
      %p340 = scmp.lt.s32.totalorder %s25, 0
      %s341 = scalar_select %p340, %s25, 0
      %s342 = sadd.s32 %s341, %s339
      %s343 = sadd.s32 %s342, %s337
      %s344 = smul.addr %s343, 8
      %s345 = scalar_lea.vmem %s4, %s344
      %p346 = scmp.lt.s32.totalorder %s23, 3
      %s347 = scalar_select %p346, %s23, 3
      %p348 = scmp.lt.s32.totalorder %s24, 0
      %s349 = scalar_select %p348, %s24, 0
      %p350 = scmp.lt.s32.totalorder %s25, 0
      %s351 = scalar_select %p350, %s25, 0
      %s352 = sadd.s32 %s351, %s349
      %s353 = sadd.s32 %s352, %s347
      %s354 = smul.addr %s353, 8
      %s355 = scalar_lea.vmem %s5, %s354
      %p357 = scmp.eq.s32.totalorder %s26, 0
      // Predicated region
      $region33: #{residual_block_3d.7} parent=31 // pred_check
        %p358 = pneg %p357
      $region34: #{residual_block_3d.7} parent=31 // pred_check_branch
        %360 = sbr.rel (%p358) target = $region36
      $region35: #{residual_block_3d.7} parent=31 // pred_region
        %361 = vst [vmem:[#allocation2] sm:$0xff] 0.0
      $region36: #{residual_block_3d.7} parent=31 // pred_fallthru
        _
      %v362 = vld [vmem:[%s320] sm:$0xf]
      %s363 = smul.u32 %s26, 32
      %s364 = smul.addr %s363, 4
      %s365 = scalar_lea.vmem %s325, %s364
      %v366 = vld [vmem:[%s365] sm:$0xf]
      %v367 = vld [vmem:[%s365 + $0x4] sm:$0xf]
      %v368 = vld [vmem:[%s365 + $0x8] sm:$0xf]
      %v369 = vld [vmem:[%s365 + $0xc] sm:$0xf]
      %v370 = vld [vmem:[%s365 + $0x10] sm:$0xf]
      %v371 = vld [vmem:[%s365 + $0x14] sm:$0xf]
      %v372 = vld [vmem:[%s365 + $0x18] sm:$0xf]
      %v373 = vld [vmem:[%s365 + $0x1c] sm:$0xf]
      %v374 = vld [vmem:[%s320 + $0x4] sm:$0x1]
      %v375 = vld [vmem:[%s365 + $0x20] sm:$0xf]
      %v376 = vld [vmem:[%s365 + $0x24] sm:$0xf]
      %v377 = vld [vmem:[%s365 + $0x28] sm:$0xf]
      %v378 = vld [vmem:[%s365 + $0x2c] sm:$0xf]
      %v379 = vld [vmem:[%s365 + $0x30] sm:$0xf]
      %v380 = vld [vmem:[%s365 + $0x34] sm:$0xf]
      %v381 = vld [vmem:[%s365 + $0x38] sm:$0xf]
      %v382 = vld [vmem:[%s365 + $0x3c] sm:$0xf]
      %v385 = vunpack.c.l.b16 %v362
      %v386 = vunpack.c.l.b16 %v374
      %v387 = vpack.c.b16 %v386, %v385
      %v389 = vshrl.u32 %v387, 16
      %v391 = vshll.u32 %v387, 16
      %v393 = vrot.slane %v391, 1
      %v394 = vor.u32 %v389, %v393
      %v403 = vunpack.c.l.b16 %v375
      %v404 = vunpack.c.l.b16 %v376
      %v405 = vunpack.c.l.b16 %v377
      %v406 = vunpack.c.l.b16 %v378
      %v407 = vunpack.c.l.b16 %v379
      %v408 = vunpack.c.l.b16 %v380
      %v409 = vunpack.c.l.b16 %v381
      %v410 = vunpack.c.l.b16 %v382
      %v411 = vpack.c.b16 %v404, %v403
      %v412 = vpack.c.b16 %v406, %v405
      %v413 = vpack.c.b16 %v408, %v407
      %v414 = vpack.c.b16 %v410, %v409
      %vm419 = vcmask 523264
      %v421 = vsel %vm419, %v394, 0
      %423 = vmatpush.bf16.msra.mxu0 0
      %424 = vmatpush.bf16.msra.mxu0 0
      %425 = vmatpush.bf16.msra.mxu0 0
      %426 = vmatpush.bf16.msra.mxu0 0
      %427 = vmatpush.bf16.msra.mxu0 %v414
      %428 = vmatpush.bf16.msra.mxu0 %v413
      %429 = vmatpush.bf16.msra.mxu0 %v412
      %430 = vmatpush.bf16.msra.mxu0 %v411
      %431 = vmatmul.bf16.gmra.mxu0 %v421
      %v432 = vpop.f32.mrf.mxu0
      %v433 = vadd.f32 0.0, %v432
      %v434 = vpop.f32.mrf.mxu0
      %435 = vdwg.mxu0
      %v444 = vunpack.c.l.b16 %v366
      %v445 = vunpack.c.l.b16 %v367
      %v446 = vunpack.c.l.b16 %v368
      %v447 = vunpack.c.l.b16 %v369
      %v448 = vunpack.c.l.b16 %v370
      %v449 = vunpack.c.l.b16 %v371
      %v450 = vunpack.c.l.b16 %v372
      %v451 = vunpack.c.l.b16 %v373
      %v452 = vpack.c.b16 %v445, %v444
      %v453 = vpack.c.b16 %v447, %v446
      %v454 = vpack.c.b16 %v449, %v448
      %v455 = vpack.c.b16 %v451, %v450
      %v461 = vsel %vm419, %v362, 0
      %463 = vmatpush.bf16.msra.mxu0 0
      %464 = vmatpush.bf16.msra.mxu0 0
      %465 = vmatpush.bf16.msra.mxu0 0
      %466 = vmatpush.bf16.msra.mxu0 0
      %467 = vmatpush.bf16.msra.mxu0 %v455
      %468 = vmatpush.bf16.msra.mxu0 %v454
      %469 = vmatpush.bf16.msra.mxu0 %v453
      %470 = vmatpush.bf16.msra.mxu0 %v452
      %471 = vmatmul.bf16.gmra.mxu0 %v461
      %v472 = vpop.f32.mrf.mxu0
      %v473 = vadd.f32 %v433, %v472
      %v474 = vpop.f32.mrf.mxu0
      %475 = vdwg.mxu0
      %v476 = vld [vmem:[%s320] sm:$0xe]
      %v477 = vld [vmem:[%s365 + $0x40] sm:$0xf]
      %v478 = vld [vmem:[%s365 + $0x44] sm:$0xf]
      %v479 = vld [vmem:[%s365 + $0x48] sm:$0xf]
      %v480 = vld [vmem:[%s365 + $0x4c] sm:$0xf]
      %v481 = vld [vmem:[%s365 + $0x50] sm:$0xf]
      %v482 = vld [vmem:[%s365 + $0x54] sm:$0xf]
      %v483 = vld [vmem:[%s365 + $0x58] sm:$0xf]
      %v484 = vld [vmem:[%s365 + $0x5c] sm:$0xf]
      %v486 = vunpack.c.l.b16 %v476
      %v487 = vpack.c.b16 %v386, %v486
      %v488 = vrot.slane %v487, 1
      %v497 = vunpack.c.l.b16 %v477
      %v498 = vunpack.c.l.b16 %v478
      %v499 = vunpack.c.l.b16 %v479
      %v500 = vunpack.c.l.b16 %v480
      %v501 = vunpack.c.l.b16 %v481
      %v502 = vunpack.c.l.b16 %v482
      %v503 = vunpack.c.l.b16 %v483
      %v504 = vunpack.c.l.b16 %v484
      %v505 = vpack.c.b16 %v498, %v497
      %v506 = vpack.c.b16 %v500, %v499
      %v507 = vpack.c.b16 %v502, %v501
      %v508 = vpack.c.b16 %v504, %v503
      %v514 = vsel %vm419, %v488, 0
      %516 = vmatpush.bf16.msra.mxu0 0
      %517 = vmatpush.bf16.msra.mxu0 0
      %518 = vmatpush.bf16.msra.mxu0 0
      %519 = vmatpush.bf16.msra.mxu0 0
      %520 = vmatpush.bf16.msra.mxu0 %v508
      %521 = vmatpush.bf16.msra.mxu0 %v507
      %522 = vmatpush.bf16.msra.mxu0 %v506
      %523 = vmatpush.bf16.msra.mxu0 %v505
      %524 = vmatmul.bf16.gmra.mxu0 %v514
      %v525 = vpop.f32.mrf.mxu0
      %v526 = vadd.f32 0.0, %v525
      %v527 = vpop.f32.mrf.mxu0
      %528 = vdwg.mxu0
      %v529 = vadd.f32 %v473, %v526
      %v530 = vld [vmem:[%s320 + $0x4] sm:$0x3]
      %v531 = vld [vmem:[%s365 + $0x60] sm:$0xf]
      %v532 = vld [vmem:[%s365 + $0x64] sm:$0xf]
      %v533 = vld [vmem:[%s365 + $0x68] sm:$0xf]
      %v534 = vld [vmem:[%s365 + $0x6c] sm:$0xf]
      %v535 = vld [vmem:[%s365 + $0x70] sm:$0xf]
      %v536 = vld [vmem:[%s365 + $0x74] sm:$0xf]
      %v537 = vld [vmem:[%s365 + $0x78] sm:$0xf]
      %v538 = vld [vmem:[%s365 + $0x7c] sm:$0xf]
      %v540 = vunpack.c.l.b16 %v530
      %v541 = vpack.c.b16 %v540, %v486
      %v543 = vshrl.u32 %v541, 16
      %v545 = vrot.slane %v543, 1
      %v546 = vshll.u32 %v541, 16
      %v548 = vrot.slane %v546, 2
      %v549 = vor.u32 %v545, %v548
      %v558 = vunpack.c.l.b16 %v531
      %v559 = vunpack.c.l.b16 %v532
      %v560 = vunpack.c.l.b16 %v533
      %v561 = vunpack.c.l.b16 %v534
      %v562 = vunpack.c.l.b16 %v535
      %v563 = vunpack.c.l.b16 %v536
      %v564 = vunpack.c.l.b16 %v537
      %v565 = vunpack.c.l.b16 %v538
      %v566 = vpack.c.b16 %v559, %v558
      %v567 = vpack.c.b16 %v561, %v560
      %v568 = vpack.c.b16 %v563, %v562
      %v569 = vpack.c.b16 %v565, %v564
      %v575 = vsel %vm419, %v549, 0
      %577 = vmatpush.bf16.msra.mxu0 0
      %578 = vmatpush.bf16.msra.mxu0 0
      %579 = vmatpush.bf16.msra.mxu0 0
      %580 = vmatpush.bf16.msra.mxu0 0
      %581 = vmatpush.bf16.msra.mxu0 %v569
      %582 = vmatpush.bf16.msra.mxu0 %v568
      %583 = vmatpush.bf16.msra.mxu0 %v567
      %584 = vmatpush.bf16.msra.mxu0 %v566
      %585 = vmatmul.bf16.gmra.mxu0 %v575
      %v586 = vpop.f32.mrf.mxu0
      %v587 = vadd.f32 0.0, %v586
      %v588 = vpop.f32.mrf.mxu0
      %589 = vdwg.mxu0
      %v590 = vadd.f32 %v529, %v587
      %v591 = vld [vmem:[#allocation2] sm:$0xff]
      %v592 = vadd.f32 %v591, %v590
      %593 = vst [vmem:[#allocation2] sm:$0xff] %v592
      %p594 = scmp.eq.s32.totalorder %s26, 1
      // Predicated region
      $region37: #{residual_block_3d.7} parent=31 // pred_check
        %p595 = pneg %p594
      $region38: #{residual_block_3d.7} parent=31 // pred_check_branch
        %597 = sbr.rel (%p595) target = $region40
      $region39: #{residual_block_3d.7} parent=31 // pred_region
        %v598 = vld [vmem:[#allocation2] sm:$0xff]
        %v599 = vpack.c.bf16 %v598, %v598
        %600 = vst [vmem:[%s335] sm:$0xf] %v599
        %v601 = vld [vmem:[%s0] sm:$0xff]
        %603 = vset.pattern.permute.xlu0 0
        %604 = vperm.xlu0 %603, %v601
        %v605 = vpop.permute.xlu0 %604
        %v607 = vmul.f32 %v598, %v605
        %v608 = vrot.slane %v607, 4
        %v609 = vadd.f32 %v607, %v608
        %v610 = vrot.slane %v609, 2
        %v611 = vadd.f32 %v609, %v610
        %v612 = vrot.slane %v611, 1
        %v613 = vadd.f32 %v611, %v612
        %v614 = vmul.f32 %v607, %v598
        %v615 = vrot.slane %v614, 4
        %v616 = vadd.f32 %v614, %v615
        %v617 = vrot.slane %v616, 2
        %v618 = vadd.f32 %v616, %v617
        %v619 = vrot.slane %v618, 1
        %v620 = vadd.f32 %v618, %v619
        %621 = vst [vmem:[%s345] sm:$0xff] %v613
        %622 = vst [vmem:[%s355] sm:$0xff] %v620
      $region40: #{residual_block_3d.7} parent=31 // pred_fallthru
        _
      %p623 = scmp.lt.s32.totalorder %s23, 3
      %s624 = scalar_select %p623, %s23, 3
      %p625 = scmp.lt.s32.totalorder %s24, 0
      %s626 = scalar_select %p625, %s24, 0
      %p627 = scmp.lt.s32.totalorder %s25, 0
      %s628 = scalar_select %p627, %s25, 0
      %s629 = sadd.s32 %s628, %s626
      %s630 = sadd.s32 %s629, %s624
      %s631 = smul.addr %s630, 4
      %s632 = scalar_lea.vmem %s3, %s631
      %p633 = scmp.lt.s32.totalorder %s23, 3
      %s634 = scalar_select %p633, %s23, 3
      %p635 = scmp.lt.s32.totalorder %s24, 0
      %s636 = scalar_select %p635, %s24, 0
      %p637 = scmp.lt.s32.totalorder %s25, 0
      %s638 = scalar_select %p637, %s25, 0
      %s639 = sadd.s32 %s638, %s636
      %s640 = sadd.s32 %s639, %s634
      %s641 = smul.addr %s640, 8
      %s642 = scalar_lea.vmem %s4, %s641
      %p643 = scmp.lt.s32.totalorder %s23, 3
      %s644 = scalar_select %p643, %s23, 3
      %p645 = scmp.lt.s32.totalorder %s24, 0
      %s646 = scalar_select %p645, %s24, 0
      %p647 = scmp.lt.s32.totalorder %s25, 0
      %s648 = scalar_select %p647, %s25, 0
      %s649 = sadd.s32 %s648, %s646
      %s650 = sadd.s32 %s649, %s644
      %s651 = smul.addr %s650, 8
      %s652 = scalar_lea.vmem %s5, %s651
      // Predicated region
      $region41: #{residual_block_3d.7} parent=31 // pred_check
        %p653 = pneg %p142
      $region42: #{residual_block_3d.7} parent=31 // pred_check_branch
        %655 = sbr.rel (%p653) target = $region44
      $region43: #{residual_block_3d.7} parent=31 // pred_region
        _
      $region44: #{residual_block_3d.7} parent=31 // pred_fallthru
        _
      // Predicated region
      $region45: #{residual_block_3d.7} parent=31 // pred_check
        %p656 = pneg %p172
      $region46: #{residual_block_3d.7} parent=31 // pred_check_branch
        %658 = sbr.rel (%p656) target = $region48
      $region47: #{residual_block_3d.7} parent=31 // pred_region
        _
      $region48: #{residual_block_3d.7} parent=31 // pred_fallthru
        _
      // Predicated region
      $region49: #{residual_block_3d.7} parent=31 // pred_check
        %p659 = pneg %p202
      $region50: #{residual_block_3d.7} parent=31 // pred_check_branch
        %661 = sbr.rel (%p659) target = $region52
      $region51: #{residual_block_3d.7} parent=31 // pred_region
        _
      $region52: #{residual_block_3d.7} parent=31 // pred_fallthru
        _
    $region32: #{residual_block_3d.7} parent=5 // pred_fallthru
      _
    %p662 = scmp.le.s32.totalorder 2, %s12
    // Predicated region
    $region53: #{residual_block_3d.7} parent=5 // pred_check
      %p663 = pneg %p662
    $region54: #{residual_block_3d.7} parent=5 // pred_check_branch
      %665 = sbr.rel (%p663) target = $region56
    $region55: #{residual_block_3d.7} parent=5 // pred_region
      %s666 = ssub.s32 %s12, 2
      // Predicated region
      $region57: #{residual_block_3d.7} parent=55 // pred_check
        %p667 = pneg %p148
      $region58: #{residual_block_3d.7} parent=55 // pred_check_branch
        %669 = sbr.rel (%p667) target = $region60
      $region59: #{residual_block_3d.7} parent=55 // pred_region
        %p670 = scmp.lt.s32.totalorder %s27, 3
        %s671 = scalar_select %p670, %s27, 3
        %p672 = scmp.lt.s32.totalorder %s28, 0
        %s673 = scalar_select %p672, %s28, 0
        %p674 = scmp.lt.s32.totalorder %s29, 0
        %s675 = scalar_select %p674, %s29, 0
        %s676 = sadd.s32 %s675, %s673
        %s677 = sadd.s32 %s676, %s671
        %s678 = smul.addr %s677, 4
        %s679 = scalar_lea.vmem %s3, %s678
      $region60: #{residual_block_3d.7} parent=55 // pred_fallthru
        _
      // Predicated region
      $region61: #{residual_block_3d.7} parent=55 // pred_check
        %p680 = pneg %p178
      $region62: #{residual_block_3d.7} parent=55 // pred_check_branch
        %682 = sbr.rel (%p680) target = $region64
      $region63: #{residual_block_3d.7} parent=55 // pred_region
        %p683 = scmp.lt.s32.totalorder %s27, 3
        %s684 = scalar_select %p683, %s27, 3
        %p685 = scmp.lt.s32.totalorder %s28, 0
        %s686 = scalar_select %p685, %s28, 0
        %p687 = scmp.lt.s32.totalorder %s29, 0
        %s688 = scalar_select %p687, %s29, 0
        %s689 = sadd.s32 %s688, %s686
        %s690 = sadd.s32 %s689, %s684
        %s691 = smul.addr %s690, 8
        %s692 = scalar_lea.vmem %s4, %s691
      $region64: #{residual_block_3d.7} parent=55 // pred_fallthru
        _
      // Predicated region
      $region65: #{residual_block_3d.7} parent=55 // pred_check
        %p693 = pneg %p208
      $region66: #{residual_block_3d.7} parent=55 // pred_check_branch
        %695 = sbr.rel (%p693) target = $region68
      $region67: #{residual_block_3d.7} parent=55 // pred_region
        %p696 = scmp.lt.s32.totalorder %s27, 3
        %s697 = scalar_select %p696, %s27, 3
        %p698 = scmp.lt.s32.totalorder %s28, 0
        %s699 = scalar_select %p698, %s28, 0
        %p700 = scmp.lt.s32.totalorder %s29, 0
        %s701 = scalar_select %p700, %s29, 0
        %s702 = sadd.s32 %s701, %s699
        %s703 = sadd.s32 %s702, %s697
        %s704 = smul.addr %s703, 8
        %s705 = scalar_lea.vmem %s5, %s704
      $region68: #{residual_block_3d.7} parent=55 // pred_fallthru
        _
    $region56: #{residual_block_3d.7} parent=5 // pred_fallthru
      _
  $region6: #{residual_block_3d.7} parent=0 // loop_footer
    %s16 = sadd.s32 1, %s12
  $region7: #{residual_block_3d.7} parent=0 // loop_footer_branch
    %11 = sbr.rel target = $region3
  $region8: #{residual_block_3d.7} parent=0 // loop_exit
    _

// kernel: residual_block_3d.8
$region0: #{residual_block_3d.8}
  #allocation0 [shape = 'u32[]', space=smem, size = 0x4, offset = 0x4, fixed_abs, tag = 'smem constant byte address 0x4 - core index']
  #allocation1 [shape = 'u32[72,128]{1,0:T(1,128)}', space=vmem, size = 0x9000, scoped, tag = 'internal scratch']
  #allocation2 [shape = 'f32[8,128]{1,0:T(8,128)}', space=vmem, size = 0x1000, scoped, tag = 'scratch operand']
  %s0 = inlined_call_operand.vmem [shape: f32[8,1], index: 0, kind: input, shape index: {}]
  %s1 = inlined_call_operand.vmem [shape: bf16[4,1,8,32], index: 1, kind: input, shape index: {}]
  %s2 = inlined_call_operand.vmem [shape: bf16[1,32,128], index: 2, kind: input, shape index: {}]
  %s3 = inlined_call_operand.vmem [shape: bf16[4,1,8,128], index: 3, kind: output, shape index: {0}]
  %s4 = inlined_call_operand.vmem [shape: f32[4,1,8,128], index: 4, kind: output, shape index: {1}]
  %s5 = inlined_call_operand.vmem [shape: f32[4,1,8,128], index: 5, kind: output, shape index: {2}]
  %6 = xla_tuple %s3, %s4, %s5
  %s7 = sld [smem:[#allocation0]]
  $region69: #{residual_block_3d.8} parent=0
    _
  %s9 = ssub.s32 1, %s7
  %s10 = scalar_select 0, %s9, %s7
  loop: start=0, step=1, limit=6
  $region2: #{residual_block_3d.8} parent=0 // loop_pre_header
    _
  $region3: #{residual_block_3d.8} parent=0 // loop_header
    %s12 = sphi 0, %s16
    %p13 = scmp.ge.s32.totalorder %s12, 6
    %s19 = sphi 0, %s45
    %s20 = sphi 0, %s41
    %s21 = sphi 0, %s37
    %s22 = sphi 0, %s33
    %s23 = sphi 0, %s19
    %s24 = sphi 0, %s20
    %s25 = sphi 0, %s21
    %s26 = sphi 0, %s22
    %s27 = sphi 0, %s23
    %s28 = sphi 0, %s24
    %s29 = sphi 0, %s25
    %s30 = sphi 0, %s26
    %s46 = sphi 0, %s46
    %s48 = sphi 0, %s46
    %s49 = sphi 0, %s48
    %s63 = sphi 0, %s49
    %s73 = sphi 0, %s75
    %s76 = sphi 0, %s73
    %s77 = sphi 0, %s76
    %s93 = sphi 0, %s77
    %s99 = sphi 0, %s101
    %s102 = sphi 0, %s99
    %s103 = sphi 0, %s102
    %s119 = sphi 0, %s103
    %s129 = sphi 0, %s131
    %s132 = sphi 0, %s129
    %s133 = sphi 0, %s132
    %s149 = sphi 0, %s133
    %s159 = sphi 0, %s161
    %s162 = sphi 0, %s159
    %s163 = sphi 0, %s162
    %s179 = sphi 0, %s163
    %s189 = sphi 0, %s191
    %s192 = sphi 0, %s189
    %s193 = sphi 0, %s192
    %s209 = sphi 0, %s193
  $region4: #{residual_block_3d.8} parent=0 // loop_header_branch
    %15 = sbr.rel (%p13) target = $region8
  $region5: #{residual_block_3d.8} parent=0 // loop_body
    %s17 = ssub.s32 %s12, 1
    %s18 = ssub.s32 %s12, 2
    %s31 = sadd.s32 1, %s22
    %p32 = scmp.ge.s32.totalorder %s31, 1
    %s33 = scalar_select %p32, 0, %s31
    %s34 = sadd.s32 1, %s21
    %s35 = scalar_select %p32, %s34, %s21
    %p36 = scmp.ge.s32.totalorder %s35, 1
    %s37 = scalar_select %p36, 0, %s35
    %s38 = sadd.s32 1, %s20
    %s39 = scalar_select %p36, %s38, %s20
    %p40 = scmp.ge.s32.totalorder %s39, 1
    %s41 = scalar_select %p40, 0, %s39
    %s42 = sadd.s32 1, %s19
    %s43 = scalar_select %p40, %s42, %s19
    %p44 = scmp.ge.s32.totalorder %s43, 4
    %s45 = scalar_select %p44, 0, %s43
    %s47 = sadd.s32 %s46, 1
    %p50 = scmp.eq.s32.totalorder %s12, 3
    %p51 = scmp.ne.s32.totalorder %s46, %s48
    %p52 = scmp.eq.s32.totalorder %s12, 0
    %p53 = por %p51, %p52
    %p54 = scmp.ne.s32.totalorder %s46, %s48
    %p55 = scmp.eq.s32.totalorder %s17, 3
    %p56 = por %p54, %p55
    %p57 = scmp.ne.s32.totalorder %s48, %s49
    %p58 = scmp.eq.s32.totalorder %s17, 0
    %p59 = por %p57, %p58
    %p60 = scmp.ne.s32.totalorder %s48, %s49
    %p61 = scmp.eq.s32.totalorder %s18, 3
    %p62 = por %p60, %p61
    %p64 = scmp.ne.s32.totalorder %s49, %s63
    %p65 = scmp.eq.s32.totalorder %s18, 0
    %p66 = por %p64, %p65
    %s67 = sadd.s32 %s20, %s22
    %s68 = sadd.s32 %s41, %s33
    %s69 = ssub.s32 %s19, %s45
    %s70 = ssub.s32 %s67, %s68
    %s71 = sor.u32 %s69, %s70
    %p72 = scmp.eq.s32.totalorder %s71, 0
    %s74 = sadd.s32 %s73, 1
    %s75 = scalar_select %p72, %s73, %s74
    %p78 = pneg %p72
    %p79 = scmp.eq.s32.totalorder %s12, 3
    %p80 = por %p78, %p79
    %p81 = scmp.ne.s32.totalorder %s73, %s76
    %p82 = scmp.eq.s32.totalorder %s12, 0
    %p83 = por %p81, %p82
    %p84 = scmp.ne.s32.totalorder %s73, %s76
    %p85 = scmp.eq.s32.totalorder %s17, 3
    %p86 = por %p84, %p85
    %p87 = scmp.ne.s32.totalorder %s76, %s77
    %p88 = scmp.eq.s32.totalorder %s17, 0
    %p89 = por %p87, %p88
    %p90 = scmp.ne.s32.totalorder %s76, %s77
    %p91 = scmp.eq.s32.totalorder %s18, 3
    %p92 = por %p90, %p91
    %p94 = scmp.ne.s32.totalorder %s77, %s93
    %p95 = scmp.eq.s32.totalorder %s18, 0
    %p96 = por %p94, %p95
    %s97 = ssub.s32 %s21, %s37
    %p98 = scmp.eq.s32.totalorder %s97, 0
    %s100 = sadd.s32 %s99, 1
    %s101 = scalar_select %p98, %s99, %s100
    %p104 = pneg %p98
    %p105 = scmp.eq.s32.totalorder %s12, 3
    %p106 = por %p104, %p105
    %p107 = scmp.ne.s32.totalorder %s99, %s102
    %p108 = scmp.eq.s32.totalorder %s12, 0
    %p109 = por %p107, %p108
    %p110 = scmp.ne.s32.totalorder %s99, %s102
    %p111 = scmp.eq.s32.totalorder %s17, 3
    %p112 = por %p110, %p111
    %p113 = scmp.ne.s32.totalorder %s102, %s103
    %p114 = scmp.eq.s32.totalorder %s17, 0
    %p115 = por %p113, %p114
    %p116 = scmp.ne.s32.totalorder %s102, %s103
    %p117 = scmp.eq.s32.totalorder %s18, 3
    %p118 = por %p116, %p117
    %p120 = scmp.ne.s32.totalorder %s103, %s119
    %p121 = scmp.eq.s32.totalorder %s18, 0
    %p122 = por %p120, %p121
    %s123 = ssub.s32 %s19, %s45
    %s124 = ssub.s32 %s20, %s41
    %s125 = sor.u32 %s123, %s124
    %s126 = ssub.s32 %s21, %s37
    %s127 = sor.u32 %s125, %s126
    %p128 = scmp.eq.s32.totalorder %s127, 0
    %s130 = sadd.s32 %s129, 1
    %s131 = scalar_select %p128, %s129, %s130
    %p134 = pneg %p128
    %p135 = scmp.eq.s32.totalorder %s12, 3
    %p136 = por %p134, %p135
    %p137 = scmp.ne.s32.totalorder %s129, %s132
    %p138 = scmp.eq.s32.totalorder %s12, 0
    %p139 = por %p137, %p138
    %p140 = scmp.ne.s32.totalorder %s129, %s132
    %p141 = scmp.eq.s32.totalorder %s17, 3
    %p142 = por %p140, %p141
    %p143 = scmp.ne.s32.totalorder %s132, %s133
    %p144 = scmp.eq.s32.totalorder %s17, 0
    %p145 = por %p143, %p144
    %p146 = scmp.ne.s32.totalorder %s132, %s133
    %p147 = scmp.eq.s32.totalorder %s18, 3
    %p148 = por %p146, %p147
    %p150 = scmp.ne.s32.totalorder %s133, %s149
    %p151 = scmp.eq.s32.totalorder %s18, 0
    %p152 = por %p150, %p151
    %s153 = ssub.s32 %s19, %s45
    %s154 = ssub.s32 %s20, %s41
    %s155 = sor.u32 %s153, %s154
    %s156 = ssub.s32 %s21, %s37
    %s157 = sor.u32 %s155, %s156
    %p158 = scmp.eq.s32.totalorder %s157, 0
    %s160 = sadd.s32 %s159, 1
    %s161 = scalar_select %p158, %s159, %s160
    %p164 = pneg %p158
    %p165 = scmp.eq.s32.totalorder %s12, 3
    %p166 = por %p164, %p165
    %p167 = scmp.ne.s32.totalorder %s159, %s162
    %p168 = scmp.eq.s32.totalorder %s12, 0
    %p169 = por %p167, %p168
    %p170 = scmp.ne.s32.totalorder %s159, %s162
    %p171 = scmp.eq.s32.totalorder %s17, 3
    %p172 = por %p170, %p171
    %p173 = scmp.ne.s32.totalorder %s162, %s163
    %p174 = scmp.eq.s32.totalorder %s17, 0
    %p175 = por %p173, %p174
    %p176 = scmp.ne.s32.totalorder %s162, %s163
    %p177 = scmp.eq.s32.totalorder %s18, 3
    %p178 = por %p176, %p177
    %p180 = scmp.ne.s32.totalorder %s163, %s179
    %p181 = scmp.eq.s32.totalorder %s18, 0
    %p182 = por %p180, %p181
    %s183 = ssub.s32 %s19, %s45
    %s184 = ssub.s32 %s20, %s41
    %s185 = sor.u32 %s183, %s184
    %s186 = ssub.s32 %s21, %s37
    %s187 = sor.u32 %s185, %s186
    %p188 = scmp.eq.s32.totalorder %s187, 0
    %s190 = sadd.s32 %s189, 1
    %s191 = scalar_select %p188, %s189, %s190
    %p194 = pneg %p188
    %p195 = scmp.eq.s32.totalorder %s12, 3
    %p196 = por %p194, %p195
    %p197 = scmp.ne.s32.totalorder %s189, %s192
    %p198 = scmp.eq.s32.totalorder %s12, 0
    %p199 = por %p197, %p198
    %p200 = scmp.ne.s32.totalorder %s189, %s192
    %p201 = scmp.eq.s32.totalorder %s17, 3
    %p202 = por %p200, %p201
    %p203 = scmp.ne.s32.totalorder %s192, %s193
    %p204 = scmp.eq.s32.totalorder %s17, 0
    %p205 = por %p203, %p204
    %p206 = scmp.ne.s32.totalorder %s192, %s193
    %p207 = scmp.eq.s32.totalorder %s18, 3
    %p208 = por %p206, %p207
    %p210 = scmp.ne.s32.totalorder %s193, %s209
    %p211 = scmp.eq.s32.totalorder %s18, 0
    %p212 = por %p210, %p211
    %p213 = scmp.le.s32.totalorder 1, %s12
    %p214 = scmp.lt.s32.totalorder %s12, 5
    %p215 = pnand %p213, %p214
    %p216 = pneg %p215
    // Predicated region
    $region9: #{residual_block_3d.8} parent=5 // pred_check
      _
    $region10: #{residual_block_3d.8} parent=5 // pred_check_branch
      %218 = sbr.rel (%p215) target = $region12
    $region11: #{residual_block_3d.8} parent=5 // pred_region
      %s219 = ssub.s32 %s12, 1
      // Predicated region
      $region13: #{residual_block_3d.8} parent=11 // pred_check
        %p220 = pneg %p59
      $region14: #{residual_block_3d.8} parent=11 // pred_check_branch
        %222 = sbr.rel (%p220) target = $region16
      $region15: #{residual_block_3d.8} parent=11 // pred_region
        _
      $region16: #{residual_block_3d.8} parent=11 // pred_fallthru
        _
      // Predicated region
      $region17: #{residual_block_3d.8} parent=11 // pred_check
        %p223 = pneg %p115
      $region18: #{residual_block_3d.8} parent=11 // pred_check_branch
        %225 = sbr.rel (%p223) target = $region20
      $region19: #{residual_block_3d.8} parent=11 // pred_region
        %p226 = scmp.lt.s32.totalorder %s25, 0
        %s227 = scalar_select %p226, %s25, 0
        %s228 = smul.addr %s227, 4
        %s229 = scalar_lea.vmem %s2, %s228
      $region20: #{residual_block_3d.8} parent=11 // pred_fallthru
        _
    $region12: #{residual_block_3d.8} parent=5 // pred_fallthru
      _
    %p230 = scmp.lt.s32.totalorder %s12, 4
    // Predicated region
    $region21: #{residual_block_3d.8} parent=5 // pred_check
      %p231 = pneg %p230
    $region22: #{residual_block_3d.8} parent=5 // pred_check_branch
      %233 = sbr.rel (%p231) target = $region24
    $region23: #{residual_block_3d.8} parent=5 // pred_region
      // Predicated region
      $region25: #{residual_block_3d.8} parent=23 // pred_check
        %p234 = pneg %p83
      $region26: #{residual_block_3d.8} parent=23 // pred_check_branch
        %236 = sbr.rel (%p234) target = $region28
      $region27: #{residual_block_3d.8} parent=23 // pred_region
        %s237 = sadd.s32 %s20, %s22
        %p238 = scmp.lt.s32.totalorder %s19, 3
        %s239 = scalar_select %p238, %s19, 3
        %p240 = scmp.lt.s32.totalorder %s237, 0
        %s241 = scalar_select %p240, %s237, 0
        %s242 = sadd.s32 %s241, %s239
        %s243 = smul.addr %s242, 4
        %s244 = scalar_lea.vmem %s1, %s243
        %s245 = sadd.s32 %s20, %s22
      $region28: #{residual_block_3d.8} parent=23 // pred_fallthru
        _
    $region24: #{residual_block_3d.8} parent=5 // pred_fallthru
      _
    %p246 = scmp.le.s32.totalorder 1, %s12
    %p247 = scmp.lt.s32.totalorder %s12, 5
    %p248 = pnand %p246, %p247
    %p249 = pneg %p248
    // Predicated region
    $region29: #{residual_block_3d.8} parent=5 // pred_check
      _
    $region30: #{residual_block_3d.8} parent=5 // pred_check_branch
      %251 = sbr.rel (%p248) target = $region32
    $region31: #{residual_block_3d.8} parent=5 // pred_region
      %s252 = ssub.s32 %s12, 1
      %p253 = pneg %p59
      %p254 = pneg %p56
      %s255 = sadd.s32 %s24, %s26
      %p256 = scmp.lt.s32.totalorder %s23, 3
      %s257 = scalar_select %p256, %s23, 3
      %p258 = scmp.lt.s32.totalorder %s255, 0
      %s259 = scalar_select %p258, %s255, 0
      %s260 = sadd.s32 %s259, %s257
      %s261 = smul.addr %s260, 4
      %s262 = scalar_lea.vmem %s1, %s261
      %p263 = pneg %p89
      %p264 = pneg %p86
      %p265 = scmp.lt.s32.totalorder %s25, 0
      %s266 = scalar_select %p265, %s25, 0
      %s267 = smul.addr %s266, 4
      %s268 = scalar_lea.vmem %s2, %s267
      %p269 = pneg %p115
      %p270 = pneg %p112
      %p271 = pneg %p145
      %p272 = pneg %p142
      %p273 = scmp.lt.s32.totalorder %s23, 3
      %s274 = scalar_select %p273, %s23, 3
      %p275 = scmp.lt.s32.totalorder %s24, 0
      %s276 = scalar_select %p275, %s24, 0
      %p277 = scmp.lt.s32.totalorder %s25, 0
      %s278 = scalar_select %p277, %s25, 0
      %s279 = sadd.s32 %s278, %s276
      %s280 = sadd.s32 %s279, %s274
      %s281 = smul.addr %s280, 4
      %s282 = scalar_lea.vmem %s3, %s281
      %p283 = pneg %p175
      %p284 = pneg %p172
      %p285 = scmp.lt.s32.totalorder %s23, 3
      %s286 = scalar_select %p285, %s23, 3
      %p287 = scmp.lt.s32.totalorder %s24, 0
      %s288 = scalar_select %p287, %s24, 0
      %p289 = scmp.lt.s32.totalorder %s25, 0
      %s290 = scalar_select %p289, %s25, 0
      %s291 = sadd.s32 %s290, %s288
      %s292 = sadd.s32 %s291, %s286
      %s293 = smul.addr %s292, 8
      %s294 = scalar_lea.vmem %s4, %s293
      %p295 = pneg %p205
      %p296 = pneg %p202
      %p297 = scmp.lt.s32.totalorder %s23, 3
      %s298 = scalar_select %p297, %s23, 3
      %p299 = scmp.lt.s32.totalorder %s24, 0
      %s300 = scalar_select %p299, %s24, 0
      %p301 = scmp.lt.s32.totalorder %s25, 0
      %s302 = scalar_select %p301, %s25, 0
      %s303 = sadd.s32 %s302, %s300
      %s304 = sadd.s32 %s303, %s298
      %s305 = smul.addr %s304, 8
      %s306 = scalar_lea.vmem %s5, %s305
      %s307 = sadd.s32 %s24, %s26
      %p308 = scmp.lt.s32.totalorder %s23, 3
      %s309 = scalar_select %p308, %s23, 3
      %p310 = scmp.lt.s32.totalorder %s307, 0
      %s311 = scalar_select %p310, %s307, 0
      %s312 = sadd.s32 %s311, %s309
      %s313 = smul.addr %s312, 4
      %s314 = scalar_lea.vmem %s1, %s313
      %s315 = sadd.s32 %s24, %s26
      %p316 = scmp.lt.s32.totalorder %s25, 0
      %s317 = scalar_select %p316, %s25, 0
      %s318 = smul.addr %s317, 4
      %s319 = scalar_lea.vmem %s2, %s318
      %p320 = scmp.lt.s32.totalorder %s23, 3
      %s321 = scalar_select %p320, %s23, 3
      %p322 = scmp.lt.s32.totalorder %s24, 0
      %s323 = scalar_select %p322, %s24, 0
      %p324 = scmp.lt.s32.totalorder %s25, 0
      %s325 = scalar_select %p324, %s25, 0
      %s326 = sadd.s32 %s325, %s323
      %s327 = sadd.s32 %s326, %s321
      %s328 = smul.addr %s327, 4
      %s329 = scalar_lea.vmem %s3, %s328
      %p330 = scmp.lt.s32.totalorder %s23, 3
      %s331 = scalar_select %p330, %s23, 3
      %p332 = scmp.lt.s32.totalorder %s24, 0
      %s333 = scalar_select %p332, %s24, 0
      %p334 = scmp.lt.s32.totalorder %s25, 0
      %s335 = scalar_select %p334, %s25, 0
      %s336 = sadd.s32 %s335, %s333
      %s337 = sadd.s32 %s336, %s331
      %s338 = smul.addr %s337, 8
      %s339 = scalar_lea.vmem %s4, %s338
      %p340 = scmp.lt.s32.totalorder %s23, 3
      %s341 = scalar_select %p340, %s23, 3
      %p342 = scmp.lt.s32.totalorder %s24, 0
      %s343 = scalar_select %p342, %s24, 0
      %p344 = scmp.lt.s32.totalorder %s25, 0
      %s345 = scalar_select %p344, %s25, 0
      %s346 = sadd.s32 %s345, %s343
      %s347 = sadd.s32 %s346, %s341
      %s348 = smul.addr %s347, 8
      %s349 = scalar_lea.vmem %s5, %s348
      %p351 = scmp.eq.s32.totalorder %s26, 0
      // Predicated region
      $region33: #{residual_block_3d.8} parent=31 // pred_check
        %p352 = pneg %p351
      $region34: #{residual_block_3d.8} parent=31 // pred_check_branch
        %354 = sbr.rel (%p352) target = $region36
      $region35: #{residual_block_3d.8} parent=31 // pred_region
        %355 = vst [vmem:[#allocation2] sm:$0xff] 0.0
      $region36: #{residual_block_3d.8} parent=31 // pred_fallthru
        _
      %v356 = vld [vmem:[%s314] sm:$0xf]
      %s357 = smul.u32 %s26, 4
      %s358 = smul.addr %s357, 4
      %s359 = scalar_lea.vmem %s319, %s358
      %v360 = vld [vmem:[%s359] sm:$0xf]
      %v361 = vld [vmem:[%s359 + $0x4] sm:$0xf]
      %v362 = vld [vmem:[%s359 + $0x8] sm:$0xf]
      %v363 = vld [vmem:[%s359 + $0xc] sm:$0xf]
      %v368 = vunpack.c.l.b16 %v360
      %v369 = vunpack.c.l.b16 %v361
      %v370 = vunpack.c.l.b16 %v362
      %v371 = vunpack.c.l.b16 %v363
      %v372 = vpack.c.b16 %v369, %v368
      %v373 = vpack.c.b16 %v371, %v370
      %vm376 = vcmask 261120
      %v378 = vsel %vm376, %v356, 0
      %380 = vmatpush.bf16.msra.mxu0 0
      %381 = vmatpush.bf16.msra.mxu0 0
      %382 = vmatpush.bf16.msra.mxu0 0
      %383 = vmatpush.bf16.msra.mxu0 0
      %384 = vmatpush.bf16.msra.mxu0 0
      %385 = vmatpush.bf16.msra.mxu0 0
      %386 = vmatpush.bf16.msra.mxu0 %v373
      %387 = vmatpush.bf16.msra.mxu0 %v372
      %388 = vmatmul.bf16.gmra.mxu0 %v378
      %v389 = vpop.f32.mrf.mxu0
      %v390 = vadd.f32 0.0, %v389
      %v391 = vpop.f32.mrf.mxu0
      %392 = vdwg.mxu0
      %v393 = vld [vmem:[#allocation2] sm:$0xff]
      %v394 = vadd.f32 %v393, %v390
      %395 = vst [vmem:[#allocation2] sm:$0xff] %v394
      // Predicated region
      $region37: #{residual_block_3d.8} parent=31 // pred_check
        %p396 = pneg %p351
      $region38: #{residual_block_3d.8} parent=31 // pred_check_branch
        %398 = sbr.rel (%p396) target = $region40
      $region39: #{residual_block_3d.8} parent=31 // pred_region
        %v399 = vld [vmem:[#allocation2] sm:$0xff]
        %v400 = vpack.c.bf16 %v399, %v399
        %401 = vst [vmem:[%s329] sm:$0xf] %v400
        %v402 = vld [vmem:[%s0] sm:$0xff]
        %404 = vset.pattern.permute.xlu0 0
        %405 = vperm.xlu0 %404, %v402
        %v406 = vpop.permute.xlu0 %405
        %v408 = vmul.f32 %v399, %v406
        %v409 = vrot.slane %v408, 4
        %v410 = vadd.f32 %v408, %v409
        %v411 = vrot.slane %v410, 2
        %v412 = vadd.f32 %v410, %v411
        %v413 = vrot.slane %v412, 1
        %v414 = vadd.f32 %v412, %v413
        %v415 = vmul.f32 %v408, %v399
        %v416 = vrot.slane %v415, 4
        %v417 = vadd.f32 %v415, %v416
        %v418 = vrot.slane %v417, 2
        %v419 = vadd.f32 %v417, %v418
        %v420 = vrot.slane %v419, 1
        %v421 = vadd.f32 %v419, %v420
        %422 = vst [vmem:[%s339] sm:$0xff] %v414
        %423 = vst [vmem:[%s349] sm:$0xff] %v421
      $region40: #{residual_block_3d.8} parent=31 // pred_fallthru
        _
      %p424 = scmp.lt.s32.totalorder %s23, 3
      %s425 = scalar_select %p424, %s23, 3
      %p426 = scmp.lt.s32.totalorder %s24, 0
      %s427 = scalar_select %p426, %s24, 0
      %p428 = scmp.lt.s32.totalorder %s25, 0
      %s429 = scalar_select %p428, %s25, 0
      %s430 = sadd.s32 %s429, %s427
      %s431 = sadd.s32 %s430, %s425
      %s432 = smul.addr %s431, 4
      %s433 = scalar_lea.vmem %s3, %s432
      %p434 = scmp.lt.s32.totalorder %s23, 3
      %s435 = scalar_select %p434, %s23, 3
      %p436 = scmp.lt.s32.totalorder %s24, 0
      %s437 = scalar_select %p436, %s24, 0
      %p438 = scmp.lt.s32.totalorder %s25, 0
      %s439 = scalar_select %p438, %s25, 0
      %s440 = sadd.s32 %s439, %s437
      %s441 = sadd.s32 %s440, %s435
      %s442 = smul.addr %s441, 8
      %s443 = scalar_lea.vmem %s4, %s442
      %p444 = scmp.lt.s32.totalorder %s23, 3
      %s445 = scalar_select %p444, %s23, 3
      %p446 = scmp.lt.s32.totalorder %s24, 0
      %s447 = scalar_select %p446, %s24, 0
      %p448 = scmp.lt.s32.totalorder %s25, 0
      %s449 = scalar_select %p448, %s25, 0
      %s450 = sadd.s32 %s449, %s447
      %s451 = sadd.s32 %s450, %s445
      %s452 = smul.addr %s451, 8
      %s453 = scalar_lea.vmem %s5, %s452
      // Predicated region
      $region41: #{residual_block_3d.8} parent=31 // pred_check
        %p454 = pneg %p142
      $region42: #{residual_block_3d.8} parent=31 // pred_check_branch
        %456 = sbr.rel (%p454) target = $region44
      $region43: #{residual_block_3d.8} parent=31 // pred_region
        _
      $region44: #{residual_block_3d.8} parent=31 // pred_fallthru
        _
      // Predicated region
      $region45: #{residual_block_3d.8} parent=31 // pred_check
        %p457 = pneg %p172
      $region46: #{residual_block_3d.8} parent=31 // pred_check_branch
        %459 = sbr.rel (%p457) target = $region48
      $region47: #{residual_block_3d.8} parent=31 // pred_region
        _
      $region48: #{residual_block_3d.8} parent=31 // pred_fallthru
        _
      // Predicated region
      $region49: #{residual_block_3d.8} parent=31 // pred_check
        %p460 = pneg %p202
      $region50: #{residual_block_3d.8} parent=31 // pred_check_branch
        %462 = sbr.rel (%p460) target = $region52
      $region51: #{residual_block_3d.8} parent=31 // pred_region
        _
      $region52: #{residual_block_3d.8} parent=31 // pred_fallthru
        _
    $region32: #{residual_block_3d.8} parent=5 // pred_fallthru
      _
    %p463 = scmp.le.s32.totalorder 2, %s12
    // Predicated region
    $region53: #{residual_block_3d.8} parent=5 // pred_check
      %p464 = pneg %p463
    $region54: #{residual_block_3d.8} parent=5 // pred_check_branch
      %466 = sbr.rel (%p464) target = $region56
    $region55: #{residual_block_3d.8} parent=5 // pred_region
      %s467 = ssub.s32 %s12, 2
      // Predicated region
      $region57: #{residual_block_3d.8} parent=55 // pred_check
        %p468 = pneg %p148
      $region58: #{residual_block_3d.8} parent=55 // pred_check_branch
        %470 = sbr.rel (%p468) target = $region60
      $region59: #{residual_block_3d.8} parent=55 // pred_region
        %p471 = scmp.lt.s32.totalorder %s27, 3
        %s472 = scalar_select %p471, %s27, 3
        %p473 = scmp.lt.s32.totalorder %s28, 0
        %s474 = scalar_select %p473, %s28, 0
        %p475 = scmp.lt.s32.totalorder %s29, 0
        %s476 = scalar_select %p475, %s29, 0
        %s477 = sadd.s32 %s476, %s474
        %s478 = sadd.s32 %s477, %s472
        %s479 = smul.addr %s478, 4
        %s480 = scalar_lea.vmem %s3, %s479
      $region60: #{residual_block_3d.8} parent=55 // pred_fallthru
        _
      // Predicated region
      $region61: #{residual_block_3d.8} parent=55 // pred_check
        %p481 = pneg %p178
      $region62: #{residual_block_3d.8} parent=55 // pred_check_branch
        %483 = sbr.rel (%p481) target = $region64
      $region63: #{residual_block_3d.8} parent=55 // pred_region
        %p484 = scmp.lt.s32.totalorder %s27, 3
        %s485 = scalar_select %p484, %s27, 3
        %p486 = scmp.lt.s32.totalorder %s28, 0
        %s487 = scalar_select %p486, %s28, 0
        %p488 = scmp.lt.s32.totalorder %s29, 0
        %s489 = scalar_select %p488, %s29, 0
        %s490 = sadd.s32 %s489, %s487
        %s491 = sadd.s32 %s490, %s485
        %s492 = smul.addr %s491, 8
        %s493 = scalar_lea.vmem %s4, %s492
      $region64: #{residual_block_3d.8} parent=55 // pred_fallthru
        _
      // Predicated region
      $region65: #{residual_block_3d.8} parent=55 // pred_check
        %p494 = pneg %p208
      $region66: #{residual_block_3d.8} parent=55 // pred_check_branch
        %496 = sbr.rel (%p494) target = $region68
      $region67: #{residual_block_3d.8} parent=55 // pred_region
        %p497 = scmp.lt.s32.totalorder %s27, 3
        %s498 = scalar_select %p497, %s27, 3
        %p499 = scmp.lt.s32.totalorder %s28, 0
        %s500 = scalar_select %p499, %s28, 0
        %p501 = scmp.lt.s32.totalorder %s29, 0
        %s502 = scalar_select %p501, %s29, 0
        %s503 = sadd.s32 %s502, %s500
        %s504 = sadd.s32 %s503, %s498
        %s505 = smul.addr %s504, 8
        %s506 = scalar_lea.vmem %s5, %s505
      $region68: #{residual_block_3d.8} parent=55 // pred_fallthru
        _
    $region56: #{residual_block_3d.8} parent=5 // pred_fallthru
      _
  $region6: #{residual_block_3d.8} parent=0 // loop_footer
    %s16 = sadd.s32 1, %s12
  $region7: #{residual_block_3d.8} parent=0 // loop_footer_branch
    %11 = sbr.rel target = $region3
  $region8: #{residual_block_3d.8} parent=0 // loop_exit
    _

// kernel: residual_block_3d.9
$region0: #{residual_block_3d.9}
  #allocation0 [shape = 'u32[]', space=smem, size = 0x4, offset = 0x4, fixed_abs, tag = 'smem constant byte address 0x4 - core index']
  #allocation1 [shape = 'u32[72,128]{1,0:T(1,128)}', space=vmem, size = 0x9000, scoped, tag = 'internal scratch']
  %s0 = inlined_call_operand.vmem [shape: bf16[4,1,8,128], index: 0, kind: input, shape index: {}]
  %s1 = inlined_call_operand.vmem [shape: bf16[4,1,8,128], index: 1, kind: input, shape index: {}]
  %s2 = inlined_call_operand.vmem [shape: f32[1,1,1,128], index: 2, kind: input, shape index: {}]
  %s3 = inlined_call_operand.vmem [shape: f32[1,1,1,128], index: 3, kind: input, shape index: {}]
  %s4 = inlined_call_operand.vmem [shape: f32[1,1,1,128], index: 4, kind: input, shape index: {}]
  %s5 = inlined_call_operand.vmem [shape: f32[1,1,1,128], index: 5, kind: input, shape index: {}]
  %s6 = inlined_call_operand.vmem [shape: bf16[4,1,8,128], index: 6, kind: output, shape index: {}]
  %s7 = sld [smem:[#allocation0]]
  $region57: #{residual_block_3d.9} parent=0
    _
  %s9 = ssub.s32 1, %s7
  %s10 = scalar_select 0, %s9, %s7
  loop: start=0, step=1, limit=6
  $region2: #{residual_block_3d.9} parent=0 // loop_pre_header
    _
  $region3: #{residual_block_3d.9} parent=0 // loop_header
    %s12 = sphi 0, %s16
    %p13 = scmp.ge.s32.totalorder %s12, 6
    %s19 = sphi 0, %s38
    %s20 = sphi 0, %s34
    %s21 = sphi 0, %s30
    %s22 = sphi 0, %s19
    %s23 = sphi 0, %s20
    %s24 = sphi 0, %s21
    %s25 = sphi 0, %s22
    %s26 = sphi 0, %s23
    %s27 = sphi 0, %s24
    %s45 = sphi 0, %s47
    %s48 = sphi 0, %s45
    %s49 = sphi 0, %s48
    %s65 = sphi 0, %s49
    %s75 = sphi 0, %s77
    %s78 = sphi 0, %s75
    %s79 = sphi 0, %s78
    %s95 = sphi 0, %s79
    %s101 = sphi 0, %s103
    %s104 = sphi 0, %s101
    %s105 = sphi 0, %s104
    %s121 = sphi 0, %s105
    %s127 = sphi 0, %s129
    %s130 = sphi 0, %s127
    %s131 = sphi 0, %s130
    %s147 = sphi 0, %s131
    %s153 = sphi 0, %s155
    %s156 = sphi 0, %s153
    %s157 = sphi 0, %s156
    %s173 = sphi 0, %s157
    %s179 = sphi 0, %s181
    %s182 = sphi 0, %s179
    %s183 = sphi 0, %s182
    %s199 = sphi 0, %s183
    %s209 = sphi 0, %s211
    %s212 = sphi 0, %s209
    %s213 = sphi 0, %s212
    %s229 = sphi 0, %s213
  $region4: #{residual_block_3d.9} parent=0 // loop_header_branch
    %15 = sbr.rel (%p13) target = $region8
  $region5: #{residual_block_3d.9} parent=0 // loop_body
    %s17 = ssub.s32 %s12, 1
    %s18 = ssub.s32 %s12, 2
    %s28 = sadd.s32 1, %s21
    %p29 = scmp.ge.s32.totalorder %s28, 1
    %s30 = scalar_select %p29, 0, %s28
    %s31 = sadd.s32 1, %s20
    %s32 = scalar_select %p29, %s31, %s20
    %p33 = scmp.ge.s32.totalorder %s32, 1
    %s34 = scalar_select %p33, 0, %s32
    %s35 = sadd.s32 1, %s19
    %s36 = scalar_select %p33, %s35, %s19
    %p37 = scmp.ge.s32.totalorder %s36, 4
    %s38 = scalar_select %p37, 0, %s36
    %s39 = ssub.s32 %s19, %s38
    %s40 = ssub.s32 %s20, %s34
    %s41 = sor.u32 %s39, %s40
    %s42 = ssub.s32 %s21, %s30
    %s43 = sor.u32 %s41, %s42
    %p44 = scmp.eq.s32.totalorder %s43, 0
    %s46 = sadd.s32 %s45, 1
    %s47 = scalar_select %p44, %s45, %s46
    %p50 = pneg %p44
    %p51 = scmp.eq.s32.totalorder %s12, 3
    %p52 = por %p50, %p51
    %p53 = scmp.ne.s32.totalorder %s45, %s48
    %p54 = scmp.eq.s32.totalorder %s12, 0
    %p55 = por %p53, %p54
    %p56 = scmp.ne.s32.totalorder %s45, %s48
    %p57 = scmp.eq.s32.totalorder %s17, 3
    %p58 = por %p56, %p57
    %p59 = scmp.ne.s32.totalorder %s48, %s49
    %p60 = scmp.eq.s32.totalorder %s17, 0
    %p61 = por %p59, %p60
    %p62 = scmp.ne.s32.totalorder %s48, %s49
    %p63 = scmp.eq.s32.totalorder %s18, 3
    %p64 = por %p62, %p63
    %p66 = scmp.ne.s32.totalorder %s49, %s65
    %p67 = scmp.eq.s32.totalorder %s18, 0
    %p68 = por %p66, %p67
    %s69 = ssub.s32 %s19, %s38
    %s70 = ssub.s32 %s20, %s34
    %s71 = sor.u32 %s69, %s70
    %s72 = ssub.s32 %s21, %s30
    %s73 = sor.u32 %s71, %s72
    %p74 = scmp.eq.s32.totalorder %s73, 0
    %s76 = sadd.s32 %s75, 1
    %s77 = scalar_select %p74, %s75, %s76
    %p80 = pneg %p74
    %p81 = scmp.eq.s32.totalorder %s12, 3
    %p82 = por %p80, %p81
    %p83 = scmp.ne.s32.totalorder %s75, %s78
    %p84 = scmp.eq.s32.totalorder %s12, 0
    %p85 = por %p83, %p84
    %p86 = scmp.ne.s32.totalorder %s75, %s78
    %p87 = scmp.eq.s32.totalorder %s17, 3
    %p88 = por %p86, %p87
    %p89 = scmp.ne.s32.totalorder %s78, %s79
    %p90 = scmp.eq.s32.totalorder %s17, 0
    %p91 = por %p89, %p90
    %p92 = scmp.ne.s32.totalorder %s78, %s79
    %p93 = scmp.eq.s32.totalorder %s18, 3
    %p94 = por %p92, %p93
    %p96 = scmp.ne.s32.totalorder %s79, %s95
    %p97 = scmp.eq.s32.totalorder %s18, 0
    %p98 = por %p96, %p97
    %s99 = ssub.s32 %s21, %s30
    %p100 = scmp.eq.s32.totalorder %s99, 0
    %s102 = sadd.s32 %s101, 1
    %s103 = scalar_select %p100, %s101, %s102
    %p106 = pneg %p100
    %p107 = scmp.eq.s32.totalorder %s12, 3
    %p108 = por %p106, %p107
    %p109 = scmp.ne.s32.totalorder %s101, %s104
    %p110 = scmp.eq.s32.totalorder %s12, 0
    %p111 = por %p109, %p110
    %p112 = scmp.ne.s32.totalorder %s101, %s104
    %p113 = scmp.eq.s32.totalorder %s17, 3
    %p114 = por %p112, %p113
    %p115 = scmp.ne.s32.totalorder %s104, %s105
    %p116 = scmp.eq.s32.totalorder %s17, 0
    %p117 = por %p115, %p116
    %p118 = scmp.ne.s32.totalorder %s104, %s105
    %p119 = scmp.eq.s32.totalorder %s18, 3
    %p120 = por %p118, %p119
    %p122 = scmp.ne.s32.totalorder %s105, %s121
    %p123 = scmp.eq.s32.totalorder %s18, 0
    %p124 = por %p122, %p123
    %s125 = ssub.s32 %s21, %s30
    %p126 = scmp.eq.s32.totalorder %s125, 0
    %s128 = sadd.s32 %s127, 1
    %s129 = scalar_select %p126, %s127, %s128
    %p132 = pneg %p126
    %p133 = scmp.eq.s32.totalorder %s12, 3
    %p134 = por %p132, %p133
    %p135 = scmp.ne.s32.totalorder %s127, %s130
    %p136 = scmp.eq.s32.totalorder %s12, 0
    %p137 = por %p135, %p136
    %p138 = scmp.ne.s32.totalorder %s127, %s130
    %p139 = scmp.eq.s32.totalorder %s17, 3
    %p140 = por %p138, %p139
    %p141 = scmp.ne.s32.totalorder %s130, %s131
    %p142 = scmp.eq.s32.totalorder %s17, 0
    %p143 = por %p141, %p142
    %p144 = scmp.ne.s32.totalorder %s130, %s131
    %p145 = scmp.eq.s32.totalorder %s18, 3
    %p146 = por %p144, %p145
    %p148 = scmp.ne.s32.totalorder %s131, %s147
    %p149 = scmp.eq.s32.totalorder %s18, 0
    %p150 = por %p148, %p149
    %s151 = ssub.s32 %s21, %s30
    %p152 = scmp.eq.s32.totalorder %s151, 0
    %s154 = sadd.s32 %s153, 1
    %s155 = scalar_select %p152, %s153, %s154
    %p158 = pneg %p152
    %p159 = scmp.eq.s32.totalorder %s12, 3
    %p160 = por %p158, %p159
    %p161 = scmp.ne.s32.totalorder %s153, %s156
    %p162 = scmp.eq.s32.totalorder %s12, 0
    %p163 = por %p161, %p162
    %p164 = scmp.ne.s32.totalorder %s153, %s156
    %p165 = scmp.eq.s32.totalorder %s17, 3
    %p166 = por %p164, %p165
    %p167 = scmp.ne.s32.totalorder %s156, %s157
    %p168 = scmp.eq.s32.totalorder %s17, 0
    %p169 = por %p167, %p168
    %p170 = scmp.ne.s32.totalorder %s156, %s157
    %p171 = scmp.eq.s32.totalorder %s18, 3
    %p172 = por %p170, %p171
    %p174 = scmp.ne.s32.totalorder %s157, %s173
    %p175 = scmp.eq.s32.totalorder %s18, 0
    %p176 = por %p174, %p175
    %s177 = ssub.s32 %s21, %s30
    %p178 = scmp.eq.s32.totalorder %s177, 0
    %s180 = sadd.s32 %s179, 1
    %s181 = scalar_select %p178, %s179, %s180
    %p184 = pneg %p178
    %p185 = scmp.eq.s32.totalorder %s12, 3
    %p186 = por %p184, %p185
    %p187 = scmp.ne.s32.totalorder %s179, %s182
    %p188 = scmp.eq.s32.totalorder %s12, 0
    %p189 = por %p187, %p188
    %p190 = scmp.ne.s32.totalorder %s179, %s182
    %p191 = scmp.eq.s32.totalorder %s17, 3
    %p192 = por %p190, %p191
    %p193 = scmp.ne.s32.totalorder %s182, %s183
    %p194 = scmp.eq.s32.totalorder %s17, 0
    %p195 = por %p193, %p194
    %p196 = scmp.ne.s32.totalorder %s182, %s183
    %p197 = scmp.eq.s32.totalorder %s18, 3
    %p198 = por %p196, %p197
    %p200 = scmp.ne.s32.totalorder %s183, %s199
    %p201 = scmp.eq.s32.totalorder %s18, 0
    %p202 = por %p200, %p201
    %s203 = ssub.s32 %s19, %s38
    %s204 = ssub.s32 %s20, %s34
    %s205 = sor.u32 %s203, %s204
    %s206 = ssub.s32 %s21, %s30
    %s207 = sor.u32 %s205, %s206
    %p208 = scmp.eq.s32.totalorder %s207, 0
    %s210 = sadd.s32 %s209, 1
    %s211 = scalar_select %p208, %s209, %s210
    %p214 = pneg %p208
    %p215 = scmp.eq.s32.totalorder %s12, 3
    %p216 = por %p214, %p215
    %p217 = scmp.ne.s32.totalorder %s209, %s212
    %p218 = scmp.eq.s32.totalorder %s12, 0
    %p219 = por %p217, %p218
    %p220 = scmp.ne.s32.totalorder %s209, %s212
    %p221 = scmp.eq.s32.totalorder %s17, 3
    %p222 = por %p220, %p221
    %p223 = scmp.ne.s32.totalorder %s212, %s213
    %p224 = scmp.eq.s32.totalorder %s17, 0
    %p225 = por %p223, %p224
    %p226 = scmp.ne.s32.totalorder %s212, %s213
    %p227 = scmp.eq.s32.totalorder %s18, 3
    %p228 = por %p226, %p227
    %p230 = scmp.ne.s32.totalorder %s213, %s229
    %p231 = scmp.eq.s32.totalorder %s18, 0
    %p232 = por %p230, %p231
    %p233 = scmp.le.s32.totalorder 1, %s12
    %p234 = scmp.lt.s32.totalorder %s12, 5
    %p235 = pnand %p233, %p234
    %p236 = pneg %p235
    // Predicated region
    $region9: #{residual_block_3d.9} parent=5 // pred_check
      _
    $region10: #{residual_block_3d.9} parent=5 // pred_check_branch
      %238 = sbr.rel (%p235) target = $region12
    $region11: #{residual_block_3d.9} parent=5 // pred_region
      %s239 = ssub.s32 %s12, 1
      // Predicated region
      $region13: #{residual_block_3d.9} parent=11 // pred_check
        %p240 = pneg %p117
      $region14: #{residual_block_3d.9} parent=11 // pred_check_branch
        %242 = sbr.rel (%p240) target = $region16
      $region15: #{residual_block_3d.9} parent=11 // pred_region
        %p243 = scmp.lt.s32.totalorder %s24, 0
        %s244 = scalar_select %p243, %s24, 0
        %s245 = scalar_lea.vmem %s2, %s244
      $region16: #{residual_block_3d.9} parent=11 // pred_fallthru
        _
      // Predicated region
      $region17: #{residual_block_3d.9} parent=11 // pred_check
        %p246 = pneg %p143
      $region18: #{residual_block_3d.9} parent=11 // pred_check_branch
        %248 = sbr.rel (%p246) target = $region20
      $region19: #{residual_block_3d.9} parent=11 // pred_region
        %p249 = scmp.lt.s32.totalorder %s24, 0
        %s250 = scalar_select %p249, %s24, 0
        %s251 = scalar_lea.vmem %s3, %s250
      $region20: #{residual_block_3d.9} parent=11 // pred_fallthru
        _
      // Predicated region
      $region21: #{residual_block_3d.9} parent=11 // pred_check
        %p252 = pneg %p169
      $region22: #{residual_block_3d.9} parent=11 // pred_check_branch
        %254 = sbr.rel (%p252) target = $region24
      $region23: #{residual_block_3d.9} parent=11 // pred_region
        %p255 = scmp.lt.s32.totalorder %s24, 0
        %s256 = scalar_select %p255, %s24, 0
        %s257 = scalar_lea.vmem %s4, %s256
      $region24: #{residual_block_3d.9} parent=11 // pred_fallthru
        _
      // Predicated region
      $region25: #{residual_block_3d.9} parent=11 // pred_check
        %p258 = pneg %p195
      $region26: #{residual_block_3d.9} parent=11 // pred_check_branch
        %260 = sbr.rel (%p258) target = $region28
      $region27: #{residual_block_3d.9} parent=11 // pred_region
        %p261 = scmp.lt.s32.totalorder %s24, 0
        %s262 = scalar_select %p261, %s24, 0
        %s263 = scalar_lea.vmem %s5, %s262
      $region28: #{residual_block_3d.9} parent=11 // pred_fallthru
        _
    $region12: #{residual_block_3d.9} parent=5 // pred_fallthru
      _
    %p264 = scmp.lt.s32.totalorder %s12, 4
    // Predicated region
    $region29: #{residual_block_3d.9} parent=5 // pred_check
      %p265 = pneg %p264
    $region30: #{residual_block_3d.9} parent=5 // pred_check_branch
      %267 = sbr.rel (%p265) target = $region32
    $region31: #{residual_block_3d.9} parent=5 // pred_region
      // Predicated region
      $region33: #{residual_block_3d.9} parent=31 // pred_check
        %p268 = pneg %p55
      $region34: #{residual_block_3d.9} parent=31 // pred_check_branch
        %270 = sbr.rel (%p268) target = $region36
      $region35: #{residual_block_3d.9} parent=31 // pred_region
        %p271 = scmp.lt.s32.totalorder %s19, 3
        %s272 = scalar_select %p271, %s19, 3
        %p273 = scmp.lt.s32.totalorder %s20, 0
        %s274 = scalar_select %p273, %s20, 0
        %p275 = scmp.lt.s32.totalorder %s21, 0
        %s276 = scalar_select %p275, %s21, 0
        %s277 = sadd.s32 %s276, %s274
        %s278 = sadd.s32 %s277, %s272
        %s279 = smul.addr %s278, 4
        %s280 = scalar_lea.vmem %s0, %s279
      $region36: #{residual_block_3d.9} parent=31 // pred_fallthru
        _
      // Predicated region
      $region37: #{residual_block_3d.9} parent=31 // pred_check
        %p281 = pneg %p85
      $region38: #{residual_block_3d.9} parent=31 // pred_check_branch
        %283 = sbr.rel (%p281) target = $region40
      $region39: #{residual_block_3d.9} parent=31 // pred_region
        %p284 = scmp.lt.s32.totalorder %s19, 3
        %s285 = scalar_select %p284, %s19, 3
        %p286 = scmp.lt.s32.totalorder %s20, 0
        %s287 = scalar_select %p286, %s20, 0
        %p288 = scmp.lt.s32.totalorder %s21, 0
        %s289 = scalar_select %p288, %s21, 0
        %s290 = sadd.s32 %s289, %s287
        %s291 = sadd.s32 %s290, %s285
        %s292 = smul.addr %s291, 4
        %s293 = scalar_lea.vmem %s1, %s292
      $region40: #{residual_block_3d.9} parent=31 // pred_fallthru
        _
    $region32: #{residual_block_3d.9} parent=5 // pred_fallthru
      _
    %p294 = scmp.le.s32.totalorder 1, %s12
    %p295 = scmp.lt.s32.totalorder %s12, 5
    %p296 = pnand %p294, %p295
    %p297 = pneg %p296
    // Predicated region
    $region41: #{residual_block_3d.9} parent=5 // pred_check
      _
    $region42: #{residual_block_3d.9} parent=5 // pred_check_branch
      %299 = sbr.rel (%p296) target = $region44
    $region43: #{residual_block_3d.9} parent=5 // pred_region
      %s300 = ssub.s32 %s12, 1
      %p301 = scmp.lt.s32.totalorder %s22, 3
      %s302 = scalar_select %p301, %s22, 3
      %p303 = scmp.lt.s32.totalorder %s23, 0
      %s304 = scalar_select %p303, %s23, 0
      %p305 = scmp.lt.s32.totalorder %s24, 0
      %s306 = scalar_select %p305, %s24, 0
      %s307 = sadd.s32 %s306, %s304
      %s308 = sadd.s32 %s307, %s302
      %s309 = smul.addr %s308, 4
      %s310 = scalar_lea.vmem %s0, %s309
      %p311 = pneg %p61
      %p312 = pneg %p58
      %p313 = scmp.lt.s32.totalorder %s22, 3
      %s314 = scalar_select %p313, %s22, 3
      %p315 = scmp.lt.s32.totalorder %s23, 0
      %s316 = scalar_select %p315, %s23, 0
      %p317 = scmp.lt.s32.totalorder %s24, 0
      %s318 = scalar_select %p317, %s24, 0
      %s319 = sadd.s32 %s318, %s316
      %s320 = sadd.s32 %s319, %s314
      %s321 = smul.addr %s320, 4
      %s322 = scalar_lea.vmem %s1, %s321
      %p323 = pneg %p91
      %p324 = pneg %p88
      %p325 = scmp.lt.s32.totalorder %s24, 0
      %s326 = scalar_select %p325, %s24, 0
      %s327 = scalar_lea.vmem %s2, %s326
      %p328 = pneg %p117
      %p329 = pneg %p114
      %p330 = scmp.lt.s32.totalorder %s24, 0
      %s331 = scalar_select %p330, %s24, 0
      %s332 = scalar_lea.vmem %s3, %s331
      %p333 = pneg %p143
      %p334 = pneg %p140
      %p335 = scmp.lt.s32.totalorder %s24, 0
      %s336 = scalar_select %p335, %s24, 0
      %s337 = scalar_lea.vmem %s4, %s336
      %p338 = pneg %p169
      %p339 = pneg %p166
      %p340 = scmp.lt.s32.totalorder %s24, 0
      %s341 = scalar_select %p340, %s24, 0
      %s342 = scalar_lea.vmem %s5, %s341
      %p343 = pneg %p195
      %p344 = pneg %p192
      %p345 = pneg %p225
      %p346 = pneg %p222
      %p347 = scmp.lt.s32.totalorder %s22, 3
      %s348 = scalar_select %p347, %s22, 3
      %p349 = scmp.lt.s32.totalorder %s23, 0
      %s350 = scalar_select %p349, %s23, 0
      %p351 = scmp.lt.s32.totalorder %s24, 0
      %s352 = scalar_select %p351, %s24, 0
      %s353 = sadd.s32 %s352, %s350
      %s354 = sadd.s32 %s353, %s348
      %s355 = smul.addr %s354, 4
      %s356 = scalar_lea.vmem %s6, %s355
      %p357 = scmp.lt.s32.totalorder %s22, 3
      %s358 = scalar_select %p357, %s22, 3
      %p359 = scmp.lt.s32.totalorder %s23, 0
      %s360 = scalar_select %p359, %s23, 0
      %p361 = scmp.lt.s32.totalorder %s24, 0
      %s362 = scalar_select %p361, %s24, 0
      %s363 = sadd.s32 %s362, %s360
      %s364 = sadd.s32 %s363, %s358
      %s365 = smul.addr %s364, 4
      %s366 = scalar_lea.vmem %s0, %s365
      %p367 = scmp.lt.s32.totalorder %s22, 3
      %s368 = scalar_select %p367, %s22, 3
      %p369 = scmp.lt.s32.totalorder %s23, 0
      %s370 = scalar_select %p369, %s23, 0
      %p371 = scmp.lt.s32.totalorder %s24, 0
      %s372 = scalar_select %p371, %s24, 0
      %s373 = sadd.s32 %s372, %s370
      %s374 = sadd.s32 %s373, %s368
      %s375 = smul.addr %s374, 4
      %s376 = scalar_lea.vmem %s1, %s375
      %p377 = scmp.lt.s32.totalorder %s24, 0
      %s378 = scalar_select %p377, %s24, 0
      %s379 = scalar_lea.vmem %s2, %s378
      %p380 = scmp.lt.s32.totalorder %s24, 0
      %s381 = scalar_select %p380, %s24, 0
      %s382 = scalar_lea.vmem %s3, %s381
      %p383 = scmp.lt.s32.totalorder %s24, 0
      %s384 = scalar_select %p383, %s24, 0
      %s385 = scalar_lea.vmem %s4, %s384
      %p386 = scmp.lt.s32.totalorder %s24, 0
      %s387 = scalar_select %p386, %s24, 0
      %s388 = scalar_lea.vmem %s5, %s387
      %p389 = scmp.lt.s32.totalorder %s22, 3
      %s390 = scalar_select %p389, %s22, 3
      %p391 = scmp.lt.s32.totalorder %s23, 0
      %s392 = scalar_select %p391, %s23, 0
      %p393 = scmp.lt.s32.totalorder %s24, 0
      %s394 = scalar_select %p393, %s24, 0
      %s395 = sadd.s32 %s394, %s392
      %s396 = sadd.s32 %s395, %s390
      %s397 = smul.addr %s396, 4
      %s398 = scalar_lea.vmem %s6, %s397
      %v399 = vld [vmem:[%s366] sm:$0xf]
      %v400 = vunpack.c.l.bf16 %v399
      %v401 = vld [vmem:[%s379] sm:$0x1]
      %v403 = vperm.slane %v401, 0
      %v405 = vmul.f32 %v400, %v403
      %v406 = vld [vmem:[%s382] sm:$0x1]
      %v408 = vperm.slane %v406, 0
      %v410 = vadd.f32 %v405, %v408
      %v411 = vld [vmem:[%s376] sm:$0xf]
      %v412 = vunpack.c.l.bf16 %v411
      %v413 = vld [vmem:[%s385] sm:$0x1]
      %v415 = vperm.slane %v413, 0
      %v417 = vmul.f32 %v412, %v415
      %v418 = vld [vmem:[%s388] sm:$0x1]
      %v420 = vperm.slane %v418, 0
      %v422 = vadd.f32 %v417, %v420
      %v423 = vadd.f32 %v410, %v422
      %v424 = vmax.f32 %v423, 0.0
      %v425 = vpack.c.bf16 %v424, %v424
      %426 = vst [vmem:[%s398] sm:$0xf] %v425
      %p427 = scmp.lt.s32.totalorder %s22, 3
      %s428 = scalar_select %p427, %s22, 3
      %p429 = scmp.lt.s32.totalorder %s23, 0
      %s430 = scalar_select %p429, %s23, 0
      %p431 = scmp.lt.s32.totalorder %s24, 0
      %s432 = scalar_select %p431, %s24, 0
      %s433 = sadd.s32 %s432, %s430
      %s434 = sadd.s32 %s433, %s428
      %s435 = smul.addr %s434, 4
      %s436 = scalar_lea.vmem %s6, %s435
      // Predicated region
      $region45: #{residual_block_3d.9} parent=43 // pred_check
        %p437 = pneg %p222
      $region46: #{residual_block_3d.9} parent=43 // pred_check_branch
        %439 = sbr.rel (%p437) target = $region48
      $region47: #{residual_block_3d.9} parent=43 // pred_region
        _
      $region48: #{residual_block_3d.9} parent=43 // pred_fallthru
        _
    $region44: #{residual_block_3d.9} parent=5 // pred_fallthru
      _
    %p440 = scmp.le.s32.totalorder 2, %s12
    // Predicated region
    $region49: #{residual_block_3d.9} parent=5 // pred_check
      %p441 = pneg %p440
    $region50: #{residual_block_3d.9} parent=5 // pred_check_branch
      %443 = sbr.rel (%p441) target = $region52
    $region51: #{residual_block_3d.9} parent=5 // pred_region
      %s444 = ssub.s32 %s12, 2
      // Predicated region
      $region53: #{residual_block_3d.9} parent=51 // pred_check
        %p445 = pneg %p228
      $region54: #{residual_block_3d.9} parent=51 // pred_check_branch
        %447 = sbr.rel (%p445) target = $region56
      $region55: #{residual_block_3d.9} parent=51 // pred_region
        %p448 = scmp.lt.s32.totalorder %s25, 3
        %s449 = scalar_select %p448, %s25, 3
        %p450 = scmp.lt.s32.totalorder %s26, 0
        %s451 = scalar_select %p450, %s26, 0
        %p452 = scmp.lt.s32.totalorder %s27, 0
        %s453 = scalar_select %p452, %s27, 0
        %s454 = sadd.s32 %s453, %s451
        %s455 = sadd.s32 %s454, %s449
        %s456 = smul.addr %s455, 4
        %s457 = scalar_lea.vmem %s6, %s456
      $region56: #{residual_block_3d.9} parent=51 // pred_fallthru
        _
    $region52: #{residual_block_3d.9} parent=5 // pred_fallthru
      _
  $region6: #{residual_block_3d.9} parent=0 // loop_footer
    %s16 = sadd.s32 1, %s12
  $region7: #{residual_block_3d.9} parent=0 // loop_footer_branch
    %11 = sbr.rel target = $region3
  $region8: #{residual_block_3d.9} parent=0 // loop_exit
    _

</llo_original>
